<compile_context>
chip_gen: v5e
topology: v5e:2x2
jax: 0.10.0
libtpu: 0.0.40
codegen_flags: <defaults>
</compile_context>

<pallas_src>
import jax
import jax.numpy as jnp
from jax.experimental import pallas as pl
from jax.experimental.pallas import tpu as pltpu

# ---------------- small synthetic RoBERTa config ----------------
VOCAB = 64
HIDDEN = 32          # stands in for 768
N_HEADS = 4
HEAD_DIM = HIDDEN // N_HEADS
FFN = 64
N_LAYERS = 2
MAX_POS = 40
PAD_IDX = 1          # RoBERTa padding_idx
NUM_CLASSES = 3
CLS_PAD = 128        # lane-dense padded classifier output width
LN_EPS = 1e-5
ATT_SCALE = 1.0 / float(HEAD_DIM) ** 0.5
NEG_INF = -1.0e9     # plain Python float (a jnp scalar here caused the captured-const error)


# ---------------- traced helpers (used inside the kernel) ----------------
def _ln(x, g, b):
    mu = jnp.mean(x, axis=-1, keepdims=True)
    var = jnp.mean((x - mu) ** 2, axis=-1, keepdims=True)
    return (x - mu) * jax.lax.rsqrt(var + LN_EPS) * g + b


def _rep_spec(shape):
    """BlockSpec for a parameter reused unchanged across all grid steps (never re-DMA'd)."""
    zeros = (0,) * len(shape)
    return pl.BlockSpec(shape, lambda *_: zeros)


# ---------------- the single fused kernel (one batch row per grid step) ----------------
def _fused_forward_kernel(x_ref, mask_row_ref, mask_col_ref,
                          emb_g_ref, emb_b_ref,
                          wq_ref, wk_ref, wv_ref,
                          bq_ref, bk_ref, bv_ref,
                          wo_ref, bo_ref,
                          ln1g_ref, ln1b_ref,
                          w1_ref, b1_ref, w2_ref, b2_ref,
                          ln2g_ref, ln2b_ref,
                          cw1_ref, cb1_ref, cw2_ref, cb2_ref,
                          o_ref):
    # Embedding LayerNorm (embedding dropout = identity, eval mode).
    h = _ln(x_ref[...], emb_g_ref[...], emb_b_ref[...])                  # (S, H) f32

    # Additive attention bias along the key (lane) axis: 0 where attended, -1e9 where masked.
    mask_row = mask_row_ref[...][0].astype(jnp.float32)                  # (1, S)
    bias3d = ((1.0 - mask_row) * NEG_INF)[None]                          # (1, 1, S)

    for l in range(N_LAYERS):                                            # statically unrolled
        xb = h.astype(jnp.bfloat16)
        xh = jnp.broadcast_to(xb[None], (N_HEADS,) + xb.shape)           # (N, S, H) bf16

        # Head-batched Q/K/V projections (1/sqrt(D) already folded into wq/bq at init).
        q = jnp.einsum('nsh,nhd->nsd', xh, wq_ref[l],
                       preferred_element_type=jnp.float32) + bq_ref[l]   # (N, S, D) f32
        k = jnp.einsum('nsh,nhd->nsd', xh, wk_ref[l],
                       preferred_element_type=jnp.float32) + bk_ref[l]
        v = jnp.einsum('nsh,nhd->nsd', xh, wv_ref[l],
                       preferred_element_type=jnp.float32) + bv_ref[l]

        # Batched attention scores + masked softmax (f32).
        s = jnp.einsum('nsd,ntd->nst', q.astype(jnp.bfloat16), k.astype(jnp.bfloat16),
                       preferred_element_type=jnp.float32) + bias3d      # (N, S, S)
        m = jnp.max(s, axis=-1, keepdims=True)
        p = jnp.exp(s - m)
        p = p * pl.reciprocal(jnp.sum(p, axis=-1, keepdims=True), approx=True)

        ctx = jnp.einsum('nst,ntd->nsd', p.astype(jnp.bfloat16), v.astype(jnp.bfloat16),
                         preferred_element_type=jnp.float32)              # (N, S, D)

        # Output projection with the head merge folded in: sum_n ctx[n] @ Wo[n] -> (S, H).
        attn = jnp.einsum('nsd,ndh->nsh', ctx.astype(jnp.bfloat16), wo_ref[l],
                          preferred_element_type=jnp.float32)
        attn = jnp.sum(attn, axis=0) + bo_ref[l]                          # (S, H)
        h1 = _ln(attn + h, ln1g_ref[l], ln1b_ref[l])

        # FFN: fc1 + GeLU + fc2 + residual + LN2 (all in-register).
        f = jnp.dot(h1.astype(jnp.bfloat16), w1_ref[l],
                    preferred_element_type=jnp.float32) + b1_ref[l]
        # TODO(synk): tanh-approx GeLU (erf has no Pallas/Mosaic lowering); ~1e-3 deviation
        #             from the exact erf GeLU used by HF RoBERTa.
        f = jax.nn.gelu(f, approximate=True)
        f = jnp.dot(f.astype(jnp.bfloat16), w2_ref[l],
                    preferred_element_type=jnp.float32) + b2_ref[l]
        h = _ln(f + h1, ln2g_ref[l], ln2b_ref[l])

    # Masked max pooling (torch: hidden[mask == 0] = -1e9 ; max over the sequence dim).
    # TODO(synk): a fully-masked row would pool to -1e9 everywhere (same as the reference).
    keep = mask_col_ref[...][0]                                           # (S, 1) int32
    pooled = jnp.max(jnp.where(keep == 0, NEG_INF, h), axis=0, keepdims=True)   # (1, H)

    # Classifier: Linear(H, H) -> Dropout(0.1) (identity, eval) -> Linear(H, CLS_PAD-padded).
    c = jnp.dot(pooled.astype(jnp.bfloat16), cw1_ref[...],
                preferred_element_type=jnp.float32) + cb1_ref[...]
    logits = jnp.dot(c.astype(jnp.bfloat16), cw2_ref[...],
                     preferred_element_type=jnp.float32) + cb2_ref[...]   # (1, CLS_PAD)
    o_ref[...] = logits.reshape(1, 1, CLS_PAD)


# ---------------- parameter init (deterministic, synthetic) ----------------
def init_params(key):
    keys = iter(jax.random.split(key, 32))

    def nrm(shape, scale=0.02):
        return scale * jax.random.normal(next(keys), shape, dtype=jnp.float32)

    L, N, H, D, F = N_LAYERS, N_HEADS, HIDDEN, HEAD_DIM, FFN
    params = {
        "word_emb": nrm((VOCAB, H)),
        "pos_emb": nrm((MAX_POS, H)),
        "type_emb": nrm((1, H)),
        "emb_ln_g": jnp.ones((1, H), jnp.float32),
        "emb_ln_b": jnp.zeros((1, H), jnp.float32),
        # attention weights: head-major, layer-stacked; 1/sqrt(D) folded into Q proj
        "wq": (nrm((L, N, H, D)) * ATT_SCALE).astype(jnp.bfloat16),
        "bq": nrm((L, N, 1, D)) * ATT_SCALE,
        "wk": nrm((L, N, H, D)).astype(jnp.bfloat16),
        "bk": nrm((L, N, 1, D)),
        "wv": nrm((L, N, H, D)).astype(jnp.bfloat16),
        "bv": nrm((L, N, 1, D)),
        "wo": nrm((L, N, D, H)).astype(jnp.bfloat16),
        "bo": nrm((L, 1, H)),
        "ln1_g": jnp.ones((L, 1, H), jnp.float32),
        "ln1_b": jnp.zeros((L, 1, H), jnp.float32),
        "w1": nrm((L, H, F)).astype(jnp.bfloat16),
        "b1": nrm((L, 1, F)),
        "w2": nrm((L, F, H)).astype(jnp.bfloat16),
        "b2": nrm((L, 1, H)),
        "ln2_g": jnp.ones((L, 1, H), jnp.float32),
        "ln2_b": jnp.zeros((L, 1, H), jnp.float32),
        # classifier: Linear(H, H) -> Dropout(0.1) -> Linear(H, num_classes)
        "cls_w1": nrm((H, H)).astype(jnp.bfloat16),
        "cls_b1": nrm((1, H)),
    }
    w2 = nrm((H, NUM_CLASSES))
    b2 = nrm((1, NUM_CLASSES))
    params["cls_w2p"] = jnp.pad(w2, ((0, 0), (0, CLS_PAD - NUM_CLASSES))).astype(jnp.bfloat16)
    params["cls_b2p"] = jnp.pad(b2, ((0, 0), (0, CLS_PAD - NUM_CLASSES)))
    return params


# ---------------- model forward (thin JAX glue + one fused pallas_call) ----------------
def model_forward(params, input_ids, attention_mask):
    B, S = input_ids.shape
    assert MAX_POS >= S + PAD_IDX + 1, "pos_emb table too small for this sequence length"
    mask = attention_mask.astype(jnp.int32)

    # RoBERTa position ids from non-pad tokens (create_position_ids_from_input_ids).
    not_pad = (input_ids != PAD_IDX).astype(jnp.int32)
    position_ids = jnp.cumsum(not_pad, axis=1) * not_pad + PAD_IDX

    # Embedding table gathers stay in JAX (no clean Pallas equivalent for tiny gathers).
    x = (params["word_emb"][input_ids]
         + params["pos_emb"][position_ids]
         + params["type_emb"][0]).astype(jnp.float32).reshape(B * S, HIDDEN)

    mask_row = mask.reshape(B, 1, S)   # lanes = key positions (attention bias)
    mask_col = mask.reshape(B, S, 1)   # sublanes = sequence positions (max-pool)

    L = N_LAYERS
    out = pl.pallas_call(
        _fused_forward_kernel,
        grid=(B,),
        in_specs=[
            pl.BlockSpec((S, HIDDEN), lambda b: (b, 0)),        # embedded activations
            pl.BlockSpec((1, 1, S), lambda b: (b, 0, 0)),       # mask (row layout)
            pl.BlockSpec((1, S, 1), lambda b: (b, 0, 0)),       # mask (column layout)
            _rep_spec((1, HIDDEN)), _rep_spec((1, HIDDEN)),     # embedding LN
            _rep_spec((L, N_HEADS, HIDDEN, HEAD_DIM)),          # wq
            _rep_spec((L, N_HEADS, HIDDEN, HEAD_DIM)),          # wk
            _rep_spec((L, N_HEADS, HIDDEN, HEAD_DIM)),          # wv
            _rep_spec((L, N_HEADS, 1, HEAD_DIM)),               # bq
            _rep_spec((L, N_HEADS, 1, HEAD_DIM)),               # bk
            _rep_spec((L, N_HEADS, 1, HEAD_DIM)),               # bv
            _rep_spec((L, N_HEADS, HEAD_DIM, HIDDEN)),          # wo (head-major rows)
            _rep_spec((L, 1, HIDDEN)),                          # bo
            _rep_spec((L, 1, HIDDEN)), _rep_spec((L, 1, HIDDEN)),   # LN1
            _rep_spec((L, HIDDEN, FFN)), _rep_spec((L, 1, FFN)),    # fc1
            _rep_spec((L, FFN, HIDDEN)), _rep_spec((L, 1, HIDDEN)), # fc2
            _rep_spec((L, 1, HIDDEN)), _rep_spec((L, 1, HIDDEN)),   # LN2
            _rep_spec((HIDDEN, HIDDEN)), _rep_spec((1, HIDDEN)),    # classifier dense
            _rep_spec((HIDDEN, CLS_PAD)), _rep_spec((1, CLS_PAD)),  # classifier out (padded)
        ],
        out_specs=pl.BlockSpec((1, 1, CLS_PAD), lambda b: (b, 0, 0)),
        out_shape=jax.ShapeDtypeStruct((B, 1, CLS_PAD), jnp.float32),
        compiler_params=pltpu.CompilerParams(dimension_semantics=("parallel",)),
    )(x, mask_row, mask_col,
      params["emb_ln_g"], params["emb_ln_b"],
      params["wq"], params["wk"], params["wv"],
      params["bq"], params["bk"], params["bv"],
      params["wo"], params["bo"],
      params["ln1_g"], params["ln1_b"],
      params["w1"], params["b1"], params["w2"], params["b2"],
      params["ln2_g"], params["ln2_b"],
      params["cls_w1"], params["cls_b1"], params["cls_w2p"], params["cls_b2p"])

    return out[:, 0, :NUM_CLASSES]


if __name__ == "__main__":
    key = jax.random.PRNGKey(0)
    pkey, ikey = jax.random.split(key)
    params = init_params(pkey)

    B, S = 2, 8
    input_ids = jax.random.randint(ikey, (B, S), 2, VOCAB, dtype=jnp.int32)
    attention_mask = jnp.array(
        [[1, 1, 1, 1, 1, 1, 1, 1],
         [1, 1, 1, 1, 1, 0, 0, 0]], dtype=jnp.int32)
    # mimic padding tokens where mask == 0
    input_ids = jnp.where(attention_mask == 0, PAD_IDX, input_ids)

    logits = jax.jit(model_forward)(params, input_ids, attention_mask)
    logits = jax.block_until_ready(logits)
    assert logits.shape == (B, NUM_CLASSES)
    assert bool(jnp.all(jnp.isfinite(logits)))
    print("KERNEL_OK")
</pallas_src>

<mosaic_0001>
module attributes {stable_mosaic.version = 11 : i64} {
  func.func @_fused_forward_kernel(%arg0: i32, %arg1: memref<8x32xf32, #tpu.memory_space<vmem>>, %arg2: memref<1x1x8xi32, #tpu.memory_space<vmem>>, %arg3: memref<1x8x1xi32, #tpu.memory_space<vmem>>, %arg4: memref<1x32xf32, #tpu.memory_space<vmem>>, %arg5: memref<1x32xf32, #tpu.memory_space<vmem>>, %arg6: memref<2x4x32x8xbf16, #tpu.memory_space<vmem>>, %arg7: memref<2x4x32x8xbf16, #tpu.memory_space<vmem>>, %arg8: memref<2x4x32x8xbf16, #tpu.memory_space<vmem>>, %arg9: memref<2x4x1x8xf32, #tpu.memory_space<vmem>>, %arg10: memref<2x4x1x8xf32, #tpu.memory_space<vmem>>, %arg11: memref<2x4x1x8xf32, #tpu.memory_space<vmem>>, %arg12: memref<2x4x8x32xbf16, #tpu.memory_space<vmem>>, %arg13: memref<2x1x32xf32, #tpu.memory_space<vmem>>, %arg14: memref<2x1x32xf32, #tpu.memory_space<vmem>>, %arg15: memref<2x1x32xf32, #tpu.memory_space<vmem>>, %arg16: memref<2x32x64xbf16, #tpu.memory_space<vmem>>, %arg17: memref<2x1x64xf32, #tpu.memory_space<vmem>>, %arg18: memref<2x64x32xbf16, #tpu.memory_space<vmem>>, %arg19: memref<2x1x32xf32, #tpu.memory_space<vmem>>, %arg20: memref<2x1x32xf32, #tpu.memory_space<vmem>>, %arg21: memref<2x1x32xf32, #tpu.memory_space<vmem>>, %arg22: memref<32x32xbf16, #tpu.memory_space<vmem>>, %arg23: memref<1x32xf32, #tpu.memory_space<vmem>>, %arg24: memref<32x128xbf16, #tpu.memory_space<vmem>>, %arg25: memref<1x128xf32, #tpu.memory_space<vmem>>, %arg26: memref<1x1x128xf32, #tpu.memory_space<vmem>>) attributes {dimension_semantics = [#tpu.dimension_semantics<parallel>], iteration_bounds = array<i64: 2>, scalar_prefetch = 0 : i64, scratch_operands = 0 : i64, tpu.core_type = #tpu.core_type<tc>, window_params = [{transform_indices = @transform_0, window_bounds = array<i64: 8, 32>}, {transform_indices = @transform_1, window_bounds = array<i64: 1, 1, 8>}, {transform_indices = @transform_2, window_bounds = array<i64: 1, 8, 1>}, {pipeline_mode = #tpu.pipeline_mode<synchronous>, transform_indices = @transform_3, window_bounds = array<i64: 1, 32>}, {pipeline_mode = #tpu.pipeline_mode<synchronous>, transform_indices = @transform_4, window_bounds = array<i64: 1, 32>}, {pipeline_mode = #tpu.pipeline_mode<synchronous>, transform_indices = @transform_5, window_bounds = array<i64: 2, 4, 32, 8>}, {pipeline_mode = #tpu.pipeline_mode<synchronous>, transform_indices = @transform_6, window_bounds = array<i64: 2, 4, 32, 8>}, {pipeline_mode = #tpu.pipeline_mode<synchronous>, transform_indices = @transform_7, window_bounds = array<i64: 2, 4, 32, 8>}, {pipeline_mode = #tpu.pipeline_mode<synchronous>, transform_indices = @transform_8, window_bounds = array<i64: 2, 4, 1, 8>}, {pipeline_mode = #tpu.pipeline_mode<synchronous>, transform_indices = @transform_9, window_bounds = array<i64: 2, 4, 1, 8>}, {pipeline_mode = #tpu.pipeline_mode<synchronous>, transform_indices = @transform_10, window_bounds = array<i64: 2, 4, 1, 8>}, {pipeline_mode = #tpu.pipeline_mode<synchronous>, transform_indices = @transform_11, window_bounds = array<i64: 2, 4, 8, 32>}, {pipeline_mode = #tpu.pipeline_mode<synchronous>, transform_indices = @transform_12, window_bounds = array<i64: 2, 1, 32>}, {pipeline_mode = #tpu.pipeline_mode<synchronous>, transform_indices = @transform_13, window_bounds = array<i64: 2, 1, 32>}, {pipeline_mode = #tpu.pipeline_mode<synchronous>, transform_indices = @transform_14, window_bounds = array<i64: 2, 1, 32>}, {pipeline_mode = #tpu.pipeline_mode<synchronous>, transform_indices = @transform_15, window_bounds = array<i64: 2, 32, 64>}, {pipeline_mode = #tpu.pipeline_mode<synchronous>, transform_indices = @transform_16, window_bounds = array<i64: 2, 1, 64>}, {pipeline_mode = #tpu.pipeline_mode<synchronous>, transform_indices = @transform_17, window_bounds = array<i64: 2, 64, 32>}, {pipeline_mode = #tpu.pipeline_mode<synchronous>, transform_indices = @transform_18, window_bounds = array<i64: 2, 1, 32>}, {pipeline_mode = #tpu.pipeline_mode<synchronous>, transform_indices = @transform_19, window_bounds = array<i64: 2, 1, 32>}, {pipeline_mode = #tpu.pipeline_mode<synchronous>, transform_indices = @transform_20, window_bounds = array<i64: 2, 1, 32>}, {pipeline_mode = #tpu.pipeline_mode<synchronous>, transform_indices = @transform_21, window_bounds = array<i64: 32, 32>}, {pipeline_mode = #tpu.pipeline_mode<synchronous>, transform_indices = @transform_22, window_bounds = array<i64: 1, 32>}, {pipeline_mode = #tpu.pipeline_mode<synchronous>, transform_indices = @transform_23, window_bounds = array<i64: 32, 128>}, {pipeline_mode = #tpu.pipeline_mode<synchronous>, transform_indices = @transform_24, window_bounds = array<i64: 1, 128>}, {transform_indices = @transform_25, window_bounds = array<i64: 1, 1, 128>}]} {
    %c0 = arith.constant 0 : index
    %c0_0 = arith.constant 0 : index
    %0 = vector.load %arg1[%c0, %c0_0] : memref<8x32xf32, #tpu.memory_space<vmem>>, vector<8x32xf32>
    %c0_1 = arith.constant 0 : index
    %c0_2 = arith.constant 0 : index
    %1 = vector.load %arg4[%c0_1, %c0_2] : memref<1x32xf32, #tpu.memory_space<vmem>>, vector<1x32xf32>
    %c0_3 = arith.constant 0 : index
    %c0_4 = arith.constant 0 : index
    %2 = vector.load %arg5[%c0_3, %c0_4] : memref<1x32xf32, #tpu.memory_space<vmem>>, vector<1x32xf32>
    %cst = arith.constant dense<0.000000e+00> : vector<8xf32>
    %3 = vector.multi_reduction <add>, %0, %cst [1] : vector<8x32xf32> to vector<8xf32>
    %4 = vector.shape_cast %3 : vector<8xf32> to vector<8x1xf32>
    %cst_5 = arith.constant 3.200000e+01 : f32
    %5 = vector.broadcast %cst_5 : f32 to vector<8x1xf32>
    %6 = arith.divf %4, %5 : vector<8x1xf32>
    %7 = vector.broadcast %6 : vector<8x1xf32> to vector<8x32xf32>
    %8 = arith.subf %0, %7 : vector<8x32xf32>
    %9 = arith.mulf %8, %8 : vector<8x32xf32>
    %cst_6 = arith.constant dense<0.000000e+00> : vector<8xf32>
    %10 = vector.multi_reduction <add>, %9, %cst_6 [1] : vector<8x32xf32> to vector<8xf32>
    %11 = vector.shape_cast %10 : vector<8xf32> to vector<8x1xf32>
    %cst_7 = arith.constant 3.200000e+01 : f32
    %12 = vector.broadcast %cst_7 : f32 to vector<8x1xf32>
    %13 = arith.divf %11, %12 : vector<8x1xf32>
    %14 = vector.broadcast %6 : vector<8x1xf32> to vector<8x32xf32>
    %15 = arith.subf %0, %14 : vector<8x32xf32>
    %cst_8 = arith.constant 9.99999974E-6 : f32
    %16 = vector.broadcast %cst_8 : f32 to vector<8x1xf32>
    %17 = arith.addf %13, %16 : vector<8x1xf32>
    %18 = math.rsqrt %17 : vector<8x1xf32>
    %19 = vector.broadcast %18 : vector<8x1xf32> to vector<8x32xf32>
    %20 = arith.mulf %15, %19 : vector<8x32xf32>
    %21 = vector.broadcast %1 : vector<1x32xf32> to vector<8x32xf32>
    %22 = arith.mulf %20, %21 : vector<8x32xf32>
    %23 = vector.broadcast %2 : vector<1x32xf32> to vector<8x32xf32>
    %24 = arith.addf %22, %23 : vector<8x32xf32>
    %c0_9 = arith.constant 0 : index
    %c0_10 = arith.constant 0 : index
    %c0_11 = arith.constant 0 : index
    %25 = vector.load %arg2[%c0_9, %c0_10, %c0_11] : memref<1x1x8xi32, #tpu.memory_space<vmem>>, vector<1x1x8xi32>
    %26 = vector.shape_cast %25 : vector<1x1x8xi32> to vector<1x8xi32>
    %27 = arith.sitofp %26 : vector<1x8xi32> to vector<1x8xf32>
    %cst_12 = arith.constant 1.000000e+00 : f32
    %28 = vector.broadcast %cst_12 : f32 to vector<1x8xf32>
    %29 = arith.subf %28, %27 : vector<1x8xf32>
    %cst_13 = arith.constant -1.000000e+09 : f32
    %30 = vector.broadcast %cst_13 : f32 to vector<1x8xf32>
    %31 = arith.mulf %29, %30 : vector<1x8xf32>
    %32 = vector.shape_cast %31 : vector<1x8xf32> to vector<1x1x8xf32>
    %33 = arith.truncf %24 : vector<8x32xf32> to vector<8x32xbf16>
    %34 = vector.shape_cast %33 : vector<8x32xbf16> to vector<1x8x32xbf16>
    %35 = vector.shape_cast %34 : vector<1x8x32xbf16> to vector<1x8x32xbf16>
    %36 = vector.broadcast %35 : vector<1x8x32xbf16> to vector<4x8x32xbf16>
    %c0_14 = arith.constant 0 : index
    %c0_15 = arith.constant 0 : index
    %c0_16 = arith.constant 0 : index
    %c0_17 = arith.constant 0 : index
    %37 = vector.load %arg6[%c0_14, %c0_15, %c0_16, %c0_17] : memref<2x4x32x8xbf16, #tpu.memory_space<vmem>>, vector<1x4x32x8xbf16>
    %38 = vector.shape_cast %37 : vector<1x4x32x8xbf16> to vector<4x32x8xbf16>
    "tpu.trace_start"() <{level = 10 : i32, message = "nsh,nhd->nsd"}> : () -> ()
    %cst_18 = arith.constant dense<0.000000e+00> : vector<4x8x8xf32>
    %39 = tpu.matmul %36, %38, %cst_18 {dimension_numbers = #tpu.dot_dimension_numbers<[2], [1], [1], [2], [0, 0, 0, 1, 1, 2], [0], [0]>} : vector<4x8x32xbf16>, vector<4x32x8xbf16>, vector<4x8x8xf32> -> vector<4x8x8xf32>
    "tpu.trace_stop"() : () -> ()
    %c0_19 = arith.constant 0 : index
    %c0_20 = arith.constant 0 : index
    %c0_21 = arith.constant 0 : index
    %c0_22 = arith.constant 0 : index
    %40 = vector.load %arg9[%c0_19, %c0_20, %c0_21, %c0_22] : memref<2x4x1x8xf32, #tpu.memory_space<vmem>>, vector<1x4x1x8xf32>
    %41 = vector.shape_cast %40 : vector<1x4x1x8xf32> to vector<4x1x8xf32>
    %42 = vector.broadcast %41 : vector<4x1x8xf32> to vector<4x8x8xf32>
    %43 = arith.addf %39, %42 : vector<4x8x8xf32>
    %c0_23 = arith.constant 0 : index
    %c0_24 = arith.constant 0 : index
    %c0_25 = arith.constant 0 : index
    %c0_26 = arith.constant 0 : index
    %44 = vector.load %arg7[%c0_23, %c0_24, %c0_25, %c0_26] : memref<2x4x32x8xbf16, #tpu.memory_space<vmem>>, vector<1x4x32x8xbf16>
    %45 = vector.shape_cast %44 : vector<1x4x32x8xbf16> to vector<4x32x8xbf16>
    "tpu.trace_start"() <{level = 10 : i32, message = "nsh,nhd->nsd"}> : () -> ()
    %cst_27 = arith.constant dense<0.000000e+00> : vector<4x8x8xf32>
    %46 = tpu.matmul %36, %45, %cst_27 {dimension_numbers = #tpu.dot_dimension_numbers<[2], [1], [1], [2], [0, 0, 0, 1, 1, 2], [0], [0]>} : vector<4x8x32xbf16>, vector<4x32x8xbf16>, vector<4x8x8xf32> -> vector<4x8x8xf32>
    "tpu.trace_stop"() : () -> ()
    %c0_28 = arith.constant 0 : index
    %c0_29 = arith.constant 0 : index
    %c0_30 = arith.constant 0 : index
    %c0_31 = arith.constant 0 : index
    %47 = vector.load %arg10[%c0_28, %c0_29, %c0_30, %c0_31] : memref<2x4x1x8xf32, #tpu.memory_space<vmem>>, vector<1x4x1x8xf32>
    %48 = vector.shape_cast %47 : vector<1x4x1x8xf32> to vector<4x1x8xf32>
    %49 = vector.broadcast %48 : vector<4x1x8xf32> to vector<4x8x8xf32>
    %50 = arith.addf %46, %49 : vector<4x8x8xf32>
    %c0_32 = arith.constant 0 : index
    %c0_33 = arith.constant 0 : index
    %c0_34 = arith.constant 0 : index
    %c0_35 = arith.constant 0 : index
    %51 = vector.load %arg8[%c0_32, %c0_33, %c0_34, %c0_35] : memref<2x4x32x8xbf16, #tpu.memory_space<vmem>>, vector<1x4x32x8xbf16>
    %52 = vector.shape_cast %51 : vector<1x4x32x8xbf16> to vector<4x32x8xbf16>
    "tpu.trace_start"() <{level = 10 : i32, message = "nsh,nhd->nsd"}> : () -> ()
    %cst_36 = arith.constant dense<0.000000e+00> : vector<4x8x8xf32>
    %53 = tpu.matmul %36, %52, %cst_36 {dimension_numbers = #tpu.dot_dimension_numbers<[2], [1], [1], [2], [0, 0, 0, 1, 1, 2], [0], [0]>} : vector<4x8x32xbf16>, vector<4x32x8xbf16>, vector<4x8x8xf32> -> vector<4x8x8xf32>
    "tpu.trace_stop"() : () -> ()
    %c0_37 = arith.constant 0 : index
    %c0_38 = arith.constant 0 : index
    %c0_39 = arith.constant 0 : index
    %c0_40 = arith.constant 0 : index
    %54 = vector.load %arg11[%c0_37, %c0_38, %c0_39, %c0_40] : memref<2x4x1x8xf32, #tpu.memory_space<vmem>>, vector<1x4x1x8xf32>
    %55 = vector.shape_cast %54 : vector<1x4x1x8xf32> to vector<4x1x8xf32>
    %56 = vector.broadcast %55 : vector<4x1x8xf32> to vector<4x8x8xf32>
    %57 = arith.addf %53, %56 : vector<4x8x8xf32>
    %58 = arith.truncf %43 : vector<4x8x8xf32> to vector<4x8x8xbf16>
    %59 = arith.truncf %50 : vector<4x8x8xf32> to vector<4x8x8xbf16>
    "tpu.trace_start"() <{level = 10 : i32, message = "nsd,ntd->nst"}> : () -> ()
    %cst_41 = arith.constant dense<0.000000e+00> : vector<4x8x8xf32>
    %60 = tpu.matmul %58, %59, %cst_41 {dimension_numbers = #tpu.dot_dimension_numbers<[2], [2], [1], [1], [0, 0, 0, 1, 1, 1], [0], [0]>} : vector<4x8x8xbf16>, vector<4x8x8xbf16>, vector<4x8x8xf32> -> vector<4x8x8xf32>
    "tpu.trace_stop"() : () -> ()
    %61 = vector.broadcast %32 : vector<1x1x8xf32> to vector<4x8x8xf32>
    %62 = arith.addf %60, %61 : vector<4x8x8xf32>
    %cst_42 = arith.constant dense<0xFF800000> : vector<4x8xf32>
    %63 = vector.multi_reduction <maximumf>, %62, %cst_42 [2] : vector<4x8x8xf32> to vector<4x8xf32>
    %64 = vector.shape_cast %63 : vector<4x8xf32> to vector<4x8x1xf32>
    %65 = vector.broadcast %64 : vector<4x8x1xf32> to vector<4x8x8xf32>
    %66 = arith.subf %62, %65 : vector<4x8x8xf32>
    %67 = math.exp %66 : vector<4x8x8xf32>
    %cst_43 = arith.constant dense<0.000000e+00> : vector<4x8xf32>
    %68 = vector.multi_reduction <add>, %67, %cst_43 [2] : vector<4x8x8xf32> to vector<4x8xf32>
    %69 = vector.shape_cast %68 : vector<4x8xf32> to vector<4x8x1xf32>
    %70 = tpu.reciprocal %69 {approx = true} : vector<4x8x1xf32> -> vector<4x8x1xf32>
    %71 = vector.broadcast %70 : vector<4x8x1xf32> to vector<4x8x8xf32>
    %72 = arith.mulf %67, %71 : vector<4x8x8xf32>
    %73 = arith.truncf %72 : vector<4x8x8xf32> to vector<4x8x8xbf16>
    %74 = arith.truncf %57 : vector<4x8x8xf32> to vector<4x8x8xbf16>
    "tpu.trace_start"() <{level = 10 : i32, message = "nst,ntd->nsd"}> : () -> ()
    %cst_44 = arith.constant dense<0.000000e+00> : vector<4x8x8xf32>
    %75 = tpu.matmul %73, %74, %cst_44 {dimension_numbers = #tpu.dot_dimension_numbers<[2], [1], [1], [2], [0, 0, 0, 1, 1, 2], [0], [0]>} : vector<4x8x8xbf16>, vector<4x8x8xbf16>, vector<4x8x8xf32> -> vector<4x8x8xf32>
    "tpu.trace_stop"() : () -> ()
    %76 = arith.truncf %75 : vector<4x8x8xf32> to vector<4x8x8xbf16>
    %c0_45 = arith.constant 0 : index
    %c0_46 = arith.constant 0 : index
    %c0_47 = arith.constant 0 : index
    %c0_48 = arith.constant 0 : index
    %77 = vector.load %arg12[%c0_45, %c0_46, %c0_47, %c0_48] : memref<2x4x8x32xbf16, #tpu.memory_space<vmem>>, vector<1x4x8x32xbf16>
    %78 = vector.shape_cast %77 : vector<1x4x8x32xbf16> to vector<4x8x32xbf16>
    "tpu.trace_start"() <{level = 10 : i32, message = "nsd,ndh->nsh"}> : () -> ()
    %cst_49 = arith.constant dense<0.000000e+00> : vector<4x8x32xf32>
    %79 = tpu.matmul %76, %78, %cst_49 {dimension_numbers = #tpu.dot_dimension_numbers<[2], [1], [1], [2], [0, 0, 0, 1, 1, 2], [0], [0]>} : vector<4x8x8xbf16>, vector<4x8x32xbf16>, vector<4x8x32xf32> -> vector<4x8x32xf32>
    "tpu.trace_stop"() : () -> ()
    %cst_50 = arith.constant dense<0.000000e+00> : vector<8x32xf32>
    %80 = vector.multi_reduction <add>, %79, %cst_50 [0] : vector<4x8x32xf32> to vector<8x32xf32>
    %c0_51 = arith.constant 0 : index
    %c0_52 = arith.constant 0 : index
    %c0_53 = arith.constant 0 : index
    %81 = vector.load %arg13[%c0_51, %c0_52, %c0_53] : memref<2x1x32xf32, #tpu.memory_space<vmem>>, vector<1x1x32xf32>
    %82 = vector.shape_cast %81 : vector<1x1x32xf32> to vector<1x32xf32>
    %83 = vector.broadcast %82 : vector<1x32xf32> to vector<8x32xf32>
    %84 = arith.addf %80, %83 : vector<8x32xf32>
    %85 = arith.addf %84, %24 : vector<8x32xf32>
    %c0_54 = arith.constant 0 : index
    %c0_55 = arith.constant 0 : index
    %c0_56 = arith.constant 0 : index
    %86 = vector.load %arg14[%c0_54, %c0_55, %c0_56] : memref<2x1x32xf32, #tpu.memory_space<vmem>>, vector<1x1x32xf32>
    %87 = vector.shape_cast %86 : vector<1x1x32xf32> to vector<1x32xf32>
    %c0_57 = arith.constant 0 : index
    %c0_58 = arith.constant 0 : index
    %c0_59 = arith.constant 0 : index
    %88 = vector.load %arg15[%c0_57, %c0_58, %c0_59] : memref<2x1x32xf32, #tpu.memory_space<vmem>>, vector<1x1x32xf32>
    %89 = vector.shape_cast %88 : vector<1x1x32xf32> to vector<1x32xf32>
    %cst_60 = arith.constant dense<0.000000e+00> : vector<8xf32>
    %90 = vector.multi_reduction <add>, %85, %cst_60 [1] : vector<8x32xf32> to vector<8xf32>
    %91 = vector.shape_cast %90 : vector<8xf32> to vector<8x1xf32>
    %cst_61 = arith.constant 3.200000e+01 : f32
    %92 = vector.broadcast %cst_61 : f32 to vector<8x1xf32>
    %93 = arith.divf %91, %92 : vector<8x1xf32>
    %94 = vector.broadcast %93 : vector<8x1xf32> to vector<8x32xf32>
    %95 = arith.subf %85, %94 : vector<8x32xf32>
    %96 = arith.mulf %95, %95 : vector<8x32xf32>
    %cst_62 = arith.constant dense<0.000000e+00> : vector<8xf32>
    %97 = vector.multi_reduction <add>, %96, %cst_62 [1] : vector<8x32xf32> to vector<8xf32>
    %98 = vector.shape_cast %97 : vector<8xf32> to vector<8x1xf32>
    %cst_63 = arith.constant 3.200000e+01 : f32
    %99 = vector.broadcast %cst_63 : f32 to vector<8x1xf32>
    %100 = arith.divf %98, %99 : vector<8x1xf32>
    %101 = vector.broadcast %93 : vector<8x1xf32> to vector<8x32xf32>
    %102 = arith.subf %85, %101 : vector<8x32xf32>
    %cst_64 = arith.constant 9.99999974E-6 : f32
    %103 = vector.broadcast %cst_64 : f32 to vector<8x1xf32>
    %104 = arith.addf %100, %103 : vector<8x1xf32>
    %105 = math.rsqrt %104 : vector<8x1xf32>
    %106 = vector.broadcast %105 : vector<8x1xf32> to vector<8x32xf32>
    %107 = arith.mulf %102, %106 : vector<8x32xf32>
    %108 = vector.broadcast %87 : vector<1x32xf32> to vector<8x32xf32>
    %109 = arith.mulf %107, %108 : vector<8x32xf32>
    %110 = vector.broadcast %89 : vector<1x32xf32> to vector<8x32xf32>
    %111 = arith.addf %109, %110 : vector<8x32xf32>
    %112 = arith.truncf %111 : vector<8x32xf32> to vector<8x32xbf16>
    %c0_65 = arith.constant 0 : index
    %c0_66 = arith.constant 0 : index
    %c0_67 = arith.constant 0 : index
    %113 = vector.load %arg16[%c0_65, %c0_66, %c0_67] : memref<2x32x64xbf16, #tpu.memory_space<vmem>>, vector<1x32x64xbf16>
    %114 = vector.shape_cast %113 : vector<1x32x64xbf16> to vector<32x64xbf16>
    %cst_68 = arith.constant dense<0.000000e+00> : vector<8x64xf32>
    %115 = tpu.matmul %112, %114, %cst_68 {dimension_numbers = #tpu.dot_dimension_numbers<[1], [0], [0], [1], [0, 0, 1, 1], [], []>} : vector<8x32xbf16>, vector<32x64xbf16>, vector<8x64xf32> -> vector<8x64xf32>
    %c0_69 = arith.constant 0 : index
    %c0_70 = arith.constant 0 : index
    %c0_71 = arith.constant 0 : index
    %116 = vector.load %arg17[%c0_69, %c0_70, %c0_71] : memref<2x1x64xf32, #tpu.memory_space<vmem>>, vector<1x1x64xf32>
    %117 = vector.shape_cast %116 : vector<1x1x64xf32> to vector<1x64xf32>
    %118 = vector.broadcast %117 : vector<1x64xf32> to vector<8x64xf32>
    %119 = arith.addf %115, %118 : vector<8x64xf32>
    %120 = arith.mulf %119, %119 : vector<8x64xf32>
    %121 = arith.mulf %119, %120 : vector<8x64xf32>
    %cst_72 = arith.constant 4.471500e-02 : f32
    %122 = vector.broadcast %cst_72 : f32 to vector<8x64xf32>
    %123 = arith.mulf %122, %121 : vector<8x64xf32>
    %124 = arith.addf %119, %123 : vector<8x64xf32>
    %cst_73 = arith.constant 0.797884583 : f32
    %125 = vector.broadcast %cst_73 : f32 to vector<8x64xf32>
    %126 = arith.mulf %125, %124 : vector<8x64xf32>
    %127 = math.tanh %126 : vector<8x64xf32>
    %cst_74 = arith.constant 1.000000e+00 : f32
    %128 = vector.broadcast %cst_74 : f32 to vector<8x64xf32>
    %129 = arith.addf %128, %127 : vector<8x64xf32>
    %cst_75 = arith.constant 5.000000e-01 : f32
    %130 = vector.broadcast %cst_75 : f32 to vector<8x64xf32>
    %131 = arith.mulf %130, %129 : vector<8x64xf32>
    %132 = arith.mulf %119, %131 : vector<8x64xf32>
    %133 = arith.truncf %132 : vector<8x64xf32> to vector<8x64xbf16>
    %c0_76 = arith.constant 0 : index
    %c0_77 = arith.constant 0 : index
    %c0_78 = arith.constant 0 : index
    %134 = vector.load %arg18[%c0_76, %c0_77, %c0_78] : memref<2x64x32xbf16, #tpu.memory_space<vmem>>, vector<1x64x32xbf16>
    %135 = vector.shape_cast %134 : vector<1x64x32xbf16> to vector<64x32xbf16>
    %cst_79 = arith.constant dense<0.000000e+00> : vector<8x32xf32>
    %136 = tpu.matmul %133, %135, %cst_79 {dimension_numbers = #tpu.dot_dimension_numbers<[1], [0], [0], [1], [0, 0, 1, 1], [], []>} : vector<8x64xbf16>, vector<64x32xbf16>, vector<8x32xf32> -> vector<8x32xf32>
    %c0_80 = arith.constant 0 : index
    %c0_81 = arith.constant 0 : index
    %c0_82 = arith.constant 0 : index
    %137 = vector.load %arg19[%c0_80, %c0_81, %c0_82] : memref<2x1x32xf32, #tpu.memory_space<vmem>>, vector<1x1x32xf32>
    %138 = vector.shape_cast %137 : vector<1x1x32xf32> to vector<1x32xf32>
    %139 = vector.broadcast %138 : vector<1x32xf32> to vector<8x32xf32>
    %140 = arith.addf %136, %139 : vector<8x32xf32>
    %141 = arith.addf %140, %111 : vector<8x32xf32>
    %c0_83 = arith.constant 0 : index
    %c0_84 = arith.constant 0 : index
    %c0_85 = arith.constant 0 : index
    %142 = vector.load %arg20[%c0_83, %c0_84, %c0_85] : memref<2x1x32xf32, #tpu.memory_space<vmem>>, vector<1x1x32xf32>
    %143 = vector.shape_cast %142 : vector<1x1x32xf32> to vector<1x32xf32>
    %c0_86 = arith.constant 0 : index
    %c0_87 = arith.constant 0 : index
    %c0_88 = arith.constant 0 : index
    %144 = vector.load %arg21[%c0_86, %c0_87, %c0_88] : memref<2x1x32xf32, #tpu.memory_space<vmem>>, vector<1x1x32xf32>
    %145 = vector.shape_cast %144 : vector<1x1x32xf32> to vector<1x32xf32>
    %cst_89 = arith.constant dense<0.000000e+00> : vector<8xf32>
    %146 = vector.multi_reduction <add>, %141, %cst_89 [1] : vector<8x32xf32> to vector<8xf32>
    %147 = vector.shape_cast %146 : vector<8xf32> to vector<8x1xf32>
    %cst_90 = arith.constant 3.200000e+01 : f32
    %148 = vector.broadcast %cst_90 : f32 to vector<8x1xf32>
    %149 = arith.divf %147, %148 : vector<8x1xf32>
    %150 = vector.broadcast %149 : vector<8x1xf32> to vector<8x32xf32>
    %151 = arith.subf %141, %150 : vector<8x32xf32>
    %152 = arith.mulf %151, %151 : vector<8x32xf32>
    %cst_91 = arith.constant dense<0.000000e+00> : vector<8xf32>
    %153 = vector.multi_reduction <add>, %152, %cst_91 [1] : vector<8x32xf32> to vector<8xf32>
    %154 = vector.shape_cast %153 : vector<8xf32> to vector<8x1xf32>
    %cst_92 = arith.constant 3.200000e+01 : f32
    %155 = vector.broadcast %cst_92 : f32 to vector<8x1xf32>
    %156 = arith.divf %154, %155 : vector<8x1xf32>
    %157 = vector.broadcast %149 : vector<8x1xf32> to vector<8x32xf32>
    %158 = arith.subf %141, %157 : vector<8x32xf32>
    %cst_93 = arith.constant 9.99999974E-6 : f32
    %159 = vector.broadcast %cst_93 : f32 to vector<8x1xf32>
    %160 = arith.addf %156, %159 : vector<8x1xf32>
    %161 = math.rsqrt %160 : vector<8x1xf32>
    %162 = vector.broadcast %161 : vector<8x1xf32> to vector<8x32xf32>
    %163 = arith.mulf %158, %162 : vector<8x32xf32>
    %164 = vector.broadcast %143 : vector<1x32xf32> to vector<8x32xf32>
    %165 = arith.mulf %163, %164 : vector<8x32xf32>
    %166 = vector.broadcast %145 : vector<1x32xf32> to vector<8x32xf32>
    %167 = arith.addf %165, %166 : vector<8x32xf32>
    %168 = arith.truncf %167 : vector<8x32xf32> to vector<8x32xbf16>
    %169 = vector.shape_cast %168 : vector<8x32xbf16> to vector<1x8x32xbf16>
    %170 = vector.shape_cast %169 : vector<1x8x32xbf16> to vector<1x8x32xbf16>
    %171 = vector.broadcast %170 : vector<1x8x32xbf16> to vector<4x8x32xbf16>
    %c1 = arith.constant 1 : index
    %c0_94 = arith.constant 0 : index
    %c0_95 = arith.constant 0 : index
    %c0_96 = arith.constant 0 : index
    %172 = vector.load %arg6[%c1, %c0_94, %c0_95, %c0_96] : memref<2x4x32x8xbf16, #tpu.memory_space<vmem>>, vector<1x4x32x8xbf16>
    %173 = vector.shape_cast %172 : vector<1x4x32x8xbf16> to vector<4x32x8xbf16>
    "tpu.trace_start"() <{level = 10 : i32, message = "nsh,nhd->nsd"}> : () -> ()
    %cst_97 = arith.constant dense<0.000000e+00> : vector<4x8x8xf32>
    %174 = tpu.matmul %171, %173, %cst_97 {dimension_numbers = #tpu.dot_dimension_numbers<[2], [1], [1], [2], [0, 0, 0, 1, 1, 2], [0], [0]>} : vector<4x8x32xbf16>, vector<4x32x8xbf16>, vector<4x8x8xf32> -> vector<4x8x8xf32>
    "tpu.trace_stop"() : () -> ()
    %c1_98 = arith.constant 1 : index
    %c0_99 = arith.constant 0 : index
    %c0_100 = arith.constant 0 : index
    %c0_101 = arith.constant 0 : index
    %175 = vector.load %arg9[%c1_98, %c0_99, %c0_100, %c0_101] : memref<2x4x1x8xf32, #tpu.memory_space<vmem>>, vector<1x4x1x8xf32>
    %176 = vector.shape_cast %175 : vector<1x4x1x8xf32> to vector<4x1x8xf32>
    %177 = vector.broadcast %176 : vector<4x1x8xf32> to vector<4x8x8xf32>
    %178 = arith.addf %174, %177 : vector<4x8x8xf32>
    %c1_102 = arith.constant 1 : index
    %c0_103 = arith.constant 0 : index
    %c0_104 = arith.constant 0 : index
    %c0_105 = arith.constant 0 : index
    %179 = vector.load %arg7[%c1_102, %c0_103, %c0_104, %c0_105] : memref<2x4x32x8xbf16, #tpu.memory_space<vmem>>, vector<1x4x32x8xbf16>
    %180 = vector.shape_cast %179 : vector<1x4x32x8xbf16> to vector<4x32x8xbf16>
    "tpu.trace_start"() <{level = 10 : i32, message = "nsh,nhd->nsd"}> : () -> ()
    %cst_106 = arith.constant dense<0.000000e+00> : vector<4x8x8xf32>
    %181 = tpu.matmul %171, %180, %cst_106 {dimension_numbers = #tpu.dot_dimension_numbers<[2], [1], [1], [2], [0, 0, 0, 1, 1, 2], [0], [0]>} : vector<4x8x32xbf16>, vector<4x32x8xbf16>, vector<4x8x8xf32> -> vector<4x8x8xf32>
    "tpu.trace_stop"() : () -> ()
    %c1_107 = arith.constant 1 : index
    %c0_108 = arith.constant 0 : index
    %c0_109 = arith.constant 0 : index
    %c0_110 = arith.constant 0 : index
    %182 = vector.load %arg10[%c1_107, %c0_108, %c0_109, %c0_110] : memref<2x4x1x8xf32, #tpu.memory_space<vmem>>, vector<1x4x1x8xf32>
    %183 = vector.shape_cast %182 : vector<1x4x1x8xf32> to vector<4x1x8xf32>
    %184 = vector.broadcast %183 : vector<4x1x8xf32> to vector<4x8x8xf32>
    %185 = arith.addf %181, %184 : vector<4x8x8xf32>
    %c1_111 = arith.constant 1 : index
    %c0_112 = arith.constant 0 : index
    %c0_113 = arith.constant 0 : index
    %c0_114 = arith.constant 0 : index
    %186 = vector.load %arg8[%c1_111, %c0_112, %c0_113, %c0_114] : memref<2x4x32x8xbf16, #tpu.memory_space<vmem>>, vector<1x4x32x8xbf16>
    %187 = vector.shape_cast %186 : vector<1x4x32x8xbf16> to vector<4x32x8xbf16>
    "tpu.trace_start"() <{level = 10 : i32, message = "nsh,nhd->nsd"}> : () -> ()
    %cst_115 = arith.constant dense<0.000000e+00> : vector<4x8x8xf32>
    %188 = tpu.matmul %171, %187, %cst_115 {dimension_numbers = #tpu.dot_dimension_numbers<[2], [1], [1], [2], [0, 0, 0, 1, 1, 2], [0], [0]>} : vector<4x8x32xbf16>, vector<4x32x8xbf16>, vector<4x8x8xf32> -> vector<4x8x8xf32>
    "tpu.trace_stop"() : () -> ()
    %c1_116 = arith.constant 1 : index
    %c0_117 = arith.constant 0 : index
    %c0_118 = arith.constant 0 : index
    %c0_119 = arith.constant 0 : index
    %189 = vector.load %arg11[%c1_116, %c0_117, %c0_118, %c0_119] : memref<2x4x1x8xf32, #tpu.memory_space<vmem>>, vector<1x4x1x8xf32>
    %190 = vector.shape_cast %189 : vector<1x4x1x8xf32> to vector<4x1x8xf32>
    %191 = vector.broadcast %190 : vector<4x1x8xf32> to vector<4x8x8xf32>
    %192 = arith.addf %188, %191 : vector<4x8x8xf32>
    %193 = arith.truncf %178 : vector<4x8x8xf32> to vector<4x8x8xbf16>
    %194 = arith.truncf %185 : vector<4x8x8xf32> to vector<4x8x8xbf16>
    "tpu.trace_start"() <{level = 10 : i32, message = "nsd,ntd->nst"}> : () -> ()
    %cst_120 = arith.constant dense<0.000000e+00> : vector<4x8x8xf32>
    %195 = tpu.matmul %193, %194, %cst_120 {dimension_numbers = #tpu.dot_dimension_numbers<[2], [2], [1], [1], [0, 0, 0, 1, 1, 1], [0], [0]>} : vector<4x8x8xbf16>, vector<4x8x8xbf16>, vector<4x8x8xf32> -> vector<4x8x8xf32>
    "tpu.trace_stop"() : () -> ()
    %196 = vector.broadcast %32 : vector<1x1x8xf32> to vector<4x8x8xf32>
    %197 = arith.addf %195, %196 : vector<4x8x8xf32>
    %cst_121 = arith.constant dense<0xFF800000> : vector<4x8xf32>
    %198 = vector.multi_reduction <maximumf>, %197, %cst_121 [2] : vector<4x8x8xf32> to vector<4x8xf32>
    %199 = vector.shape_cast %198 : vector<4x8xf32> to vector<4x8x1xf32>
    %200 = vector.broadcast %199 : vector<4x8x1xf32> to vector<4x8x8xf32>
    %201 = arith.subf %197, %200 : vector<4x8x8xf32>
    %202 = math.exp %201 : vector<4x8x8xf32>
    %cst_122 = arith.constant dense<0.000000e+00> : vector<4x8xf32>
    %203 = vector.multi_reduction <add>, %202, %cst_122 [2] : vector<4x8x8xf32> to vector<4x8xf32>
    %204 = vector.shape_cast %203 : vector<4x8xf32> to vector<4x8x1xf32>
    %205 = tpu.reciprocal %204 {approx = true} : vector<4x8x1xf32> -> vector<4x8x1xf32>
    %206 = vector.broadcast %205 : vector<4x8x1xf32> to vector<4x8x8xf32>
    %207 = arith.mulf %202, %206 : vector<4x8x8xf32>
    %208 = arith.truncf %207 : vector<4x8x8xf32> to vector<4x8x8xbf16>
    %209 = arith.truncf %192 : vector<4x8x8xf32> to vector<4x8x8xbf16>
    "tpu.trace_start"() <{level = 10 : i32, message = "nst,ntd->nsd"}> : () -> ()
    %cst_123 = arith.constant dense<0.000000e+00> : vector<4x8x8xf32>
    %210 = tpu.matmul %208, %209, %cst_123 {dimension_numbers = #tpu.dot_dimension_numbers<[2], [1], [1], [2], [0, 0, 0, 1, 1, 2], [0], [0]>} : vector<4x8x8xbf16>, vector<4x8x8xbf16>, vector<4x8x8xf32> -> vector<4x8x8xf32>
    "tpu.trace_stop"() : () -> ()
    %211 = arith.truncf %210 : vector<4x8x8xf32> to vector<4x8x8xbf16>
    %c1_124 = arith.constant 1 : index
    %c0_125 = arith.constant 0 : index
    %c0_126 = arith.constant 0 : index
    %c0_127 = arith.constant 0 : index
    %212 = vector.load %arg12[%c1_124, %c0_125, %c0_126, %c0_127] : memref<2x4x8x32xbf16, #tpu.memory_space<vmem>>, vector<1x4x8x32xbf16>
    %213 = vector.shape_cast %212 : vector<1x4x8x32xbf16> to vector<4x8x32xbf16>
    "tpu.trace_start"() <{level = 10 : i32, message = "nsd,ndh->nsh"}> : () -> ()
    %cst_128 = arith.constant dense<0.000000e+00> : vector<4x8x32xf32>
    %214 = tpu.matmul %211, %213, %cst_128 {dimension_numbers = #tpu.dot_dimension_numbers<[2], [1], [1], [2], [0, 0, 0, 1, 1, 2], [0], [0]>} : vector<4x8x8xbf16>, vector<4x8x32xbf16>, vector<4x8x32xf32> -> vector<4x8x32xf32>
    "tpu.trace_stop"() : () -> ()
    %cst_129 = arith.constant dense<0.000000e+00> : vector<8x32xf32>
    %215 = vector.multi_reduction <add>, %214, %cst_129 [0] : vector<4x8x32xf32> to vector<8x32xf32>
    %c1_130 = arith.constant 1 : index
    %c0_131 = arith.constant 0 : index
    %c0_132 = arith.constant 0 : index
    %216 = vector.load %arg13[%c1_130, %c0_131, %c0_132] : memref<2x1x32xf32, #tpu.memory_space<vmem>>, vector<1x1x32xf32>
    %217 = vector.shape_cast %216 : vector<1x1x32xf32> to vector<1x32xf32>
    %218 = vector.broadcast %217 : vector<1x32xf32> to vector<8x32xf32>
    %219 = arith.addf %215, %218 : vector<8x32xf32>
    %220 = arith.addf %219, %167 : vector<8x32xf32>
    %c1_133 = arith.constant 1 : index
    %c0_134 = arith.constant 0 : index
    %c0_135 = arith.constant 0 : index
    %221 = vector.load %arg14[%c1_133, %c0_134, %c0_135] : memref<2x1x32xf32, #tpu.memory_space<vmem>>, vector<1x1x32xf32>
    %222 = vector.shape_cast %221 : vector<1x1x32xf32> to vector<1x32xf32>
    %c1_136 = arith.constant 1 : index
    %c0_137 = arith.constant 0 : index
    %c0_138 = arith.constant 0 : index
    %223 = vector.load %arg15[%c1_136, %c0_137, %c0_138] : memref<2x1x32xf32, #tpu.memory_space<vmem>>, vector<1x1x32xf32>
    %224 = vector.shape_cast %223 : vector<1x1x32xf32> to vector<1x32xf32>
    %cst_139 = arith.constant dense<0.000000e+00> : vector<8xf32>
    %225 = vector.multi_reduction <add>, %220, %cst_139 [1] : vector<8x32xf32> to vector<8xf32>
    %226 = vector.shape_cast %225 : vector<8xf32> to vector<8x1xf32>
    %cst_140 = arith.constant 3.200000e+01 : f32
    %227 = vector.broadcast %cst_140 : f32 to vector<8x1xf32>
    %228 = arith.divf %226, %227 : vector<8x1xf32>
    %229 = vector.broadcast %228 : vector<8x1xf32> to vector<8x32xf32>
    %230 = arith.subf %220, %229 : vector<8x32xf32>
    %231 = arith.mulf %230, %230 : vector<8x32xf32>
    %cst_141 = arith.constant dense<0.000000e+00> : vector<8xf32>
    %232 = vector.multi_reduction <add>, %231, %cst_141 [1] : vector<8x32xf32> to vector<8xf32>
    %233 = vector.shape_cast %232 : vector<8xf32> to vector<8x1xf32>
    %cst_142 = arith.constant 3.200000e+01 : f32
    %234 = vector.broadcast %cst_142 : f32 to vector<8x1xf32>
    %235 = arith.divf %233, %234 : vector<8x1xf32>
    %236 = vector.broadcast %228 : vector<8x1xf32> to vector<8x32xf32>
    %237 = arith.subf %220, %236 : vector<8x32xf32>
    %cst_143 = arith.constant 9.99999974E-6 : f32
    %238 = vector.broadcast %cst_143 : f32 to vector<8x1xf32>
    %239 = arith.addf %235, %238 : vector<8x1xf32>
    %240 = math.rsqrt %239 : vector<8x1xf32>
    %241 = vector.broadcast %240 : vector<8x1xf32> to vector<8x32xf32>
    %242 = arith.mulf %237, %241 : vector<8x32xf32>
    %243 = vector.broadcast %222 : vector<1x32xf32> to vector<8x32xf32>
    %244 = arith.mulf %242, %243 : vector<8x32xf32>
    %245 = vector.broadcast %224 : vector<1x32xf32> to vector<8x32xf32>
    %246 = arith.addf %244, %245 : vector<8x32xf32>
    %247 = arith.truncf %246 : vector<8x32xf32> to vector<8x32xbf16>
    %c1_144 = arith.constant 1 : index
    %c0_145 = arith.constant 0 : index
    %c0_146 = arith.constant 0 : index
    %248 = vector.load %arg16[%c1_144, %c0_145, %c0_146] : memref<2x32x64xbf16, #tpu.memory_space<vmem>>, vector<1x32x64xbf16>
    %249 = vector.shape_cast %248 : vector<1x32x64xbf16> to vector<32x64xbf16>
    %cst_147 = arith.constant dense<0.000000e+00> : vector<8x64xf32>
    %250 = tpu.matmul %247, %249, %cst_147 {dimension_numbers = #tpu.dot_dimension_numbers<[1], [0], [0], [1], [0, 0, 1, 1], [], []>} : vector<8x32xbf16>, vector<32x64xbf16>, vector<8x64xf32> -> vector<8x64xf32>
    %c1_148 = arith.constant 1 : index
    %c0_149 = arith.constant 0 : index
    %c0_150 = arith.constant 0 : index
    %251 = vector.load %arg17[%c1_148, %c0_149, %c0_150] : memref<2x1x64xf32, #tpu.memory_space<vmem>>, vector<1x1x64xf32>
    %252 = vector.shape_cast %251 : vector<1x1x64xf32> to vector<1x64xf32>
    %253 = vector.broadcast %252 : vector<1x64xf32> to vector<8x64xf32>
    %254 = arith.addf %250, %253 : vector<8x64xf32>
    %255 = arith.mulf %254, %254 : vector<8x64xf32>
    %256 = arith.mulf %254, %255 : vector<8x64xf32>
    %cst_151 = arith.constant 4.471500e-02 : f32
    %257 = vector.broadcast %cst_151 : f32 to vector<8x64xf32>
    %258 = arith.mulf %257, %256 : vector<8x64xf32>
    %259 = arith.addf %254, %258 : vector<8x64xf32>
    %cst_152 = arith.constant 0.797884583 : f32
    %260 = vector.broadcast %cst_152 : f32 to vector<8x64xf32>
    %261 = arith.mulf %260, %259 : vector<8x64xf32>
    %262 = math.tanh %261 : vector<8x64xf32>
    %cst_153 = arith.constant 1.000000e+00 : f32
    %263 = vector.broadcast %cst_153 : f32 to vector<8x64xf32>
    %264 = arith.addf %263, %262 : vector<8x64xf32>
    %cst_154 = arith.constant 5.000000e-01 : f32
    %265 = vector.broadcast %cst_154 : f32 to vector<8x64xf32>
    %266 = arith.mulf %265, %264 : vector<8x64xf32>
    %267 = arith.mulf %254, %266 : vector<8x64xf32>
    %268 = arith.truncf %267 : vector<8x64xf32> to vector<8x64xbf16>
    %c1_155 = arith.constant 1 : index
    %c0_156 = arith.constant 0 : index
    %c0_157 = arith.constant 0 : index
    %269 = vector.load %arg18[%c1_155, %c0_156, %c0_157] : memref<2x64x32xbf16, #tpu.memory_space<vmem>>, vector<1x64x32xbf16>
    %270 = vector.shape_cast %269 : vector<1x64x32xbf16> to vector<64x32xbf16>
    %cst_158 = arith.constant dense<0.000000e+00> : vector<8x32xf32>
    %271 = tpu.matmul %268, %270, %cst_158 {dimension_numbers = #tpu.dot_dimension_numbers<[1], [0], [0], [1], [0, 0, 1, 1], [], []>} : vector<8x64xbf16>, vector<64x32xbf16>, vector<8x32xf32> -> vector<8x32xf32>
    %c1_159 = arith.constant 1 : index
    %c0_160 = arith.constant 0 : index
    %c0_161 = arith.constant 0 : index
    %272 = vector.load %arg19[%c1_159, %c0_160, %c0_161] : memref<2x1x32xf32, #tpu.memory_space<vmem>>, vector<1x1x32xf32>
    %273 = vector.shape_cast %272 : vector<1x1x32xf32> to vector<1x32xf32>
    %274 = vector.broadcast %273 : vector<1x32xf32> to vector<8x32xf32>
    %275 = arith.addf %271, %274 : vector<8x32xf32>
    %276 = arith.addf %275, %246 : vector<8x32xf32>
    %c1_162 = arith.constant 1 : index
    %c0_163 = arith.constant 0 : index
    %c0_164 = arith.constant 0 : index
    %277 = vector.load %arg20[%c1_162, %c0_163, %c0_164] : memref<2x1x32xf32, #tpu.memory_space<vmem>>, vector<1x1x32xf32>
    %278 = vector.shape_cast %277 : vector<1x1x32xf32> to vector<1x32xf32>
    %c1_165 = arith.constant 1 : index
    %c0_166 = arith.constant 0 : index
    %c0_167 = arith.constant 0 : index
    %279 = vector.load %arg21[%c1_165, %c0_166, %c0_167] : memref<2x1x32xf32, #tpu.memory_space<vmem>>, vector<1x1x32xf32>
    %280 = vector.shape_cast %279 : vector<1x1x32xf32> to vector<1x32xf32>
    %cst_168 = arith.constant dense<0.000000e+00> : vector<8xf32>
    %281 = vector.multi_reduction <add>, %276, %cst_168 [1] : vector<8x32xf32> to vector<8xf32>
    %282 = vector.shape_cast %281 : vector<8xf32> to vector<8x1xf32>
    %cst_169 = arith.constant 3.200000e+01 : f32
    %283 = vector.broadcast %cst_169 : f32 to vector<8x1xf32>
    %284 = arith.divf %282, %283 : vector<8x1xf32>
    %285 = vector.broadcast %284 : vector<8x1xf32> to vector<8x32xf32>
    %286 = arith.subf %276, %285 : vector<8x32xf32>
    %287 = arith.mulf %286, %286 : vector<8x32xf32>
    %cst_170 = arith.constant dense<0.000000e+00> : vector<8xf32>
    %288 = vector.multi_reduction <add>, %287, %cst_170 [1] : vector<8x32xf32> to vector<8xf32>
    %289 = vector.shape_cast %288 : vector<8xf32> to vector<8x1xf32>
    %cst_171 = arith.constant 3.200000e+01 : f32
    %290 = vector.broadcast %cst_171 : f32 to vector<8x1xf32>
    %291 = arith.divf %289, %290 : vector<8x1xf32>
    %292 = vector.broadcast %284 : vector<8x1xf32> to vector<8x32xf32>
    %293 = arith.subf %276, %292 : vector<8x32xf32>
    %cst_172 = arith.constant 9.99999974E-6 : f32
    %294 = vector.broadcast %cst_172 : f32 to vector<8x1xf32>
    %295 = arith.addf %291, %294 : vector<8x1xf32>
    %296 = math.rsqrt %295 : vector<8x1xf32>
    %297 = vector.broadcast %296 : vector<8x1xf32> to vector<8x32xf32>
    %298 = arith.mulf %293, %297 : vector<8x32xf32>
    %299 = vector.broadcast %278 : vector<1x32xf32> to vector<8x32xf32>
    %300 = arith.mulf %298, %299 : vector<8x32xf32>
    %301 = vector.broadcast %280 : vector<1x32xf32> to vector<8x32xf32>
    %302 = arith.addf %300, %301 : vector<8x32xf32>
    %c0_173 = arith.constant 0 : index
    %c0_174 = arith.constant 0 : index
    %c0_175 = arith.constant 0 : index
    %303 = vector.load %arg3[%c0_173, %c0_174, %c0_175] : memref<1x8x1xi32, #tpu.memory_space<vmem>>, vector<1x8x1xi32>
    %304 = vector.shape_cast %303 : vector<1x8x1xi32> to vector<8x1xi32>
    %c0_i32 = arith.constant 0 : i32
    %305 = vector.broadcast %c0_i32 : i32 to vector<8x1xi32>
    %306 = arith.cmpi eq, %304, %305 : vector<8x1xi32>
    %cst_176 = arith.constant -1.000000e+09 : f32
    %307 = vector.shape_cast %306 : vector<8x1xi1> to vector<8x1xi1>
    %308 = vector.broadcast %307 : vector<8x1xi1> to vector<8x32xi1>
    %309 = vector.broadcast %cst_176 : f32 to vector<8x32xf32>
    %310 = arith.select %308, %309, %302 : vector<8x32xi1>, vector<8x32xf32>
    %cst_177 = arith.constant dense<0xFF800000> : vector<32xf32>
    %311 = vector.multi_reduction <maximumf>, %310, %cst_177 [0] : vector<8x32xf32> to vector<32xf32>
    %312 = vector.shape_cast %311 : vector<32xf32> to vector<1x32xf32>
    %313 = arith.truncf %312 : vector<1x32xf32> to vector<1x32xbf16>
    %c0_178 = arith.constant 0 : index
    %c0_179 = arith.constant 0 : index
    %314 = vector.load %arg22[%c0_178, %c0_179] : memref<32x32xbf16, #tpu.memory_space<vmem>>, vector<32x32xbf16>
    %cst_180 = arith.constant dense<0.000000e+00> : vector<1x32xf32>
    %315 = tpu.matmul %313, %314, %cst_180 {dimension_numbers = #tpu.dot_dimension_numbers<[1], [0], [0], [1], [0, 0, 1, 1], [], []>} : vector<1x32xbf16>, vector<32x32xbf16>, vector<1x32xf32> -> vector<1x32xf32>
    %c0_181 = arith.constant 0 : index
    %c0_182 = arith.constant 0 : index
    %316 = vector.load %arg23[%c0_181, %c0_182] : memref<1x32xf32, #tpu.memory_space<vmem>>, vector<1x32xf32>
    %317 = arith.addf %315, %316 : vector<1x32xf32>
    %318 = arith.truncf %317 : vector<1x32xf32> to vector<1x32xbf16>
    %c0_183 = arith.constant 0 : index
    %c0_184 = arith.constant 0 : index
    %319 = vector.load %arg24[%c0_183, %c0_184] : memref<32x128xbf16, #tpu.memory_space<vmem>>, vector<32x128xbf16>
    %cst_185 = arith.constant dense<0.000000e+00> : vector<1x128xf32>
    %320 = tpu.matmul %318, %319, %cst_185 {dimension_numbers = #tpu.dot_dimension_numbers<[1], [0], [0], [1], [0, 0, 1, 1], [], []>} : vector<1x32xbf16>, vector<32x128xbf16>, vector<1x128xf32> -> vector<1x128xf32>
    %c0_186 = arith.constant 0 : index
    %c0_187 = arith.constant 0 : index
    %321 = vector.load %arg25[%c0_186, %c0_187] : memref<1x128xf32, #tpu.memory_space<vmem>>, vector<1x128xf32>
    %322 = arith.addf %320, %321 : vector<1x128xf32>
    %323 = vector.shape_cast %322 : vector<1x128xf32> to vector<1x1x128xf32>
    %c0_188 = arith.constant 0 : index
    %c0_189 = arith.constant 0 : index
    %c0_190 = arith.constant 0 : index
    %324 = vector.load %arg26[%c0_188, %c0_189, %c0_190] : memref<1x1x128xf32, #tpu.memory_space<vmem>>, vector<1x1x128xf32>
    tpu.vector_store %arg26[%c0_188, %c0_189, %c0_190], %323 {strides = array<i32>} : memref<1x1x128xf32, #tpu.memory_space<vmem>>, vector<1x1x128xf32>,
    return
  }
  func.func @transform_0(%arg0: i32) -> (i32, i32) {
    %c0_i32 = arith.constant 0 : i32
    %c0_i32_0 = arith.constant 0 : i32
    return %arg0, %c0_i32 : i32, i32
  }
  func.func @transform_1(%arg0: i32) -> (i32, i32, i32) {
    %c0_i32 = arith.constant 0 : i32
    %c0_i32_0 = arith.constant 0 : i32
    %c0_i32_1 = arith.constant 0 : i32
    return %arg0, %c0_i32, %c0_i32_0 : i32, i32, i32
  }
  func.func @transform_2(%arg0: i32) -> (i32, i32, i32) {
    %c0_i32 = arith.constant 0 : i32
    %c0_i32_0 = arith.constant 0 : i32
    %c0_i32_1 = arith.constant 0 : i32
    return %arg0, %c0_i32, %c0_i32_0 : i32, i32, i32
  }
  func.func @transform_3(%arg0: i32) -> (i32, i32) {
    %c0_i32 = arith.constant 0 : i32
    %c0_i32_0 = arith.constant 0 : i32
    %c0_i32_1 = arith.constant 0 : i32
    return %c0_i32, %c0_i32_0 : i32, i32
  }
  func.func @transform_4(%arg0: i32) -> (i32, i32) {
    %c0_i32 = arith.constant 0 : i32
    %c0_i32_0 = arith.constant 0 : i32
    %c0_i32_1 = arith.constant 0 : i32
    return %c0_i32, %c0_i32_0 : i32, i32
  }
  func.func @transform_5(%arg0: i32) -> (i32, i32, i32, i32) {
    %c0_i32 = arith.constant 0 : i32
    %c0_i32_0 = arith.constant 0 : i32
    %c0_i32_1 = arith.constant 0 : i32
    %c0_i32_2 = arith.constant 0 : i32
    %c0_i32_3 = arith.constant 0 : i32
    return %c0_i32, %c0_i32_0, %c0_i32_1, %c0_i32_2 : i32, i32, i32, i32
  }
  func.func @transform_6(%arg0: i32) -> (i32, i32, i32, i32) {
    %c0_i32 = arith.constant 0 : i32
    %c0_i32_0 = arith.constant 0 : i32
    %c0_i32_1 = arith.constant 0 : i32
    %c0_i32_2 = arith.constant 0 : i32
    %c0_i32_3 = arith.constant 0 : i32
    return %c0_i32, %c0_i32_0, %c0_i32_1, %c0_i32_2 : i32, i32, i32, i32
  }
  func.func @transform_7(%arg0: i32) -> (i32, i32, i32, i32) {
    %c0_i32 = arith.constant 0 : i32
    %c0_i32_0 = arith.constant 0 : i32
    %c0_i32_1 = arith.constant 0 : i32
    %c0_i32_2 = arith.constant 0 : i32
    %c0_i32_3 = arith.constant 0 : i32
    return %c0_i32, %c0_i32_0, %c0_i32_1, %c0_i32_2 : i32, i32, i32, i32
  }
  func.func @transform_8(%arg0: i32) -> (i32, i32, i32, i32) {
    %c0_i32 = arith.constant 0 : i32
    %c0_i32_0 = arith.constant 0 : i32
    %c0_i32_1 = arith.constant 0 : i32
    %c0_i32_2 = arith.constant 0 : i32
    %c0_i32_3 = arith.constant 0 : i32
    return %c0_i32, %c0_i32_0, %c0_i32_1, %c0_i32_2 : i32, i32, i32, i32
  }
  func.func @transform_9(%arg0: i32) -> (i32, i32, i32, i32) {
    %c0_i32 = arith.constant 0 : i32
    %c0_i32_0 = arith.constant 0 : i32
    %c0_i32_1 = arith.constant 0 : i32
    %c0_i32_2 = arith.constant 0 : i32
    %c0_i32_3 = arith.constant 0 : i32
    return %c0_i32, %c0_i32_0, %c0_i32_1, %c0_i32_2 : i32, i32, i32, i32
  }
  func.func @transform_10(%arg0: i32) -> (i32, i32, i32, i32) {
    %c0_i32 = arith.constant 0 : i32
    %c0_i32_0 = arith.constant 0 : i32
    %c0_i32_1 = arith.constant 0 : i32
    %c0_i32_2 = arith.constant 0 : i32
    %c0_i32_3 = arith.constant 0 : i32
    return %c0_i32, %c0_i32_0, %c0_i32_1, %c0_i32_2 : i32, i32, i32, i32
  }
  func.func @transform_11(%arg0: i32) -> (i32, i32, i32, i32) {
    %c0_i32 = arith.constant 0 : i32
    %c0_i32_0 = arith.constant 0 : i32
    %c0_i32_1 = arith.constant 0 : i32
    %c0_i32_2 = arith.constant 0 : i32
    %c0_i32_3 = arith.constant 0 : i32
    return %c0_i32, %c0_i32_0, %c0_i32_1, %c0_i32_2 : i32, i32, i32, i32
  }
  func.func @transform_12(%arg0: i32) -> (i32, i32, i32) {
    %c0_i32 = arith.constant 0 : i32
    %c0_i32_0 = arith.constant 0 : i32
    %c0_i32_1 = arith.constant 0 : i32
    %c0_i32_2 = arith.constant 0 : i32
    return %c0_i32, %c0_i32_0, %c0_i32_1 : i32, i32, i32
  }
  func.func @transform_13(%arg0: i32) -> (i32, i32, i32) {
    %c0_i32 = arith.constant 0 : i32
    %c0_i32_0 = arith.constant 0 : i32
    %c0_i32_1 = arith.constant 0 : i32
    %c0_i32_2 = arith.constant 0 : i32
    return %c0_i32, %c0_i32_0, %c0_i32_1 : i32, i32, i32
  }
  func.func @transform_14(%arg0: i32) -> (i32, i32, i32) {
    %c0_i32 = arith.constant 0 : i32
    %c0_i32_0 = arith.constant 0 : i32
    %c0_i32_1 = arith.constant 0 : i32
    %c0_i32_2 = arith.constant 0 : i32
    return %c0_i32, %c0_i32_0, %c0_i32_1 : i32, i32, i32
  }
  func.func @transform_15(%arg0: i32) -> (i32, i32, i32) {
    %c0_i32 = arith.constant 0 : i32
    %c0_i32_0 = arith.constant 0 : i32
    %c0_i32_1 = arith.constant 0 : i32
    %c0_i32_2 = arith.constant 0 : i32
    return %c0_i32, %c0_i32_0, %c0_i32_1 : i32, i32, i32
  }
  func.func @transform_16(%arg0: i32) -> (i32, i32, i32) {
    %c0_i32 = arith.constant 0 : i32
    %c0_i32_0 = arith.constant 0 : i32
    %c0_i32_1 = arith.constant 0 : i32
    %c0_i32_2 = arith.constant 0 : i32
    return %c0_i32, %c0_i32_0, %c0_i32_1 : i32, i32, i32
  }
  func.func @transform_17(%arg0: i32) -> (i32, i32, i32) {
    %c0_i32 = arith.constant 0 : i32
    %c0_i32_0 = arith.constant 0 : i32
    %c0_i32_1 = arith.constant 0 : i32
    %c0_i32_2 = arith.constant 0 : i32
    return %c0_i32, %c0_i32_0, %c0_i32_1 : i32, i32, i32
  }
  func.func @transform_18(%arg0: i32) -> (i32, i32, i32) {
    %c0_i32 = arith.constant 0 : i32
    %c0_i32_0 = arith.constant 0 : i32
    %c0_i32_1 = arith.constant 0 : i32
    %c0_i32_2 = arith.constant 0 : i32
    return %c0_i32, %c0_i32_0, %c0_i32_1 : i32, i32, i32
  }
  func.func @transform_19(%arg0: i32) -> (i32, i32, i32) {
    %c0_i32 = arith.constant 0 : i32
    %c0_i32_0 = arith.constant 0 : i32
    %c0_i32_1 = arith.constant 0 : i32
    %c0_i32_2 = arith.constant 0 : i32
    return %c0_i32, %c0_i32_0, %c0_i32_1 : i32, i32, i32
  }
  func.func @transform_20(%arg0: i32) -> (i32, i32, i32) {
    %c0_i32 = arith.constant 0 : i32
    %c0_i32_0 = arith.constant 0 : i32
    %c0_i32_1 = arith.constant 0 : i32
    %c0_i32_2 = arith.constant 0 : i32
    return %c0_i32, %c0_i32_0, %c0_i32_1 : i32, i32, i32
  }
  func.func @transform_21(%arg0: i32) -> (i32, i32) {
    %c0_i32 = arith.constant 0 : i32
    %c0_i32_0 = arith.constant 0 : i32
    %c0_i32_1 = arith.constant 0 : i32
    return %c0_i32, %c0_i32_0 : i32, i32
  }
  func.func @transform_22(%arg0: i32) -> (i32, i32) {
    %c0_i32 = arith.constant 0 : i32
    %c0_i32_0 = arith.constant 0 : i32
    %c0_i32_1 = arith.constant 0 : i32
    return %c0_i32, %c0_i32_0 : i32, i32
  }
  func.func @transform_23(%arg0: i32) -> (i32, i32) {
    %c0_i32 = arith.constant 0 : i32
    %c0_i32_0 = arith.constant 0 : i32
    %c0_i32_1 = arith.constant 0 : i32
    return %c0_i32, %c0_i32_0 : i32, i32
  }
  func.func @transform_24(%arg0: i32) -> (i32, i32) {
    %c0_i32 = arith.constant 0 : i32
    %c0_i32_0 = arith.constant 0 : i32
    %c0_i32_1 = arith.constant 0 : i32
    return %c0_i32, %c0_i32_0 : i32, i32
  }
  func.func @transform_25(%arg0: i32) -> (i32, i32, i32) {
    %c0_i32 = arith.constant 0 : i32
    %c0_i32_0 = arith.constant 0 : i32
    %c0_i32_1 = arith.constant 0 : i32
    return %arg0, %c0_i32, %c0_i32_0 : i32, i32, i32
  }
}

</mosaic_0001>

<llo_original>
// kernel: model_forward.1
$region0: #{model_forward.1}
  #allocation0 [shape = 'u32[]', space=smem, size = 0x4, offset = 0x4, fixed_abs, tag = 'smem constant byte address 0x4 - core index']
  #allocation1 [shape = 'u32[72,128]{1,0:T(1,128)}', space=vmem, size = 0x9000, scoped, tag = 'internal scratch']
  %s0 = inlined_call_operand.vmem [shape: f32[16,32], index: 0, kind: input, shape index: {}]
  %s1 = inlined_call_operand.vmem [shape: s32[2,1,8], index: 1, kind: input, shape index: {}]
  %s2 = inlined_call_operand.vmem [shape: s32[2,8,1], index: 2, kind: input, shape index: {}]
  %s3 = inlined_call_operand.vmem [shape: f32[1,32], index: 3, kind: input, shape index: {}]
  %s4 = inlined_call_operand.vmem [shape: f32[1,32], index: 4, kind: input, shape index: {}]
  %s5 = inlined_call_operand.vmem [shape: bf16[2,4,32,8], index: 5, kind: input, shape index: {}]
  %s6 = inlined_call_operand.vmem [shape: bf16[2,4,32,8], index: 6, kind: input, shape index: {}]
  %s7 = inlined_call_operand.vmem [shape: bf16[2,4,32,8], index: 7, kind: input, shape index: {}]
  %s8 = inlined_call_operand.vmem [shape: f32[2,4,1,8], index: 8, kind: input, shape index: {}]
  %s9 = inlined_call_operand.vmem [shape: f32[2,4,1,8], index: 9, kind: input, shape index: {}]
  %s10 = inlined_call_operand.vmem [shape: f32[2,4,1,8], index: 10, kind: input, shape index: {}]
  %s11 = inlined_call_operand.vmem [shape: bf16[2,4,8,32], index: 11, kind: input, shape index: {}]
  %s12 = inlined_call_operand.vmem [shape: f32[2,1,32], index: 12, kind: input, shape index: {}]
  %s13 = inlined_call_operand.vmem [shape: f32[2,1,32], index: 13, kind: input, shape index: {}]
  %s14 = inlined_call_operand.vmem [shape: f32[2,1,32], index: 14, kind: input, shape index: {}]
  %s15 = inlined_call_operand.vmem [shape: bf16[2,32,64], index: 15, kind: input, shape index: {}]
  %s16 = inlined_call_operand.vmem [shape: f32[2,1,64], index: 16, kind: input, shape index: {}]
  %s17 = inlined_call_operand.vmem [shape: bf16[2,64,32], index: 17, kind: input, shape index: {}]
  %s18 = inlined_call_operand.vmem [shape: f32[2,1,32], index: 18, kind: input, shape index: {}]
  %s19 = inlined_call_operand.vmem [shape: f32[2,1,32], index: 19, kind: input, shape index: {}]
  %s20 = inlined_call_operand.vmem [shape: f32[2,1,32], index: 20, kind: input, shape index: {}]
  %s21 = inlined_call_operand.vmem [shape: bf16[32,32], index: 21, kind: input, shape index: {}]
  %s22 = inlined_call_operand.vmem [shape: f32[1,32], index: 22, kind: input, shape index: {}]
  %s23 = inlined_call_operand.vmem [shape: bf16[32,128], index: 23, kind: input, shape index: {}]
  %s24 = inlined_call_operand.vmem [shape: f32[1,128], index: 24, kind: input, shape index: {}]
  %s25 = inlined_call_operand.hbm [shape: f32[2,1,128], index: 25, kind: output, shape index: {}]
  %s26 = sld [smem:[#allocation0]]
  $region133: #{model_forward.1} parent=0
    _
  %s28 = ssub.s32 1, %s26
  %s29 = scalar_select 0, %s28, %s26
  $region1: #{model_forward.1} parent=0
    #allocation2 [shape = 'u8[1024]{0}', space=vmem, size = 0x400, scoped, tag = 'output window, operand 0']
    #allocation3 [shape = 's32[2]{0}', space=sflag, size = 0x8, scoped, tag = 'scoped memory for model_forward.1']
    %30 = vsyncpa [#allocation3], 0
    %s31 = scalar_lea.sflag [#allocation3], 1
    %32 = vsyncpa %s31, 0
    loop: start=0, step=1, limit=4
    $region2: #{model_forward.1} parent=1 // loop_pre_header
      _
    $region3: #{model_forward.1} parent=1 // loop_header
      %s34 = sphi 0, %s38
      %p35 = scmp.ge.s32.totalorder %s34, 4
      %s44 = sphi 0, %s46
      %s47 = sphi 0, %s44
      %s48 = sphi 0, %s47
      %s64 = sphi 0, %s48
      %s70 = sphi 0, %s72
      %s73 = sphi 0, %s70
      %s74 = sphi 0, %s73
      %s90 = sphi 0, %s74
      %s96 = sphi 0, %s98
      %s99 = sphi 0, %s96
      %s100 = sphi 0, %s99
      %s116 = sphi 0, %s100
      %s120 = sphi 0, %s120
      %s122 = sphi 0, %s120
      %s123 = sphi 0, %s122
      %s137 = sphi 0, %s123
      %s141 = sphi 0, %s141
      %s143 = sphi 0, %s141
      %s144 = sphi 0, %s143
      %s158 = sphi 0, %s144
      %s162 = sphi 0, %s162
      %s164 = sphi 0, %s162
      %s165 = sphi 0, %s164
      %s179 = sphi 0, %s165
      %s183 = sphi 0, %s183
      %s185 = sphi 0, %s183
      %s186 = sphi 0, %s185
      %s200 = sphi 0, %s186
      %s204 = sphi 0, %s204
      %s206 = sphi 0, %s204
      %s207 = sphi 0, %s206
      %s221 = sphi 0, %s207
      %s225 = sphi 0, %s225
      %s227 = sphi 0, %s225
      %s228 = sphi 0, %s227
      %s242 = sphi 0, %s228
      %s246 = sphi 0, %s246
      %s248 = sphi 0, %s246
      %s249 = sphi 0, %s248
      %s263 = sphi 0, %s249
      %s267 = sphi 0, %s267
      %s269 = sphi 0, %s267
      %s270 = sphi 0, %s269
      %s284 = sphi 0, %s270
      %s288 = sphi 0, %s288
      %s290 = sphi 0, %s288
      %s291 = sphi 0, %s290
      %s305 = sphi 0, %s291
      %s309 = sphi 0, %s309
      %s311 = sphi 0, %s309
      %s312 = sphi 0, %s311
      %s326 = sphi 0, %s312
      %s330 = sphi 0, %s330
      %s332 = sphi 0, %s330
      %s333 = sphi 0, %s332
      %s347 = sphi 0, %s333
      %s351 = sphi 0, %s351
      %s353 = sphi 0, %s351
      %s354 = sphi 0, %s353
      %s368 = sphi 0, %s354
      %s372 = sphi 0, %s372
      %s374 = sphi 0, %s372
      %s375 = sphi 0, %s374
      %s389 = sphi 0, %s375
      %s393 = sphi 0, %s393
      %s395 = sphi 0, %s393
      %s396 = sphi 0, %s395
      %s410 = sphi 0, %s396
      %s414 = sphi 0, %s414
      %s416 = sphi 0, %s414
      %s417 = sphi 0, %s416
      %s431 = sphi 0, %s417
      %s435 = sphi 0, %s435
      %s437 = sphi 0, %s435
      %s438 = sphi 0, %s437
      %s452 = sphi 0, %s438
      %s456 = sphi 0, %s456
      %s458 = sphi 0, %s456
      %s459 = sphi 0, %s458
      %s473 = sphi 0, %s459
      %s477 = sphi 0, %s477
      %s479 = sphi 0, %s477
      %s480 = sphi 0, %s479
      %s494 = sphi 0, %s480
      %s498 = sphi 0, %s498
      %s500 = sphi 0, %s498
      %s501 = sphi 0, %s500
      %s515 = sphi 0, %s501
      %s519 = sphi 0, %s519
      %s521 = sphi 0, %s519
      %s522 = sphi 0, %s521
      %s536 = sphi 0, %s522
      %s540 = sphi 0, %s540
      %s542 = sphi 0, %s540
      %s543 = sphi 0, %s542
      %s557 = sphi 0, %s543
      %s561 = sphi 0, %s561
      %s563 = sphi 0, %s561
      %s564 = sphi 0, %s563
      %s578 = sphi 0, %s564
      %s584 = sphi 0, %s586
      %s587 = sphi 0, %s584
      %s588 = sphi 0, %s587
      %s604 = sphi 0, %s588
    $region4: #{model_forward.1} parent=1 // loop_header_branch
      %37 = sbr.rel (%p35) target = $region8
    $region5: #{model_forward.1} parent=1 // loop_body
      %s39 = ssub.s32 %s34, 1
      %s40 = ssub.s32 %s34, 2
      %s41 = sadd.s32 %s34, 1
      %s42 = ssub.s32 %s34, %s41
      %p43 = scmp.eq.s32.totalorder %s42, 0
      %s45 = sadd.s32 %s44, 1
      %s46 = scalar_select %p43, %s44, %s45
      %p49 = pneg %p43
      %p50 = scmp.eq.s32.totalorder %s34, 1
      %p51 = por %p49, %p50
      %p52 = scmp.ne.s32.totalorder %s44, %s47
      %p53 = scmp.eq.s32.totalorder %s34, 0
      %p54 = por %p52, %p53
      %p55 = scmp.ne.s32.totalorder %s44, %s47
      %p56 = scmp.eq.s32.totalorder %s39, 1
      %p57 = por %p55, %p56
      %p58 = scmp.ne.s32.totalorder %s47, %s48
      %p59 = scmp.eq.s32.totalorder %s39, 0
      %p60 = por %p58, %p59
      %p61 = scmp.ne.s32.totalorder %s47, %s48
      %p62 = scmp.eq.s32.totalorder %s40, 1
      %p63 = por %p61, %p62
      %p65 = scmp.ne.s32.totalorder %s48, %s64
      %p66 = scmp.eq.s32.totalorder %s40, 0
      %p67 = por %p65, %p66
      %s68 = ssub.s32 %s34, %s41
      %p69 = scmp.eq.s32.totalorder %s68, 0
      %s71 = sadd.s32 %s70, 1
      %s72 = scalar_select %p69, %s70, %s71
      %p75 = pneg %p69
      %p76 = scmp.eq.s32.totalorder %s34, 1
      %p77 = por %p75, %p76
      %p78 = scmp.ne.s32.totalorder %s70, %s73
      %p79 = scmp.eq.s32.totalorder %s34, 0
      %p80 = por %p78, %p79
      %p81 = scmp.ne.s32.totalorder %s70, %s73
      %p82 = scmp.eq.s32.totalorder %s39, 1
      %p83 = por %p81, %p82
      %p84 = scmp.ne.s32.totalorder %s73, %s74
      %p85 = scmp.eq.s32.totalorder %s39, 0
      %p86 = por %p84, %p85
      %p87 = scmp.ne.s32.totalorder %s73, %s74
      %p88 = scmp.eq.s32.totalorder %s40, 1
      %p89 = por %p87, %p88
      %p91 = scmp.ne.s32.totalorder %s74, %s90
      %p92 = scmp.eq.s32.totalorder %s40, 0
      %p93 = por %p91, %p92
      %s94 = ssub.s32 %s34, %s41
      %p95 = scmp.eq.s32.totalorder %s94, 0
      %s97 = sadd.s32 %s96, 1
      %s98 = scalar_select %p95, %s96, %s97
      %p101 = pneg %p95
      %p102 = scmp.eq.s32.totalorder %s34, 1
      %p103 = por %p101, %p102
      %p104 = scmp.ne.s32.totalorder %s96, %s99
      %p105 = scmp.eq.s32.totalorder %s34, 0
      %p106 = por %p104, %p105
      %p107 = scmp.ne.s32.totalorder %s96, %s99
      %p108 = scmp.eq.s32.totalorder %s39, 1
      %p109 = por %p107, %p108
      %p110 = scmp.ne.s32.totalorder %s99, %s100
      %p111 = scmp.eq.s32.totalorder %s39, 0
      %p112 = por %p110, %p111
      %p113 = scmp.ne.s32.totalorder %s99, %s100
      %p114 = scmp.eq.s32.totalorder %s40, 1
      %p115 = por %p113, %p114
      %p117 = scmp.ne.s32.totalorder %s100, %s116
      %p118 = scmp.eq.s32.totalorder %s40, 0
      %p119 = por %p117, %p118
      %s121 = sadd.s32 %s120, 1
      %p124 = scmp.eq.s32.totalorder %s34, 1
      %p125 = scmp.ne.s32.totalorder %s120, %s122
      %p126 = scmp.eq.s32.totalorder %s34, 0
      %p127 = por %p125, %p126
      %p128 = scmp.ne.s32.totalorder %s120, %s122
      %p129 = scmp.eq.s32.totalorder %s39, 1
      %p130 = por %p128, %p129
      %p131 = scmp.ne.s32.totalorder %s122, %s123
      %p132 = scmp.eq.s32.totalorder %s39, 0
      %p133 = por %p131, %p132
      %p134 = scmp.ne.s32.totalorder %s122, %s123
      %p135 = scmp.eq.s32.totalorder %s40, 1
      %p136 = por %p134, %p135
      %p138 = scmp.ne.s32.totalorder %s123, %s137
      %p139 = scmp.eq.s32.totalorder %s40, 0
      %p140 = por %p138, %p139
      %s142 = sadd.s32 %s141, 1
      %p145 = scmp.eq.s32.totalorder %s34, 1
      %p146 = scmp.ne.s32.totalorder %s141, %s143
      %p147 = scmp.eq.s32.totalorder %s34, 0
      %p148 = por %p146, %p147
      %p149 = scmp.ne.s32.totalorder %s141, %s143
      %p150 = scmp.eq.s32.totalorder %s39, 1
      %p151 = por %p149, %p150
      %p152 = scmp.ne.s32.totalorder %s143, %s144
      %p153 = scmp.eq.s32.totalorder %s39, 0
      %p154 = por %p152, %p153
      %p155 = scmp.ne.s32.totalorder %s143, %s144
      %p156 = scmp.eq.s32.totalorder %s40, 1
      %p157 = por %p155, %p156
      %p159 = scmp.ne.s32.totalorder %s144, %s158
      %p160 = scmp.eq.s32.totalorder %s40, 0
      %p161 = por %p159, %p160
      %s163 = sadd.s32 %s162, 1
      %p166 = scmp.eq.s32.totalorder %s34, 1
      %p167 = scmp.ne.s32.totalorder %s162, %s164
      %p168 = scmp.eq.s32.totalorder %s34, 0
      %p169 = por %p167, %p168
      %p170 = scmp.ne.s32.totalorder %s162, %s164
      %p171 = scmp.eq.s32.totalorder %s39, 1
      %p172 = por %p170, %p171
      %p173 = scmp.ne.s32.totalorder %s164, %s165
      %p174 = scmp.eq.s32.totalorder %s39, 0
      %p175 = por %p173, %p174
      %p176 = scmp.ne.s32.totalorder %s164, %s165
      %p177 = scmp.eq.s32.totalorder %s40, 1
      %p178 = por %p176, %p177
      %p180 = scmp.ne.s32.totalorder %s165, %s179
      %p181 = scmp.eq.s32.totalorder %s40, 0
      %p182 = por %p180, %p181
      %s184 = sadd.s32 %s183, 1
      %p187 = scmp.eq.s32.totalorder %s34, 1
      %p188 = scmp.ne.s32.totalorder %s183, %s185
      %p189 = scmp.eq.s32.totalorder %s34, 0
      %p190 = por %p188, %p189
      %p191 = scmp.ne.s32.totalorder %s183, %s185
      %p192 = scmp.eq.s32.totalorder %s39, 1
      %p193 = por %p191, %p192
      %p194 = scmp.ne.s32.totalorder %s185, %s186
      %p195 = scmp.eq.s32.totalorder %s39, 0
      %p196 = por %p194, %p195
      %p197 = scmp.ne.s32.totalorder %s185, %s186
      %p198 = scmp.eq.s32.totalorder %s40, 1
      %p199 = por %p197, %p198
      %p201 = scmp.ne.s32.totalorder %s186, %s200
      %p202 = scmp.eq.s32.totalorder %s40, 0
      %p203 = por %p201, %p202
      %s205 = sadd.s32 %s204, 1
      %p208 = scmp.eq.s32.totalorder %s34, 1
      %p209 = scmp.ne.s32.totalorder %s204, %s206
      %p210 = scmp.eq.s32.totalorder %s34, 0
      %p211 = por %p209, %p210
      %p212 = scmp.ne.s32.totalorder %s204, %s206
      %p213 = scmp.eq.s32.totalorder %s39, 1
      %p214 = por %p212, %p213
      %p215 = scmp.ne.s32.totalorder %s206, %s207
      %p216 = scmp.eq.s32.totalorder %s39, 0
      %p217 = por %p215, %p216
      %p218 = scmp.ne.s32.totalorder %s206, %s207
      %p219 = scmp.eq.s32.totalorder %s40, 1
      %p220 = por %p218, %p219
      %p222 = scmp.ne.s32.totalorder %s207, %s221
      %p223 = scmp.eq.s32.totalorder %s40, 0
      %p224 = por %p222, %p223
      %s226 = sadd.s32 %s225, 1
      %p229 = scmp.eq.s32.totalorder %s34, 1
      %p230 = scmp.ne.s32.totalorder %s225, %s227
      %p231 = scmp.eq.s32.totalorder %s34, 0
      %p232 = por %p230, %p231
      %p233 = scmp.ne.s32.totalorder %s225, %s227
      %p234 = scmp.eq.s32.totalorder %s39, 1
      %p235 = por %p233, %p234
      %p236 = scmp.ne.s32.totalorder %s227, %s228
      %p237 = scmp.eq.s32.totalorder %s39, 0
      %p238 = por %p236, %p237
      %p239 = scmp.ne.s32.totalorder %s227, %s228
      %p240 = scmp.eq.s32.totalorder %s40, 1
      %p241 = por %p239, %p240
      %p243 = scmp.ne.s32.totalorder %s228, %s242
      %p244 = scmp.eq.s32.totalorder %s40, 0
      %p245 = por %p243, %p244
      %s247 = sadd.s32 %s246, 1
      %p250 = scmp.eq.s32.totalorder %s34, 1
      %p251 = scmp.ne.s32.totalorder %s246, %s248
      %p252 = scmp.eq.s32.totalorder %s34, 0
      %p253 = por %p251, %p252
      %p254 = scmp.ne.s32.totalorder %s246, %s248
      %p255 = scmp.eq.s32.totalorder %s39, 1
      %p256 = por %p254, %p255
      %p257 = scmp.ne.s32.totalorder %s248, %s249
      %p258 = scmp.eq.s32.totalorder %s39, 0
      %p259 = por %p257, %p258
      %p260 = scmp.ne.s32.totalorder %s248, %s249
      %p261 = scmp.eq.s32.totalorder %s40, 1
      %p262 = por %p260, %p261
      %p264 = scmp.ne.s32.totalorder %s249, %s263
      %p265 = scmp.eq.s32.totalorder %s40, 0
      %p266 = por %p264, %p265
      %s268 = sadd.s32 %s267, 1
      %p271 = scmp.eq.s32.totalorder %s34, 1
      %p272 = scmp.ne.s32.totalorder %s267, %s269
      %p273 = scmp.eq.s32.totalorder %s34, 0
      %p274 = por %p272, %p273
      %p275 = scmp.ne.s32.totalorder %s267, %s269
      %p276 = scmp.eq.s32.totalorder %s39, 1
      %p277 = por %p275, %p276
      %p278 = scmp.ne.s32.totalorder %s269, %s270
      %p279 = scmp.eq.s32.totalorder %s39, 0
      %p280 = por %p278, %p279
      %p281 = scmp.ne.s32.totalorder %s269, %s270
      %p282 = scmp.eq.s32.totalorder %s40, 1
      %p283 = por %p281, %p282
      %p285 = scmp.ne.s32.totalorder %s270, %s284
      %p286 = scmp.eq.s32.totalorder %s40, 0
      %p287 = por %p285, %p286
      %s289 = sadd.s32 %s288, 1
      %p292 = scmp.eq.s32.totalorder %s34, 1
      %p293 = scmp.ne.s32.totalorder %s288, %s290
      %p294 = scmp.eq.s32.totalorder %s34, 0
      %p295 = por %p293, %p294
      %p296 = scmp.ne.s32.totalorder %s288, %s290
      %p297 = scmp.eq.s32.totalorder %s39, 1
      %p298 = por %p296, %p297
      %p299 = scmp.ne.s32.totalorder %s290, %s291
      %p300 = scmp.eq.s32.totalorder %s39, 0
      %p301 = por %p299, %p300
      %p302 = scmp.ne.s32.totalorder %s290, %s291
      %p303 = scmp.eq.s32.totalorder %s40, 1
      %p304 = por %p302, %p303
      %p306 = scmp.ne.s32.totalorder %s291, %s305
      %p307 = scmp.eq.s32.totalorder %s40, 0
      %p308 = por %p306, %p307
      %s310 = sadd.s32 %s309, 1
      %p313 = scmp.eq.s32.totalorder %s34, 1
      %p314 = scmp.ne.s32.totalorder %s309, %s311
      %p315 = scmp.eq.s32.totalorder %s34, 0
      %p316 = por %p314, %p315
      %p317 = scmp.ne.s32.totalorder %s309, %s311
      %p318 = scmp.eq.s32.totalorder %s39, 1
      %p319 = por %p317, %p318
      %p320 = scmp.ne.s32.totalorder %s311, %s312
      %p321 = scmp.eq.s32.totalorder %s39, 0
      %p322 = por %p320, %p321
      %p323 = scmp.ne.s32.totalorder %s311, %s312
      %p324 = scmp.eq.s32.totalorder %s40, 1
      %p325 = por %p323, %p324
      %p327 = scmp.ne.s32.totalorder %s312, %s326
      %p328 = scmp.eq.s32.totalorder %s40, 0
      %p329 = por %p327, %p328
      %s331 = sadd.s32 %s330, 1
      %p334 = scmp.eq.s32.totalorder %s34, 1
      %p335 = scmp.ne.s32.totalorder %s330, %s332
      %p336 = scmp.eq.s32.totalorder %s34, 0
      %p337 = por %p335, %p336
      %p338 = scmp.ne.s32.totalorder %s330, %s332
      %p339 = scmp.eq.s32.totalorder %s39, 1
      %p340 = por %p338, %p339
      %p341 = scmp.ne.s32.totalorder %s332, %s333
      %p342 = scmp.eq.s32.totalorder %s39, 0
      %p343 = por %p341, %p342
      %p344 = scmp.ne.s32.totalorder %s332, %s333
      %p345 = scmp.eq.s32.totalorder %s40, 1
      %p346 = por %p344, %p345
      %p348 = scmp.ne.s32.totalorder %s333, %s347
      %p349 = scmp.eq.s32.totalorder %s40, 0
      %p350 = por %p348, %p349
      %s352 = sadd.s32 %s351, 1
      %p355 = scmp.eq.s32.totalorder %s34, 1
      %p356 = scmp.ne.s32.totalorder %s351, %s353
      %p357 = scmp.eq.s32.totalorder %s34, 0
      %p358 = por %p356, %p357
      %p359 = scmp.ne.s32.totalorder %s351, %s353
      %p360 = scmp.eq.s32.totalorder %s39, 1
      %p361 = por %p359, %p360
      %p362 = scmp.ne.s32.totalorder %s353, %s354
      %p363 = scmp.eq.s32.totalorder %s39, 0
      %p364 = por %p362, %p363
      %p365 = scmp.ne.s32.totalorder %s353, %s354
      %p366 = scmp.eq.s32.totalorder %s40, 1
      %p367 = por %p365, %p366
      %p369 = scmp.ne.s32.totalorder %s354, %s368
      %p370 = scmp.eq.s32.totalorder %s40, 0
      %p371 = por %p369, %p370
      %s373 = sadd.s32 %s372, 1
      %p376 = scmp.eq.s32.totalorder %s34, 1
      %p377 = scmp.ne.s32.totalorder %s372, %s374
      %p378 = scmp.eq.s32.totalorder %s34, 0
      %p379 = por %p377, %p378
      %p380 = scmp.ne.s32.totalorder %s372, %s374
      %p381 = scmp.eq.s32.totalorder %s39, 1
      %p382 = por %p380, %p381
      %p383 = scmp.ne.s32.totalorder %s374, %s375
      %p384 = scmp.eq.s32.totalorder %s39, 0
      %p385 = por %p383, %p384
      %p386 = scmp.ne.s32.totalorder %s374, %s375
      %p387 = scmp.eq.s32.totalorder %s40, 1
      %p388 = por %p386, %p387
      %p390 = scmp.ne.s32.totalorder %s375, %s389
      %p391 = scmp.eq.s32.totalorder %s40, 0
      %p392 = por %p390, %p391
      %s394 = sadd.s32 %s393, 1
      %p397 = scmp.eq.s32.totalorder %s34, 1
      %p398 = scmp.ne.s32.totalorder %s393, %s395
      %p399 = scmp.eq.s32.totalorder %s34, 0
      %p400 = por %p398, %p399
      %p401 = scmp.ne.s32.totalorder %s393, %s395
      %p402 = scmp.eq.s32.totalorder %s39, 1
      %p403 = por %p401, %p402
      %p404 = scmp.ne.s32.totalorder %s395, %s396
      %p405 = scmp.eq.s32.totalorder %s39, 0
      %p406 = por %p404, %p405
      %p407 = scmp.ne.s32.totalorder %s395, %s396
      %p408 = scmp.eq.s32.totalorder %s40, 1
      %p409 = por %p407, %p408
      %p411 = scmp.ne.s32.totalorder %s396, %s410
      %p412 = scmp.eq.s32.totalorder %s40, 0
      %p413 = por %p411, %p412
      %s415 = sadd.s32 %s414, 1
      %p418 = scmp.eq.s32.totalorder %s34, 1
      %p419 = scmp.ne.s32.totalorder %s414, %s416
      %p420 = scmp.eq.s32.totalorder %s34, 0
      %p421 = por %p419, %p420
      %p422 = scmp.ne.s32.totalorder %s414, %s416
      %p423 = scmp.eq.s32.totalorder %s39, 1
      %p424 = por %p422, %p423
      %p425 = scmp.ne.s32.totalorder %s416, %s417
      %p426 = scmp.eq.s32.totalorder %s39, 0
      %p427 = por %p425, %p426
      %p428 = scmp.ne.s32.totalorder %s416, %s417
      %p429 = scmp.eq.s32.totalorder %s40, 1
      %p430 = por %p428, %p429
      %p432 = scmp.ne.s32.totalorder %s417, %s431
      %p433 = scmp.eq.s32.totalorder %s40, 0
      %p434 = por %p432, %p433
      %s436 = sadd.s32 %s435, 1
      %p439 = scmp.eq.s32.totalorder %s34, 1
      %p440 = scmp.ne.s32.totalorder %s435, %s437
      %p441 = scmp.eq.s32.totalorder %s34, 0
      %p442 = por %p440, %p441
      %p443 = scmp.ne.s32.totalorder %s435, %s437
      %p444 = scmp.eq.s32.totalorder %s39, 1
      %p445 = por %p443, %p444
      %p446 = scmp.ne.s32.totalorder %s437, %s438
      %p447 = scmp.eq.s32.totalorder %s39, 0
      %p448 = por %p446, %p447
      %p449 = scmp.ne.s32.totalorder %s437, %s438
      %p450 = scmp.eq.s32.totalorder %s40, 1
      %p451 = por %p449, %p450
      %p453 = scmp.ne.s32.totalorder %s438, %s452
      %p454 = scmp.eq.s32.totalorder %s40, 0
      %p455 = por %p453, %p454
      %s457 = sadd.s32 %s456, 1
      %p460 = scmp.eq.s32.totalorder %s34, 1
      %p461 = scmp.ne.s32.totalorder %s456, %s458
      %p462 = scmp.eq.s32.totalorder %s34, 0
      %p463 = por %p461, %p462
      %p464 = scmp.ne.s32.totalorder %s456, %s458
      %p465 = scmp.eq.s32.totalorder %s39, 1
      %p466 = por %p464, %p465
      %p467 = scmp.ne.s32.totalorder %s458, %s459
      %p468 = scmp.eq.s32.totalorder %s39, 0
      %p469 = por %p467, %p468
      %p470 = scmp.ne.s32.totalorder %s458, %s459
      %p471 = scmp.eq.s32.totalorder %s40, 1
      %p472 = por %p470, %p471
      %p474 = scmp.ne.s32.totalorder %s459, %s473
      %p475 = scmp.eq.s32.totalorder %s40, 0
      %p476 = por %p474, %p475
      %s478 = sadd.s32 %s477, 1
      %p481 = scmp.eq.s32.totalorder %s34, 1
      %p482 = scmp.ne.s32.totalorder %s477, %s479
      %p483 = scmp.eq.s32.totalorder %s34, 0
      %p484 = por %p482, %p483
      %p485 = scmp.ne.s32.totalorder %s477, %s479
      %p486 = scmp.eq.s32.totalorder %s39, 1
      %p487 = por %p485, %p486
      %p488 = scmp.ne.s32.totalorder %s479, %s480
      %p489 = scmp.eq.s32.totalorder %s39, 0
      %p490 = por %p488, %p489
      %p491 = scmp.ne.s32.totalorder %s479, %s480
      %p492 = scmp.eq.s32.totalorder %s40, 1
      %p493 = por %p491, %p492
      %p495 = scmp.ne.s32.totalorder %s480, %s494
      %p496 = scmp.eq.s32.totalorder %s40, 0
      %p497 = por %p495, %p496
      %s499 = sadd.s32 %s498, 1
      %p502 = scmp.eq.s32.totalorder %s34, 1
      %p503 = scmp.ne.s32.totalorder %s498, %s500
      %p504 = scmp.eq.s32.totalorder %s34, 0
      %p505 = por %p503, %p504
      %p506 = scmp.ne.s32.totalorder %s498, %s500
      %p507 = scmp.eq.s32.totalorder %s39, 1
      %p508 = por %p506, %p507
      %p509 = scmp.ne.s32.totalorder %s500, %s501
      %p510 = scmp.eq.s32.totalorder %s39, 0
      %p511 = por %p509, %p510
      %p512 = scmp.ne.s32.totalorder %s500, %s501
      %p513 = scmp.eq.s32.totalorder %s40, 1
      %p514 = por %p512, %p513
      %p516 = scmp.ne.s32.totalorder %s501, %s515
      %p517 = scmp.eq.s32.totalorder %s40, 0
      %p518 = por %p516, %p517
      %s520 = sadd.s32 %s519, 1
      %p523 = scmp.eq.s32.totalorder %s34, 1
      %p524 = scmp.ne.s32.totalorder %s519, %s521
      %p525 = scmp.eq.s32.totalorder %s34, 0
      %p526 = por %p524, %p525
      %p527 = scmp.ne.s32.totalorder %s519, %s521
      %p528 = scmp.eq.s32.totalorder %s39, 1
      %p529 = por %p527, %p528
      %p530 = scmp.ne.s32.totalorder %s521, %s522
      %p531 = scmp.eq.s32.totalorder %s39, 0
      %p532 = por %p530, %p531
      %p533 = scmp.ne.s32.totalorder %s521, %s522
      %p534 = scmp.eq.s32.totalorder %s40, 1
      %p535 = por %p533, %p534
      %p537 = scmp.ne.s32.totalorder %s522, %s536
      %p538 = scmp.eq.s32.totalorder %s40, 0
      %p539 = por %p537, %p538
      %s541 = sadd.s32 %s540, 1
      %p544 = scmp.eq.s32.totalorder %s34, 1
      %p545 = scmp.ne.s32.totalorder %s540, %s542
      %p546 = scmp.eq.s32.totalorder %s34, 0
      %p547 = por %p545, %p546
      %p548 = scmp.ne.s32.totalorder %s540, %s542
      %p549 = scmp.eq.s32.totalorder %s39, 1
      %p550 = por %p548, %p549
      %p551 = scmp.ne.s32.totalorder %s542, %s543
      %p552 = scmp.eq.s32.totalorder %s39, 0
      %p553 = por %p551, %p552
      %p554 = scmp.ne.s32.totalorder %s542, %s543
      %p555 = scmp.eq.s32.totalorder %s40, 1
      %p556 = por %p554, %p555
      %p558 = scmp.ne.s32.totalorder %s543, %s557
      %p559 = scmp.eq.s32.totalorder %s40, 0
      %p560 = por %p558, %p559
      %s562 = sadd.s32 %s561, 1
      %p565 = scmp.eq.s32.totalorder %s34, 1
      %p566 = scmp.ne.s32.totalorder %s561, %s563
      %p567 = scmp.eq.s32.totalorder %s34, 0
      %p568 = por %p566, %p567
      %p569 = scmp.ne.s32.totalorder %s561, %s563
      %p570 = scmp.eq.s32.totalorder %s39, 1
      %p571 = por %p569, %p570
      %p572 = scmp.ne.s32.totalorder %s563, %s564
      %p573 = scmp.eq.s32.totalorder %s39, 0
      %p574 = por %p572, %p573
      %p575 = scmp.ne.s32.totalorder %s563, %s564
      %p576 = scmp.eq.s32.totalorder %s40, 1
      %p577 = por %p575, %p576
      %p579 = scmp.ne.s32.totalorder %s564, %s578
      %p580 = scmp.eq.s32.totalorder %s40, 0
      %p581 = por %p579, %p580
      %s582 = ssub.s32 %s34, %s41
      %p583 = scmp.eq.s32.totalorder %s582, 0
      %s585 = sadd.s32 %s584, 1
      %s586 = scalar_select %p583, %s584, %s585
      %p589 = pneg %p583
      %p590 = scmp.eq.s32.totalorder %s34, 1
      %p591 = por %p589, %p590
      %p592 = scmp.ne.s32.totalorder %s584, %s587
      %p593 = scmp.eq.s32.totalorder %s34, 0
      %p594 = por %p592, %p593
      %p595 = scmp.ne.s32.totalorder %s584, %s587
      %p596 = scmp.eq.s32.totalorder %s39, 1
      %p597 = por %p595, %p596
      %p598 = scmp.ne.s32.totalorder %s587, %s588
      %p599 = scmp.eq.s32.totalorder %s39, 0
      %p600 = por %p598, %p599
      %p601 = scmp.ne.s32.totalorder %s587, %s588
      %p602 = scmp.eq.s32.totalorder %s40, 1
      %p603 = por %p601, %p602
      %p605 = scmp.ne.s32.totalorder %s588, %s604
      %p606 = scmp.eq.s32.totalorder %s40, 0
      %p607 = por %p605, %p606
      %p608 = scmp.le.s32.totalorder 1, %s34
      %p609 = scmp.lt.s32.totalorder %s34, 3
      %p610 = pnand %p608, %p609
      %p611 = pneg %p610
      // Predicated region
      $region9: #{model_forward.1} parent=5 // pred_check
        _
      $region10: #{model_forward.1} parent=5 // pred_check_branch
        %613 = sbr.rel (%p610) target = $region12
      $region11: #{model_forward.1} parent=5 // pred_region
        %s614 = ssub.s32 %s34, 1
        // Predicated region
        $region13: #{model_forward.1} parent=11 // pred_check
          %p615 = pneg %p133
        $region14: #{model_forward.1} parent=11 // pred_check_branch
          %617 = sbr.rel (%p615) target = $region16
        $region15: #{model_forward.1} parent=11 // pred_region
          _
        $region16: #{model_forward.1} parent=11 // pred_fallthru
          _
        // Predicated region
        $region17: #{model_forward.1} parent=11 // pred_check
          %p618 = pneg %p154
        $region18: #{model_forward.1} parent=11 // pred_check_branch
          %620 = sbr.rel (%p618) target = $region20
        $region19: #{model_forward.1} parent=11 // pred_region
          _
        $region20: #{model_forward.1} parent=11 // pred_fallthru
          _
        // Predicated region
        $region21: #{model_forward.1} parent=11 // pred_check
          %p621 = pneg %p175
        $region22: #{model_forward.1} parent=11 // pred_check_branch
          %623 = sbr.rel (%p621) target = $region24
        $region23: #{model_forward.1} parent=11 // pred_region
          _
        $region24: #{model_forward.1} parent=11 // pred_fallthru
          _
        // Predicated region
        $region25: #{model_forward.1} parent=11 // pred_check
          %p624 = pneg %p196
        $region26: #{model_forward.1} parent=11 // pred_check_branch
          %626 = sbr.rel (%p624) target = $region28
        $region27: #{model_forward.1} parent=11 // pred_region
          _
        $region28: #{model_forward.1} parent=11 // pred_fallthru
          _
        // Predicated region
        $region29: #{model_forward.1} parent=11 // pred_check
          %p627 = pneg %p217
        $region30: #{model_forward.1} parent=11 // pred_check_branch
          %629 = sbr.rel (%p627) target = $region32
        $region31: #{model_forward.1} parent=11 // pred_region
          _
        $region32: #{model_forward.1} parent=11 // pred_fallthru
          _
        // Predicated region
        $region33: #{model_forward.1} parent=11 // pred_check
          %p630 = pneg %p238
        $region34: #{model_forward.1} parent=11 // pred_check_branch
          %632 = sbr.rel (%p630) target = $region36
        $region35: #{model_forward.1} parent=11 // pred_region
          _
        $region36: #{model_forward.1} parent=11 // pred_fallthru
          _
        // Predicated region
        $region37: #{model_forward.1} parent=11 // pred_check
          %p633 = pneg %p259
        $region38: #{model_forward.1} parent=11 // pred_check_branch
          %635 = sbr.rel (%p633) target = $region40
        $region39: #{model_forward.1} parent=11 // pred_region
          _
        $region40: #{model_forward.1} parent=11 // pred_fallthru
          _
        // Predicated region
        $region41: #{model_forward.1} parent=11 // pred_check
          %p636 = pneg %p280
        $region42: #{model_forward.1} parent=11 // pred_check_branch
          %638 = sbr.rel (%p636) target = $region44
        $region43: #{model_forward.1} parent=11 // pred_region
          _
        $region44: #{model_forward.1} parent=11 // pred_fallthru
          _
        // Predicated region
        $region45: #{model_forward.1} parent=11 // pred_check
          %p639 = pneg %p301
        $region46: #{model_forward.1} parent=11 // pred_check_branch
          %641 = sbr.rel (%p639) target = $region48
        $region47: #{model_forward.1} parent=11 // pred_region
          _
        $region48: #{model_forward.1} parent=11 // pred_fallthru
          _
        // Predicated region
        $region49: #{model_forward.1} parent=11 // pred_check
          %p642 = pneg %p322
        $region50: #{model_forward.1} parent=11 // pred_check_branch
          %644 = sbr.rel (%p642) target = $region52
        $region51: #{model_forward.1} parent=11 // pred_region
          _
        $region52: #{model_forward.1} parent=11 // pred_fallthru
          _
        // Predicated region
        $region53: #{model_forward.1} parent=11 // pred_check
          %p645 = pneg %p343
        $region54: #{model_forward.1} parent=11 // pred_check_branch
          %647 = sbr.rel (%p645) target = $region56
        $region55: #{model_forward.1} parent=11 // pred_region
          _
        $region56: #{model_forward.1} parent=11 // pred_fallthru
          _
        // Predicated region
        $region57: #{model_forward.1} parent=11 // pred_check
          %p648 = pneg %p364
        $region58: #{model_forward.1} parent=11 // pred_check_branch
          %650 = sbr.rel (%p648) target = $region60
        $region59: #{model_forward.1} parent=11 // pred_region
          _
        $region60: #{model_forward.1} parent=11 // pred_fallthru
          _
        // Predicated region
        $region61: #{model_forward.1} parent=11 // pred_check
          %p651 = pneg %p385
        $region62: #{model_forward.1} parent=11 // pred_check_branch
          %653 = sbr.rel (%p651) target = $region64
        $region63: #{model_forward.1} parent=11 // pred_region
          _
        $region64: #{model_forward.1} parent=11 // pred_fallthru
          _
        // Predicated region
        $region65: #{model_forward.1} parent=11 // pred_check
          %p654 = pneg %p406
        $region66: #{model_forward.1} parent=11 // pred_check_branch
          %656 = sbr.rel (%p654) target = $region68
        $region67: #{model_forward.1} parent=11 // pred_region
          _
        $region68: #{model_forward.1} parent=11 // pred_fallthru
          _
        // Predicated region
        $region69: #{model_forward.1} parent=11 // pred_check
          %p657 = pneg %p427
        $region70: #{model_forward.1} parent=11 // pred_check_branch
          %659 = sbr.rel (%p657) target = $region72
        $region71: #{model_forward.1} parent=11 // pred_region
          _
        $region72: #{model_forward.1} parent=11 // pred_fallthru
          _
        // Predicated region
        $region73: #{model_forward.1} parent=11 // pred_check
          %p660 = pneg %p448
        $region74: #{model_forward.1} parent=11 // pred_check_branch
          %662 = sbr.rel (%p660) target = $region76
        $region75: #{model_forward.1} parent=11 // pred_region
          _
        $region76: #{model_forward.1} parent=11 // pred_fallthru
          _
        // Predicated region
        $region77: #{model_forward.1} parent=11 // pred_check
          %p663 = pneg %p469
        $region78: #{model_forward.1} parent=11 // pred_check_branch
          %665 = sbr.rel (%p663) target = $region80
        $region79: #{model_forward.1} parent=11 // pred_region
          _
        $region80: #{model_forward.1} parent=11 // pred_fallthru
          _
        // Predicated region
        $region81: #{model_forward.1} parent=11 // pred_check
          %p666 = pneg %p490
        $region82: #{model_forward.1} parent=11 // pred_check_branch
          %668 = sbr.rel (%p666) target = $region84
        $region83: #{model_forward.1} parent=11 // pred_region
          _
        $region84: #{model_forward.1} parent=11 // pred_fallthru
          _
        // Predicated region
        $region85: #{model_forward.1} parent=11 // pred_check
          %p669 = pneg %p511
        $region86: #{model_forward.1} parent=11 // pred_check_branch
          %671 = sbr.rel (%p669) target = $region88
        $region87: #{model_forward.1} parent=11 // pred_region
          _
        $region88: #{model_forward.1} parent=11 // pred_fallthru
          _
        // Predicated region
        $region89: #{model_forward.1} parent=11 // pred_check
          %p672 = pneg %p532
        $region90: #{model_forward.1} parent=11 // pred_check_branch
          %674 = sbr.rel (%p672) target = $region92
        $region91: #{model_forward.1} parent=11 // pred_region
          _
        $region92: #{model_forward.1} parent=11 // pred_fallthru
          _
        // Predicated region
        $region93: #{model_forward.1} parent=11 // pred_check
          %p675 = pneg %p553
        $region94: #{model_forward.1} parent=11 // pred_check_branch
          %677 = sbr.rel (%p675) target = $region96
        $region95: #{model_forward.1} parent=11 // pred_region
          _
        $region96: #{model_forward.1} parent=11 // pred_fallthru
          _
        // Predicated region
        $region97: #{model_forward.1} parent=11 // pred_check
          %p678 = pneg %p574
        $region98: #{model_forward.1} parent=11 // pred_check_branch
          %680 = sbr.rel (%p678) target = $region100
        $region99: #{model_forward.1} parent=11 // pred_region
          _
        $region100: #{model_forward.1} parent=11 // pred_fallthru
          _
      $region12: #{model_forward.1} parent=5 // pred_fallthru
        _
      %p681 = scmp.lt.s32.totalorder %s34, 2
      // Predicated region
      $region101: #{model_forward.1} parent=5 // pred_check
        %p682 = pneg %p681
      $region102: #{model_forward.1} parent=5 // pred_check_branch
        %684 = sbr.rel (%p682) target = $region104
      $region103: #{model_forward.1} parent=5 // pred_region
        // Predicated region
        $region105: #{model_forward.1} parent=103 // pred_check
          %p685 = pneg %p54
        $region106: #{model_forward.1} parent=103 // pred_check_branch
          %687 = sbr.rel (%p685) target = $region108
        $region107: #{model_forward.1} parent=103 // pred_region
          %p688 = scmp.lt.s32.totalorder %s34, 1
          %s689 = scalar_select %p688, %s34, 1
          %s690 = smul.addr %s689, 8
          %s691 = scalar_lea.vmem %s0, %s690
        $region108: #{model_forward.1} parent=103 // pred_fallthru
          _
        // Predicated region
        $region109: #{model_forward.1} parent=103 // pred_check
          %p692 = pneg %p80
        $region110: #{model_forward.1} parent=103 // pred_check_branch
          %694 = sbr.rel (%p692) target = $region112
        $region111: #{model_forward.1} parent=103 // pred_region
          %p695 = scmp.lt.s32.totalorder %s34, 1
          %s696 = scalar_select %p695, %s34, 1
          %s697 = scalar_lea.vmem %s1, %s696
        $region112: #{model_forward.1} parent=103 // pred_fallthru
          _
        // Predicated region
        $region113: #{model_forward.1} parent=103 // pred_check
          %p698 = pneg %p106
        $region114: #{model_forward.1} parent=103 // pred_check_branch
          %700 = sbr.rel (%p698) target = $region116
        $region115: #{model_forward.1} parent=103 // pred_region
          %p701 = scmp.lt.s32.totalorder %s34, 1
          %s702 = scalar_select %p701, %s34, 1
          %s703 = smul.addr %s702, 8
          %s704 = scalar_lea.vmem %s2, %s703
        $region116: #{model_forward.1} parent=103 // pred_fallthru
          _
      $region104: #{model_forward.1} parent=5 // pred_fallthru
        _
      %p705 = scmp.le.s32.totalorder 1, %s34
      %p706 = scmp.lt.s32.totalorder %s34, 3
      %p707 = pnand %p705, %p706
      %p708 = pneg %p707
      // Predicated region
      $region117: #{model_forward.1} parent=5 // pred_check
        _
      $region118: #{model_forward.1} parent=5 // pred_check_branch
        %710 = sbr.rel (%p707) target = $region120
      $region119: #{model_forward.1} parent=5 // pred_region
        %s711 = ssub.s32 %s34, 1
        %p712 = scmp.lt.s32.totalorder %s39, 1
        %s713 = scalar_select %p712, %s39, 1
        %s714 = smul.addr %s713, 8
        %s715 = scalar_lea.vmem %s0, %s714
        %p716 = pneg %p60
        %p717 = pneg %p57
        %p718 = scmp.lt.s32.totalorder %s39, 1
        %s719 = scalar_select %p718, %s39, 1
        %s720 = scalar_lea.vmem %s1, %s719
        %p721 = pneg %p86
        %p722 = pneg %p83
        %p723 = scmp.lt.s32.totalorder %s39, 1
        %s724 = scalar_select %p723, %s39, 1
        %s725 = smul.addr %s724, 8
        %s726 = scalar_lea.vmem %s2, %s725
        %p727 = pneg %p112
        %p728 = pneg %p109
        %p729 = pneg %p133
        %p730 = pneg %p130
        %p731 = pneg %p154
        %p732 = pneg %p151
        %p733 = pneg %p175
        %p734 = pneg %p172
        %p735 = pneg %p196
        %p736 = pneg %p193
        %p737 = pneg %p217
        %p738 = pneg %p214
        %p739 = pneg %p238
        %p740 = pneg %p235
        %p741 = pneg %p259
        %p742 = pneg %p256
        %p743 = pneg %p280
        %p744 = pneg %p277
        %p745 = pneg %p301
        %p746 = pneg %p298
        %p747 = pneg %p322
        %p748 = pneg %p319
        %p749 = pneg %p343
        %p750 = pneg %p340
        %p751 = pneg %p364
        %p752 = pneg %p361
        %p753 = pneg %p385
        %p754 = pneg %p382
        %p755 = pneg %p406
        %p756 = pneg %p403
        %p757 = pneg %p427
        %p758 = pneg %p424
        %p759 = pneg %p448
        %p760 = pneg %p445
        %p761 = pneg %p469
        %p762 = pneg %p466
        %p763 = pneg %p490
        %p764 = pneg %p487
        %p765 = pneg %p511
        %p766 = pneg %p508
        %p767 = pneg %p532
        %p768 = pneg %p529
        %p769 = pneg %p553
        %p770 = pneg %p550
        %p771 = pneg %p574
        %p772 = pneg %p571
        %p773 = pneg %p600
        %p774 = pneg %p597
        %s775 = sand.u32 %s587, 1
        %s776 = scalar_lea.sflag [#allocation3], %s775
        %s777 = sand.u32 %s587, 1
        %s778 = scalar_lea.vmem [#allocation2], %s777
        %p779 = scmp.lt.s32.totalorder %s39, 1
        %s780 = scalar_select %p779, %s39, 1
        %s781 = smul.addr %s780, 8
        %s782 = scalar_lea.vmem %s0, %s781
        %p783 = scmp.lt.s32.totalorder %s39, 1
        %s784 = scalar_select %p783, %s39, 1
        %s785 = scalar_lea.vmem %s1, %s784
        %p786 = scmp.lt.s32.totalorder %s39, 1
        %s787 = scalar_select %p786, %s39, 1
        %s788 = smul.addr %s787, 8
        %s789 = scalar_lea.vmem %s2, %s788
        %v791 = vld [vmem:[%s782] sm:$0xff]
        %v792 = vld [vmem:[%s3] sm:$0x1]
        %v793 = vld [vmem:[%s4] sm:$0x1]
        %vm794 = vcmask 261120
        %v795 = vsel %vm794, %v791, 0.0
        %796 = vadd.xlane.f32.xlu0 %v795
        %v797 = vpop.xlane.xlu0 %796
        %v798 = vrcp.pop 32.0
        %v799 = vmul.f32 32.0, %v798
        %v800 = vsub.f32 1.0, %v799
        %v801 = vmul.f32 %v798, %v800
        %v802 = vadd.f32 %v798, %v801
        %vm803 = vweird.f32 %v798
        %v804 = vsel %vm803, %v798, %v802
        %v805 = vmul.f32 %v797, %v804
        %v806 = vsub.f32 %v791, %v805
        %v807 = vmul.f32 %v806, %v806
        %v808 = vsel %vm794, %v807, 0.0
        %809 = vadd.xlane.f32.xlu0 %v808
        %v810 = vpop.xlane.xlu0 %809
        %v811 = vmul.f32 %v810, %v804
        %v812 = vadd.f32 %v811, 1e-05
        %v813 = vrsqrt.pop %v812
        %v814 = vmul.f32 %v813, %v812
        %v815 = vmul.f32 %v814, %v813
        %v816 = vmul.f32 0.5, %v815
        %v817 = vsub.f32 1.5, %v816
        %v818 = vmul.f32 %v813, %v817
        %vm819 = vweird.f32 %v812
        %vm820 = vweird.f32 %v813
        %vm821 = vmor %vm819, %vm820
        %v822 = vsel %vm821, %v813, %v818
        %v823 = vmul.f32 %v806, %v822
        %v825 = vperm.slane %v792, 0
        %v827 = vmul.f32 %v823, %v825
        %v829 = vperm.slane %v793, 0
        %v831 = vadd.f32 %v827, %v829
        %v832 = vld [vmem:[%s785] sm:$0x1]
        %v833 = vcvt.s32.f32 %v832
        %v834 = vsub.f32 1.0, %v833
        %v835 = vmul.f32 %v834, -1e+09
        %v836 = vpack.c.bf16 %v831, %v831
        %v837 = vld [vmem:[%s5] sm:$0xf]
        %v838 = vld [vmem:[%s5 + $0x4] sm:$0xf]
        %v839 = vld [vmem:[%s5 + $0x8] sm:$0xf]
        %v840 = vld [vmem:[%s5 + $0xc] sm:$0xf]
        %v841 = vld [vmem:[%s5 + $0x10] sm:$0xf]
        %v842 = vld [vmem:[%s5 + $0x14] sm:$0xf]
        %v843 = vld [vmem:[%s5 + $0x18] sm:$0xf]
        %v844 = vld [vmem:[%s5 + $0x1c] sm:$0xf]
        %v845 = vld [vmem:[%s5 + $0x20] sm:$0xf]
        %v846 = vld [vmem:[%s5 + $0x24] sm:$0xf]
        %v847 = vld [vmem:[%s5 + $0x28] sm:$0xf]
        %v848 = vld [vmem:[%s5 + $0x2c] sm:$0xf]
        %v849 = vld [vmem:[%s5 + $0x30] sm:$0xf]
        %v850 = vld [vmem:[%s5 + $0x34] sm:$0xf]
        %v851 = vld [vmem:[%s5 + $0x38] sm:$0xf]
        %v852 = vld [vmem:[%s5 + $0x3c] sm:$0xf]
        %v853 = vld [vmem:[%s8] sm:$0x1]
        %v854 = vld [vmem:[%s8 + $0x1] sm:$0x1]
        %v855 = vld [vmem:[%s8 + $0x2] sm:$0x1]
        %v856 = vld [vmem:[%s8 + $0x3] sm:$0x1]
        %v861 = vperm.slane %v853, 0
        %v862 = vperm.slane %v854, 0
        %v863 = vperm.slane %v855, 0
        %v864 = vperm.slane %v856, 0
        %v873 = vunpack.c.l.b16 %v837
        %v874 = vunpack.c.l.b16 %v838
        %v875 = vunpack.c.l.b16 %v839
        %v876 = vunpack.c.l.b16 %v840
        %v877 = vpack.c.b16 %v874, %v873
        %v878 = vpack.c.b16 %v876, %v875
        %v882 = vsel %vm794, %v836, 0
        %884 = vmatpush.bf16.msra.mxu0 0
        %885 = vmatpush.bf16.msra.mxu0 0
        %886 = vmatpush.bf16.msra.mxu0 0
        %887 = vmatpush.bf16.msra.mxu0 0
        %888 = vmatpush.bf16.msra.mxu0 0
        %889 = vmatpush.bf16.msra.mxu0 0
        %890 = vmatpush.bf16.msra.mxu0 %v878
        %891 = vmatpush.bf16.msra.mxu0 %v877
        %892 = vmatmul.bf16.gmra.mxu0 %v882
        %v893 = vpop.f32.mrf.mxu0
        %v894 = vadd.f32 %v861, %v893
        %v895 = vpop.f32.mrf.mxu0
        %896 = vdwg.mxu0
        %v901 = vunpack.c.l.b16 %v841
        %v902 = vunpack.c.l.b16 %v842
        %v903 = vunpack.c.l.b16 %v843
        %v904 = vunpack.c.l.b16 %v844
        %v905 = vpack.c.b16 %v902, %v901
        %v906 = vpack.c.b16 %v904, %v903
        %909 = vmatpush.bf16.msra.mxu0 0
        %910 = vmatpush.bf16.msra.mxu0 0
        %911 = vmatpush.bf16.msra.mxu0 0
        %912 = vmatpush.bf16.msra.mxu0 0
        %913 = vmatpush.bf16.msra.mxu0 0
        %914 = vmatpush.bf16.msra.mxu0 0
        %915 = vmatpush.bf16.msra.mxu0 %v906
        %916 = vmatpush.bf16.msra.mxu0 %v905
        %917 = vmatmul.bf16.gmra.mxu0 %v882
        %v918 = vpop.f32.mrf.mxu0
        %v919 = vadd.f32 %v862, %v918
        %v920 = vpop.f32.mrf.mxu0
        %921 = vdwg.mxu0
        %v926 = vunpack.c.l.b16 %v845
        %v927 = vunpack.c.l.b16 %v846
        %v928 = vunpack.c.l.b16 %v847
        %v929 = vunpack.c.l.b16 %v848
        %v930 = vpack.c.b16 %v927, %v926
        %v931 = vpack.c.b16 %v929, %v928
        %934 = vmatpush.bf16.msra.mxu0 0
        %935 = vmatpush.bf16.msra.mxu0 0
        %936 = vmatpush.bf16.msra.mxu0 0
        %937 = vmatpush.bf16.msra.mxu0 0
        %938 = vmatpush.bf16.msra.mxu0 0
        %939 = vmatpush.bf16.msra.mxu0 0
        %940 = vmatpush.bf16.msra.mxu0 %v931
        %941 = vmatpush.bf16.msra.mxu0 %v930
        %942 = vmatmul.bf16.gmra.mxu0 %v882
        %v943 = vpop.f32.mrf.mxu0
        %v944 = vadd.f32 %v863, %v943
        %v945 = vpop.f32.mrf.mxu0
        %946 = vdwg.mxu0
        %v951 = vunpack.c.l.b16 %v849
        %v952 = vunpack.c.l.b16 %v850
        %v953 = vunpack.c.l.b16 %v851
        %v954 = vunpack.c.l.b16 %v852
        %v955 = vpack.c.b16 %v952, %v951
        %v956 = vpack.c.b16 %v954, %v953
        %959 = vmatpush.bf16.msra.mxu0 0
        %960 = vmatpush.bf16.msra.mxu0 0
        %961 = vmatpush.bf16.msra.mxu0 0
        %962 = vmatpush.bf16.msra.mxu0 0
        %963 = vmatpush.bf16.msra.mxu0 0
        %964 = vmatpush.bf16.msra.mxu0 0
        %965 = vmatpush.bf16.msra.mxu0 %v956
        %966 = vmatpush.bf16.msra.mxu0 %v955
        %967 = vmatmul.bf16.gmra.mxu0 %v882
        %v968 = vpop.f32.mrf.mxu0
        %v969 = vadd.f32 %v864, %v968
        %v970 = vpop.f32.mrf.mxu0
        %971 = vdwg.mxu0
        %v972 = vld [vmem:[%s6] sm:$0xf]
        %v973 = vld [vmem:[%s6 + $0x4] sm:$0xf]
        %v974 = vld [vmem:[%s6 + $0x8] sm:$0xf]
        %v975 = vld [vmem:[%s6 + $0xc] sm:$0xf]
        %v976 = vld [vmem:[%s6 + $0x10] sm:$0xf]
        %v977 = vld [vmem:[%s6 + $0x14] sm:$0xf]
        %v978 = vld [vmem:[%s6 + $0x18] sm:$0xf]
        %v979 = vld [vmem:[%s6 + $0x1c] sm:$0xf]
        %v980 = vld [vmem:[%s6 + $0x20] sm:$0xf]
        %v981 = vld [vmem:[%s6 + $0x24] sm:$0xf]
        %v982 = vld [vmem:[%s6 + $0x28] sm:$0xf]
        %v983 = vld [vmem:[%s6 + $0x2c] sm:$0xf]
        %v984 = vld [vmem:[%s6 + $0x30] sm:$0xf]
        %v985 = vld [vmem:[%s6 + $0x34] sm:$0xf]
        %v986 = vld [vmem:[%s6 + $0x38] sm:$0xf]
        %v987 = vld [vmem:[%s6 + $0x3c] sm:$0xf]
        %v988 = vld [vmem:[%s9] sm:$0x1]
        %v989 = vld [vmem:[%s9 + $0x1] sm:$0x1]
        %v990 = vld [vmem:[%s9 + $0x2] sm:$0x1]
        %v991 = vld [vmem:[%s9 + $0x3] sm:$0x1]
        %v996 = vperm.slane %v988, 0
        %v997 = vperm.slane %v989, 0
        %v998 = vperm.slane %v990, 0
        %v999 = vperm.slane %v991, 0
        %v1008 = vunpack.c.l.b16 %v972
        %v1009 = vunpack.c.l.b16 %v973
        %v1010 = vunpack.c.l.b16 %v974
        %v1011 = vunpack.c.l.b16 %v975
        %v1012 = vpack.c.b16 %v1009, %v1008
        %v1013 = vpack.c.b16 %v1011, %v1010
        %1016 = vmatpush.bf16.msra.mxu0 0
        %1017 = vmatpush.bf16.msra.mxu0 0
        %1018 = vmatpush.bf16.msra.mxu0 0
        %1019 = vmatpush.bf16.msra.mxu0 0
        %1020 = vmatpush.bf16.msra.mxu0 0
        %1021 = vmatpush.bf16.msra.mxu0 0
        %1022 = vmatpush.bf16.msra.mxu0 %v1013
        %1023 = vmatpush.bf16.msra.mxu0 %v1012
        %1024 = vmatmul.bf16.gmra.mxu0 %v882
        %v1025 = vpop.f32.mrf.mxu0
        %v1026 = vadd.f32 %v996, %v1025
        %v1027 = vpop.f32.mrf.mxu0
        %1028 = vdwg.mxu0
        %v1033 = vunpack.c.l.b16 %v976
        %v1034 = vunpack.c.l.b16 %v977
        %v1035 = vunpack.c.l.b16 %v978
        %v1036 = vunpack.c.l.b16 %v979
        %v1037 = vpack.c.b16 %v1034, %v1033
        %v1038 = vpack.c.b16 %v1036, %v1035
        %1041 = vmatpush.bf16.msra.mxu0 0
        %1042 = vmatpush.bf16.msra.mxu0 0
        %1043 = vmatpush.bf16.msra.mxu0 0
        %1044 = vmatpush.bf16.msra.mxu0 0
        %1045 = vmatpush.bf16.msra.mxu0 0
        %1046 = vmatpush.bf16.msra.mxu0 0
        %1047 = vmatpush.bf16.msra.mxu0 %v1038
        %1048 = vmatpush.bf16.msra.mxu0 %v1037
        %1049 = vmatmul.bf16.gmra.mxu0 %v882
        %v1050 = vpop.f32.mrf.mxu0
        %v1051 = vadd.f32 %v997, %v1050
        %v1052 = vpop.f32.mrf.mxu0
        %1053 = vdwg.mxu0
        %v1058 = vunpack.c.l.b16 %v980
        %v1059 = vunpack.c.l.b16 %v981
        %v1060 = vunpack.c.l.b16 %v982
        %v1061 = vunpack.c.l.b16 %v983
        %v1062 = vpack.c.b16 %v1059, %v1058
        %v1063 = vpack.c.b16 %v1061, %v1060
        %1066 = vmatpush.bf16.msra.mxu0 0
        %1067 = vmatpush.bf16.msra.mxu0 0
        %1068 = vmatpush.bf16.msra.mxu0 0
        %1069 = vmatpush.bf16.msra.mxu0 0
        %1070 = vmatpush.bf16.msra.mxu0 0
        %1071 = vmatpush.bf16.msra.mxu0 0
        %1072 = vmatpush.bf16.msra.mxu0 %v1063
        %1073 = vmatpush.bf16.msra.mxu0 %v1062
        %1074 = vmatmul.bf16.gmra.mxu0 %v882
        %v1075 = vpop.f32.mrf.mxu0
        %v1076 = vadd.f32 %v998, %v1075
        %v1077 = vpop.f32.mrf.mxu0
        %1078 = vdwg.mxu0
        %v1083 = vunpack.c.l.b16 %v984
        %v1084 = vunpack.c.l.b16 %v985
        %v1085 = vunpack.c.l.b16 %v986
        %v1086 = vunpack.c.l.b16 %v987
        %v1087 = vpack.c.b16 %v1084, %v1083
        %v1088 = vpack.c.b16 %v1086, %v1085
        %1091 = vmatpush.bf16.msra.mxu0 0
        %1092 = vmatpush.bf16.msra.mxu0 0
        %1093 = vmatpush.bf16.msra.mxu0 0
        %1094 = vmatpush.bf16.msra.mxu0 0
        %1095 = vmatpush.bf16.msra.mxu0 0
        %1096 = vmatpush.bf16.msra.mxu0 0
        %1097 = vmatpush.bf16.msra.mxu0 %v1088
        %1098 = vmatpush.bf16.msra.mxu0 %v1087
        %1099 = vmatmul.bf16.gmra.mxu0 %v882
        %v1100 = vpop.f32.mrf.mxu0
        %v1101 = vadd.f32 %v999, %v1100
        %v1102 = vpop.f32.mrf.mxu0
        %1103 = vdwg.mxu0
        %v1104 = vld [vmem:[%s7] sm:$0xf]
        %v1105 = vld [vmem:[%s7 + $0x4] sm:$0xf]
        %v1106 = vld [vmem:[%s7 + $0x8] sm:$0xf]
        %v1107 = vld [vmem:[%s7 + $0xc] sm:$0xf]
        %v1108 = vld [vmem:[%s7 + $0x10] sm:$0xf]
        %v1109 = vld [vmem:[%s7 + $0x14] sm:$0xf]
        %v1110 = vld [vmem:[%s7 + $0x18] sm:$0xf]
        %v1111 = vld [vmem:[%s7 + $0x1c] sm:$0xf]
        %v1112 = vld [vmem:[%s7 + $0x20] sm:$0xf]
        %v1113 = vld [vmem:[%s7 + $0x24] sm:$0xf]
        %v1114 = vld [vmem:[%s7 + $0x28] sm:$0xf]
        %v1115 = vld [vmem:[%s7 + $0x2c] sm:$0xf]
        %v1116 = vld [vmem:[%s7 + $0x30] sm:$0xf]
        %v1117 = vld [vmem:[%s7 + $0x34] sm:$0xf]
        %v1118 = vld [vmem:[%s7 + $0x38] sm:$0xf]
        %v1119 = vld [vmem:[%s7 + $0x3c] sm:$0xf]
        %v1120 = vld [vmem:[%s10] sm:$0x1]
        %v1121 = vld [vmem:[%s10 + $0x1] sm:$0x1]
        %v1122 = vld [vmem:[%s10 + $0x2] sm:$0x1]
        %v1123 = vld [vmem:[%s10 + $0x3] sm:$0x1]
        %v1128 = vperm.slane %v1120, 0
        %v1129 = vperm.slane %v1121, 0
        %v1130 = vperm.slane %v1122, 0
        %v1131 = vperm.slane %v1123, 0
        %v1140 = vunpack.c.l.b16 %v1104
        %v1141 = vunpack.c.l.b16 %v1105
        %v1142 = vunpack.c.l.b16 %v1106
        %v1143 = vunpack.c.l.b16 %v1107
        %v1144 = vpack.c.b16 %v1141, %v1140
        %v1145 = vpack.c.b16 %v1143, %v1142
        %1148 = vmatpush.bf16.msra.mxu0 0
        %1149 = vmatpush.bf16.msra.mxu0 0
        %1150 = vmatpush.bf16.msra.mxu0 0
        %1151 = vmatpush.bf16.msra.mxu0 0
        %1152 = vmatpush.bf16.msra.mxu0 0
        %1153 = vmatpush.bf16.msra.mxu0 0
        %1154 = vmatpush.bf16.msra.mxu0 %v1145
        %1155 = vmatpush.bf16.msra.mxu0 %v1144
        %1156 = vmatmul.bf16.gmra.mxu0 %v882
        %v1157 = vpop.f32.mrf.mxu0
        %v1158 = vadd.f32 %v1128, %v1157
        %v1159 = vpop.f32.mrf.mxu0
        %1160 = vdwg.mxu0
        %v1165 = vunpack.c.l.b16 %v1108
        %v1166 = vunpack.c.l.b16 %v1109
        %v1167 = vunpack.c.l.b16 %v1110
        %v1168 = vunpack.c.l.b16 %v1111
        %v1169 = vpack.c.b16 %v1166, %v1165
        %v1170 = vpack.c.b16 %v1168, %v1167
        %1173 = vmatpush.bf16.msra.mxu0 0
        %1174 = vmatpush.bf16.msra.mxu0 0
        %1175 = vmatpush.bf16.msra.mxu0 0
        %1176 = vmatpush.bf16.msra.mxu0 0
        %1177 = vmatpush.bf16.msra.mxu0 0
        %1178 = vmatpush.bf16.msra.mxu0 0
        %1179 = vmatpush.bf16.msra.mxu0 %v1170
        %1180 = vmatpush.bf16.msra.mxu0 %v1169
        %1181 = vmatmul.bf16.gmra.mxu0 %v882
        %v1182 = vpop.f32.mrf.mxu0
        %v1183 = vadd.f32 %v1129, %v1182
        %v1184 = vpop.f32.mrf.mxu0
        %1185 = vdwg.mxu0
        %v1190 = vunpack.c.l.b16 %v1112
        %v1191 = vunpack.c.l.b16 %v1113
        %v1192 = vunpack.c.l.b16 %v1114
        %v1193 = vunpack.c.l.b16 %v1115
        %v1194 = vpack.c.b16 %v1191, %v1190
        %v1195 = vpack.c.b16 %v1193, %v1192
        %1198 = vmatpush.bf16.msra.mxu0 0
        %1199 = vmatpush.bf16.msra.mxu0 0
        %1200 = vmatpush.bf16.msra.mxu0 0
        %1201 = vmatpush.bf16.msra.mxu0 0
        %1202 = vmatpush.bf16.msra.mxu0 0
        %1203 = vmatpush.bf16.msra.mxu0 0
        %1204 = vmatpush.bf16.msra.mxu0 %v1195
        %1205 = vmatpush.bf16.msra.mxu0 %v1194
        %1206 = vmatmul.bf16.gmra.mxu0 %v882
        %v1207 = vpop.f32.mrf.mxu0
        %v1208 = vadd.f32 %v1130, %v1207
        %v1209 = vpop.f32.mrf.mxu0
        %1210 = vdwg.mxu0
        %v1215 = vunpack.c.l.b16 %v1116
        %v1216 = vunpack.c.l.b16 %v1117
        %v1217 = vunpack.c.l.b16 %v1118
        %v1218 = vunpack.c.l.b16 %v1119
        %v1219 = vpack.c.b16 %v1216, %v1215
        %v1220 = vpack.c.b16 %v1218, %v1217
        %1223 = vmatpush.bf16.msra.mxu0 0
        %1224 = vmatpush.bf16.msra.mxu0 0
        %1225 = vmatpush.bf16.msra.mxu0 0
        %1226 = vmatpush.bf16.msra.mxu0 0
        %1227 = vmatpush.bf16.msra.mxu0 0
        %1228 = vmatpush.bf16.msra.mxu0 0
        %1229 = vmatpush.bf16.msra.mxu0 %v1220
        %1230 = vmatpush.bf16.msra.mxu0 %v1219
        %1231 = vmatmul.bf16.gmra.mxu0 %v882
        %v1232 = vpop.f32.mrf.mxu0
        %v1233 = vadd.f32 %v1131, %v1232
        %v1234 = vpop.f32.mrf.mxu0
        %1235 = vdwg.mxu0
        %v1236 = vpack.c.bf16 %v894, %v894
        %v1237 = vpack.c.bf16 %v919, %v919
        %v1238 = vpack.c.bf16 %v944, %v944
        %v1239 = vpack.c.bf16 %v969, %v969
        %v1240 = vpack.c.bf16 %v1026, %v1026
        %v1241 = vpack.c.bf16 %v1051, %v1051
        %v1242 = vpack.c.bf16 %v1076, %v1076
        %v1243 = vpack.c.bf16 %v1101, %v1101
        %v1245 = vperm.slane %v835, 0
        %vm1247 = vcmask 64512
        %v1249 = vsel %vm1247, %v1236, 0
        %v1252 = vsel %vm1247, %v1240, 0
        %1254 = vmatpush.bf16.xpose.msra.mxu0 0
        %1255 = vmatpush.bf16.xpose.msra.mxu0 0
        %1256 = vmatpush.bf16.xpose.msra.mxu0 0
        %1257 = vmatpush.bf16.xpose.msra.mxu0 0
        %1258 = vmatpush.bf16.xpose.msra.mxu0 0
        %1259 = vmatpush.bf16.xpose.msra.mxu0 0
        %1260 = vmatpush.bf16.xpose.msra.mxu0 0
        %1261 = vmatpush.bf16.xpose.msra.mxu0 %v1252
        %1262 = vmatmul.bf16.gmra.mxu0 %v1249
        %v1263 = vpop.f32.mrf.mxu0
        %v1264 = vadd.f32 %v1245, %v1263
        %v1265 = vpop.f32.mrf.mxu0
        %1266 = vdwg.mxu0
        %v1268 = vsel %vm1247, %v1237, 0
        %v1271 = vsel %vm1247, %v1241, 0
        %1273 = vmatpush.bf16.xpose.msra.mxu0 0
        %1274 = vmatpush.bf16.xpose.msra.mxu0 0
        %1275 = vmatpush.bf16.xpose.msra.mxu0 0
        %1276 = vmatpush.bf16.xpose.msra.mxu0 0
        %1277 = vmatpush.bf16.xpose.msra.mxu0 0
        %1278 = vmatpush.bf16.xpose.msra.mxu0 0
        %1279 = vmatpush.bf16.xpose.msra.mxu0 0
        %1280 = vmatpush.bf16.xpose.msra.mxu0 %v1271
        %1281 = vmatmul.bf16.gmra.mxu0 %v1268
        %v1282 = vpop.f32.mrf.mxu0
        %v1283 = vadd.f32 %v1245, %v1282
        %v1284 = vpop.f32.mrf.mxu0
        %1285 = vdwg.mxu0
        %v1287 = vsel %vm1247, %v1238, 0
        %v1290 = vsel %vm1247, %v1242, 0
        %1292 = vmatpush.bf16.xpose.msra.mxu0 0
        %1293 = vmatpush.bf16.xpose.msra.mxu0 0
        %1294 = vmatpush.bf16.xpose.msra.mxu0 0
        %1295 = vmatpush.bf16.xpose.msra.mxu0 0
        %1296 = vmatpush.bf16.xpose.msra.mxu0 0
        %1297 = vmatpush.bf16.xpose.msra.mxu0 0
        %1298 = vmatpush.bf16.xpose.msra.mxu0 0
        %1299 = vmatpush.bf16.xpose.msra.mxu0 %v1290
        %1300 = vmatmul.bf16.gmra.mxu0 %v1287
        %v1301 = vpop.f32.mrf.mxu0
        %v1302 = vadd.f32 %v1245, %v1301
        %v1303 = vpop.f32.mrf.mxu0
        %1304 = vdwg.mxu0
        %v1306 = vsel %vm1247, %v1239, 0
        %v1309 = vsel %vm1247, %v1243, 0
        %1311 = vmatpush.bf16.xpose.msra.mxu0 0
        %1312 = vmatpush.bf16.xpose.msra.mxu0 0
        %1313 = vmatpush.bf16.xpose.msra.mxu0 0
        %1314 = vmatpush.bf16.xpose.msra.mxu0 0
        %1315 = vmatpush.bf16.xpose.msra.mxu0 0
        %1316 = vmatpush.bf16.xpose.msra.mxu0 0
        %1317 = vmatpush.bf16.xpose.msra.mxu0 0
        %1318 = vmatpush.bf16.xpose.msra.mxu0 %v1309
        %1319 = vmatmul.bf16.gmra.mxu0 %v1306
        %v1320 = vpop.f32.mrf.mxu0
        %v1321 = vadd.f32 %v1245, %v1320
        %v1322 = vpop.f32.mrf.mxu0
        %1323 = vdwg.mxu0
        %v1324 = vsel %vm1247, %v1264, -inf
        %1325 = vmax.xlane.f32.xlu0 %v1324
        %v1326 = vpop.xlane.xlu0 %1325
        %v1327 = vsel %vm1247, %v1283, -inf
        %1328 = vmax.xlane.f32.xlu0 %v1327
        %v1329 = vpop.xlane.xlu0 %1328
        %v1330 = vsel %vm1247, %v1302, -inf
        %1331 = vmax.xlane.f32.xlu0 %v1330
        %v1332 = vpop.xlane.xlu0 %1331
        %v1333 = vsel %vm1247, %v1321, -inf
        %1334 = vmax.xlane.f32.xlu0 %v1333
        %v1335 = vpop.xlane.xlu0 %1334
        %v1336 = vsub.f32 %v1264, %v1326
        %v1337 = vsub.f32 %v1283, %v1329
        %v1338 = vsub.f32 %v1302, %v1332
        %v1339 = vsub.f32 %v1321, %v1335
        %v1340 = vmul.f32 %v1336, 1.442695
        %v1341 = vpow.pop %v1340
        %v1342 = vmul.f32 %v1337, 1.442695
        %v1343 = vpow.pop %v1342
        %v1344 = vmul.f32 %v1338, 1.442695
        %v1345 = vpow.pop %v1344
        %v1346 = vmul.f32 %v1339, 1.442695
        %v1347 = vpow.pop %v1346
        %v1348 = vsel %vm1247, %v1341, 0.0
        %1349 = vadd.xlane.f32.xlu0 %v1348
        %v1350 = vpop.xlane.xlu0 %1349
        %v1351 = vsel %vm1247, %v1343, 0.0
        %1352 = vadd.xlane.f32.xlu0 %v1351
        %v1353 = vpop.xlane.xlu0 %1352
        %v1354 = vsel %vm1247, %v1345, 0.0
        %1355 = vadd.xlane.f32.xlu0 %v1354
        %v1356 = vpop.xlane.xlu0 %1355
        %v1357 = vsel %vm1247, %v1347, 0.0
        %1358 = vadd.xlane.f32.xlu0 %v1357
        %v1359 = vpop.xlane.xlu0 %1358
        %v1360 = vrcp.pop %v1350
        %v1361 = vrcp.pop %v1353
        %v1362 = vrcp.pop %v1356
        %v1363 = vrcp.pop %v1359
        %v1364 = vmul.f32 %v1341, %v1360
        %v1365 = vmul.f32 %v1343, %v1361
        %v1366 = vmul.f32 %v1345, %v1362
        %v1367 = vmul.f32 %v1347, %v1363
        %v1368 = vpack.c.bf16 %v1364, %v1364
        %v1369 = vpack.c.bf16 %v1365, %v1365
        %v1370 = vpack.c.bf16 %v1366, %v1366
        %v1371 = vpack.c.bf16 %v1367, %v1367
        %v1372 = vpack.c.bf16 %v1158, %v1158
        %v1373 = vpack.c.bf16 %v1183, %v1183
        %v1374 = vpack.c.bf16 %v1208, %v1208
        %v1375 = vpack.c.bf16 %v1233, %v1233
        %v1377 = vsel %vm1247, %v1368, 0
        %vm1379 = vcmask 1043456
        %v1381 = vsel %vm1379, %v1372, 0
        %1383 = vmatpush.bf16.msra.mxu0 0
        %1384 = vmatpush.bf16.msra.mxu0 0
        %1385 = vmatpush.bf16.msra.mxu0 0
        %1386 = vmatpush.bf16.msra.mxu0 0
        %1387 = vmatpush.bf16.msra.mxu0 0
        %1388 = vmatpush.bf16.msra.mxu0 0
        %1389 = vmatpush.bf16.msra.mxu0 0
        %1390 = vmatpush.bf16.msra.mxu0 %v1381
        %1391 = vmatmul.bf16.gmra.mxu0 %v1377
        %v1392 = vpop.f32.mrf.mxu0
        %v1393 = vadd.f32 0.0, %v1392
        %v1394 = vpop.f32.mrf.mxu0
        %1395 = vdwg.mxu0
        %v1397 = vsel %vm1247, %v1369, 0
        %v1400 = vsel %vm1379, %v1373, 0
        %1402 = vmatpush.bf16.msra.mxu0 0
        %1403 = vmatpush.bf16.msra.mxu0 0
        %1404 = vmatpush.bf16.msra.mxu0 0
        %1405 = vmatpush.bf16.msra.mxu0 0
        %1406 = vmatpush.bf16.msra.mxu0 0
        %1407 = vmatpush.bf16.msra.mxu0 0
        %1408 = vmatpush.bf16.msra.mxu0 0
        %1409 = vmatpush.bf16.msra.mxu0 %v1400
        %1410 = vmatmul.bf16.gmra.mxu0 %v1397
        %v1411 = vpop.f32.mrf.mxu0
        %v1412 = vadd.f32 0.0, %v1411
        %v1413 = vpop.f32.mrf.mxu0
        %1414 = vdwg.mxu0
        %v1416 = vsel %vm1247, %v1370, 0
        %v1419 = vsel %vm1379, %v1374, 0
        %1421 = vmatpush.bf16.msra.mxu0 0
        %1422 = vmatpush.bf16.msra.mxu0 0
        %1423 = vmatpush.bf16.msra.mxu0 0
        %1424 = vmatpush.bf16.msra.mxu0 0
        %1425 = vmatpush.bf16.msra.mxu0 0
        %1426 = vmatpush.bf16.msra.mxu0 0
        %1427 = vmatpush.bf16.msra.mxu0 0
        %1428 = vmatpush.bf16.msra.mxu0 %v1419
        %1429 = vmatmul.bf16.gmra.mxu0 %v1416
        %v1430 = vpop.f32.mrf.mxu0
        %v1431 = vadd.f32 0.0, %v1430
        %v1432 = vpop.f32.mrf.mxu0
        %1433 = vdwg.mxu0
        %v1435 = vsel %vm1247, %v1371, 0
        %v1438 = vsel %vm1379, %v1375, 0
        %1440 = vmatpush.bf16.msra.mxu0 0
        %1441 = vmatpush.bf16.msra.mxu0 0
        %1442 = vmatpush.bf16.msra.mxu0 0
        %1443 = vmatpush.bf16.msra.mxu0 0
        %1444 = vmatpush.bf16.msra.mxu0 0
        %1445 = vmatpush.bf16.msra.mxu0 0
        %1446 = vmatpush.bf16.msra.mxu0 0
        %1447 = vmatpush.bf16.msra.mxu0 %v1438
        %1448 = vmatmul.bf16.gmra.mxu0 %v1435
        %v1449 = vpop.f32.mrf.mxu0
        %v1450 = vadd.f32 0.0, %v1449
        %v1451 = vpop.f32.mrf.mxu0
        %1452 = vdwg.mxu0
        %v1453 = vpack.c.bf16 %v1393, %v1393
        %v1454 = vpack.c.bf16 %v1412, %v1412
        %v1455 = vpack.c.bf16 %v1431, %v1431
        %v1456 = vpack.c.bf16 %v1450, %v1450
        %v1457 = vld [vmem:[%s11] sm:$0xf]
        %v1458 = vld [vmem:[%s11 + $0x4] sm:$0xf]
        %v1459 = vld [vmem:[%s11 + $0x8] sm:$0xf]
        %v1460 = vld [vmem:[%s11 + $0xc] sm:$0xf]
        %v1462 = vsel %vm1247, %v1453, 0
        %v1465 = vsel %vm1379, %v1457, 0
        %1467 = vmatpush.bf16.msra.mxu0 0
        %1468 = vmatpush.bf16.msra.mxu0 0
        %1469 = vmatpush.bf16.msra.mxu0 0
        %1470 = vmatpush.bf16.msra.mxu0 0
        %1471 = vmatpush.bf16.msra.mxu0 0
        %1472 = vmatpush.bf16.msra.mxu0 0
        %1473 = vmatpush.bf16.msra.mxu0 0
        %1474 = vmatpush.bf16.msra.mxu0 %v1465
        %1475 = vmatmul.bf16.gmra.mxu0 %v1462
        %v1476 = vpop.f32.mrf.mxu0
        %v1477 = vadd.f32 0.0, %v1476
        %v1478 = vpop.f32.mrf.mxu0
        %1479 = vdwg.mxu0
        %v1481 = vsel %vm1247, %v1454, 0
        %v1484 = vsel %vm1379, %v1458, 0
        %1486 = vmatpush.bf16.msra.mxu0 0
        %1487 = vmatpush.bf16.msra.mxu0 0
        %1488 = vmatpush.bf16.msra.mxu0 0
        %1489 = vmatpush.bf16.msra.mxu0 0
        %1490 = vmatpush.bf16.msra.mxu0 0
        %1491 = vmatpush.bf16.msra.mxu0 0
        %1492 = vmatpush.bf16.msra.mxu0 0
        %1493 = vmatpush.bf16.msra.mxu0 %v1484
        %1494 = vmatmul.bf16.gmra.mxu0 %v1481
        %v1495 = vpop.f32.mrf.mxu0
        %v1496 = vadd.f32 0.0, %v1495
        %v1497 = vpop.f32.mrf.mxu0
        %1498 = vdwg.mxu0
        %v1500 = vsel %vm1247, %v1455, 0
        %v1503 = vsel %vm1379, %v1459, 0
        %1505 = vmatpush.bf16.msra.mxu0 0
        %1506 = vmatpush.bf16.msra.mxu0 0
        %1507 = vmatpush.bf16.msra.mxu0 0
        %1508 = vmatpush.bf16.msra.mxu0 0
        %1509 = vmatpush.bf16.msra.mxu0 0
        %1510 = vmatpush.bf16.msra.mxu0 0
        %1511 = vmatpush.bf16.msra.mxu0 0
        %1512 = vmatpush.bf16.msra.mxu0 %v1503
        %1513 = vmatmul.bf16.gmra.mxu0 %v1500
        %v1514 = vpop.f32.mrf.mxu0
        %v1515 = vadd.f32 0.0, %v1514
        %v1516 = vpop.f32.mrf.mxu0
        %1517 = vdwg.mxu0
        %v1519 = vsel %vm1247, %v1456, 0
        %v1522 = vsel %vm1379, %v1460, 0
        %1524 = vmatpush.bf16.msra.mxu0 0
        %1525 = vmatpush.bf16.msra.mxu0 0
        %1526 = vmatpush.bf16.msra.mxu0 0
        %1527 = vmatpush.bf16.msra.mxu0 0
        %1528 = vmatpush.bf16.msra.mxu0 0
        %1529 = vmatpush.bf16.msra.mxu0 0
        %1530 = vmatpush.bf16.msra.mxu0 0
        %1531 = vmatpush.bf16.msra.mxu0 %v1522
        %1532 = vmatmul.bf16.gmra.mxu0 %v1519
        %v1533 = vpop.f32.mrf.mxu0
        %v1534 = vadd.f32 0.0, %v1533
        %v1535 = vpop.f32.mrf.mxu0
        %1536 = vdwg.mxu0
        %v1537 = vsel %vm794, %v1477, 0.0
        %v1538 = vsel %vm794, %v1496, 0.0
        %v1539 = vadd.f32 %v1537, %v1538
        %v1540 = vsel %vm794, %v1515, 0.0
        %v1541 = vadd.f32 %v1539, %v1540
        %v1542 = vsel %vm794, %v1534, 0.0
        %v1543 = vadd.f32 %v1541, %v1542
        %v1544 = vld [vmem:[%s12] sm:$0x1]
        %v1546 = vperm.slane %v1544, 0
        %v1548 = vadd.f32 %v1543, %v1546
        %v1549 = vadd.f32 %v1548, %v831
        %v1550 = vld [vmem:[%s13] sm:$0x1]
        %v1551 = vld [vmem:[%s14] sm:$0x1]
        %v1552 = vsel %vm794, %v1549, 0.0
        %1553 = vadd.xlane.f32.xlu0 %v1552
        %v1554 = vpop.xlane.xlu0 %1553
        %v1555 = vmul.f32 %v1554, %v804
        %v1556 = vsub.f32 %v1549, %v1555
        %v1557 = vmul.f32 %v1556, %v1556
        %v1558 = vsel %vm794, %v1557, 0.0
        %1559 = vadd.xlane.f32.xlu0 %v1558
        %v1560 = vpop.xlane.xlu0 %1559
        %v1561 = vmul.f32 %v1560, %v804
        %v1562 = vadd.f32 %v1561, 1e-05
        %v1563 = vrsqrt.pop %v1562
        %v1564 = vmul.f32 %v1563, %v1562
        %v1565 = vmul.f32 %v1564, %v1563
        %v1566 = vmul.f32 0.5, %v1565
        %v1567 = vsub.f32 1.5, %v1566
        %v1568 = vmul.f32 %v1563, %v1567
        %vm1569 = vweird.f32 %v1562
        %vm1570 = vweird.f32 %v1563
        %vm1571 = vmor %vm1569, %vm1570
        %v1572 = vsel %vm1571, %v1563, %v1568
        %v1573 = vmul.f32 %v1556, %v1572
        %v1575 = vperm.slane %v1550, 0
        %v1577 = vmul.f32 %v1573, %v1575
        %v1579 = vperm.slane %v1551, 0
        %v1581 = vadd.f32 %v1577, %v1579
        %v1582 = vpack.c.bf16 %v1581, %v1581
        %v1583 = vld [vmem:[%s15] sm:$0xf]
        %v1584 = vld [vmem:[%s15 + $0x4] sm:$0xf]
        %v1585 = vld [vmem:[%s15 + $0x8] sm:$0xf]
        %v1586 = vld [vmem:[%s15 + $0xc] sm:$0xf]
        %v1587 = vld [vmem:[%s16] sm:$0x1]
        %v1589 = vperm.slane %v1587, 0
        %v1595 = vunpack.c.l.b16 %v1583
        %v1596 = vunpack.c.l.b16 %v1584
        %v1597 = vunpack.c.l.b16 %v1585
        %v1598 = vunpack.c.l.b16 %v1586
        %v1599 = vpack.c.b16 %v1596, %v1595
        %v1600 = vpack.c.b16 %v1598, %v1597
        %v1604 = vsel %vm794, %v1582, 0
        %1606 = vmatpush.bf16.msra.mxu0 0
        %1607 = vmatpush.bf16.msra.mxu0 0
        %1608 = vmatpush.bf16.msra.mxu0 0
        %1609 = vmatpush.bf16.msra.mxu0 0
        %1610 = vmatpush.bf16.msra.mxu0 0
        %1611 = vmatpush.bf16.msra.mxu0 0
        %1612 = vmatpush.bf16.msra.mxu0 %v1600
        %1613 = vmatpush.bf16.msra.mxu0 %v1599
        %1614 = vmatmul.bf16.gmra.mxu0 %v1604
        %v1615 = vpop.f32.mrf.mxu0
        %v1616 = vadd.f32 %v1589, %v1615
        %v1617 = vpop.f32.mrf.mxu0
        %1618 = vdwg.mxu0
        %v1619 = vmul.f32 %v1616, %v1616
        %v1620 = vmul.f32 %v1616, %v1619
        %v1621 = vmul.f32 %v1620, 0.044715
        %v1622 = vadd.f32 %v1616, %v1621
        %v1623 = vmul.f32 %v1622, 0.7978846
        %v1624 = vtanh.pop %v1623
        %v1625 = vadd.f32 %v1624, 1.0
        %v1626 = vmul.f32 %v1625, 0.5
        %v1627 = vmul.f32 %v1616, %v1626
        %v1628 = vpack.c.bf16 %v1627, %v1627
        %v1629 = vld [vmem:[%s17] sm:$0xf]
        %v1630 = vld [vmem:[%s17 + $0x4] sm:$0xf]
        %v1631 = vld [vmem:[%s17 + $0x8] sm:$0xf]
        %v1632 = vld [vmem:[%s17 + $0xc] sm:$0xf]
        %v1633 = vld [vmem:[%s17 + $0x10] sm:$0xf]
        %v1634 = vld [vmem:[%s17 + $0x14] sm:$0xf]
        %v1635 = vld [vmem:[%s17 + $0x18] sm:$0xf]
        %v1636 = vld [vmem:[%s17 + $0x1c] sm:$0xf]
        %v1637 = vld [vmem:[%s18] sm:$0x1]
        %v1639 = vperm.slane %v1637, 0
        %v1649 = vunpack.c.l.b16 %v1629
        %v1650 = vunpack.c.l.b16 %v1630
        %v1651 = vunpack.c.l.b16 %v1631
        %v1652 = vunpack.c.l.b16 %v1632
        %v1653 = vunpack.c.l.b16 %v1633
        %v1654 = vunpack.c.l.b16 %v1634
        %v1655 = vunpack.c.l.b16 %v1635
        %v1656 = vunpack.c.l.b16 %v1636
        %v1657 = vpack.c.b16 %v1650, %v1649
        %v1658 = vpack.c.b16 %v1652, %v1651
        %v1659 = vpack.c.b16 %v1654, %v1653
        %v1660 = vpack.c.b16 %v1656, %v1655
        %vm1665 = vcmask 523264
        %v1667 = vsel %vm1665, %v1628, 0
        %1669 = vmatpush.bf16.msra.mxu0 0
        %1670 = vmatpush.bf16.msra.mxu0 0
        %1671 = vmatpush.bf16.msra.mxu0 0
        %1672 = vmatpush.bf16.msra.mxu0 0
        %1673 = vmatpush.bf16.msra.mxu0 %v1660
        %1674 = vmatpush.bf16.msra.mxu0 %v1659
        %1675 = vmatpush.bf16.msra.mxu0 %v1658
        %1676 = vmatpush.bf16.msra.mxu0 %v1657
        %1677 = vmatmul.bf16.gmra.mxu0 %v1667
        %v1678 = vpop.f32.mrf.mxu0
        %v1679 = vadd.f32 %v1639, %v1678
        %v1680 = vpop.f32.mrf.mxu0
        %1681 = vdwg.mxu0
        %v1682 = vadd.f32 %v1679, %v1581
        %v1683 = vld [vmem:[%s19] sm:$0x1]
        %v1684 = vld [vmem:[%s20] sm:$0x1]
        %v1685 = vsel %vm794, %v1682, 0.0
        %1686 = vadd.xlane.f32.xlu0 %v1685
        %v1687 = vpop.xlane.xlu0 %1686
        %v1688 = vmul.f32 %v1687, %v804
        %v1689 = vsub.f32 %v1682, %v1688
        %v1690 = vmul.f32 %v1689, %v1689
        %v1691 = vsel %vm794, %v1690, 0.0
        %1692 = vadd.xlane.f32.xlu0 %v1691
        %v1693 = vpop.xlane.xlu0 %1692
        %v1694 = vmul.f32 %v1693, %v804
        %v1695 = vadd.f32 %v1694, 1e-05
        %v1696 = vrsqrt.pop %v1695
        %v1697 = vmul.f32 %v1696, %v1695
        %v1698 = vmul.f32 %v1697, %v1696
        %v1699 = vmul.f32 0.5, %v1698
        %v1700 = vsub.f32 1.5, %v1699
        %v1701 = vmul.f32 %v1696, %v1700
        %vm1702 = vweird.f32 %v1695
        %vm1703 = vweird.f32 %v1696
        %vm1704 = vmor %vm1702, %vm1703
        %v1705 = vsel %vm1704, %v1696, %v1701
        %v1706 = vmul.f32 %v1689, %v1705
        %v1708 = vperm.slane %v1683, 0
        %v1710 = vmul.f32 %v1706, %v1708
        %v1712 = vperm.slane %v1684, 0
        %v1714 = vadd.f32 %v1710, %v1712
        %v1715 = vpack.c.bf16 %v1714, %v1714
        %s1716 = scalar_lea.vmem %s5, 64
        %v1717 = vld [vmem:[%s1716] sm:$0xf]
        %v1718 = vld [vmem:[%s1716 + $0x4] sm:$0xf]
        %v1719 = vld [vmem:[%s1716 + $0x8] sm:$0xf]
        %v1720 = vld [vmem:[%s1716 + $0xc] sm:$0xf]
        %v1721 = vld [vmem:[%s1716 + $0x10] sm:$0xf]
        %v1722 = vld [vmem:[%s1716 + $0x14] sm:$0xf]
        %v1723 = vld [vmem:[%s1716 + $0x18] sm:$0xf]
        %v1724 = vld [vmem:[%s1716 + $0x1c] sm:$0xf]
        %v1725 = vld [vmem:[%s1716 + $0x20] sm:$0xf]
        %v1726 = vld [vmem:[%s1716 + $0x24] sm:$0xf]
        %v1727 = vld [vmem:[%s1716 + $0x28] sm:$0xf]
        %v1728 = vld [vmem:[%s1716 + $0x2c] sm:$0xf]
        %v1729 = vld [vmem:[%s1716 + $0x30] sm:$0xf]
        %v1730 = vld [vmem:[%s1716 + $0x34] sm:$0xf]
        %v1731 = vld [vmem:[%s1716 + $0x38] sm:$0xf]
        %v1732 = vld [vmem:[%s1716 + $0x3c] sm:$0xf]
        %s1733 = scalar_lea.vmem %s8, 4
        %v1734 = vld [vmem:[%s1733] sm:$0x1]
        %v1735 = vld [vmem:[%s1733 + $0x1] sm:$0x1]
        %v1736 = vld [vmem:[%s1733 + $0x2] sm:$0x1]
        %v1737 = vld [vmem:[%s1733 + $0x3] sm:$0x1]
        %v1742 = vperm.slane %v1734, 0
        %v1743 = vperm.slane %v1735, 0
        %v1744 = vperm.slane %v1736, 0
        %v1745 = vperm.slane %v1737, 0
        %v1754 = vunpack.c.l.b16 %v1717
        %v1755 = vunpack.c.l.b16 %v1718
        %v1756 = vunpack.c.l.b16 %v1719
        %v1757 = vunpack.c.l.b16 %v1720
        %v1758 = vpack.c.b16 %v1755, %v1754
        %v1759 = vpack.c.b16 %v1757, %v1756
        %v1763 = vsel %vm794, %v1715, 0
        %1765 = vmatpush.bf16.msra.mxu0 0
        %1766 = vmatpush.bf16.msra.mxu0 0
        %1767 = vmatpush.bf16.msra.mxu0 0
        %1768 = vmatpush.bf16.msra.mxu0 0
        %1769 = vmatpush.bf16.msra.mxu0 0
        %1770 = vmatpush.bf16.msra.mxu0 0
        %1771 = vmatpush.bf16.msra.mxu0 %v1759
        %1772 = vmatpush.bf16.msra.mxu0 %v1758
        %1773 = vmatmul.bf16.gmra.mxu0 %v1763
        %v1774 = vpop.f32.mrf.mxu0
        %v1775 = vadd.f32 %v1742, %v1774
        %v1776 = vpop.f32.mrf.mxu0
        %1777 = vdwg.mxu0
        %v1782 = vunpack.c.l.b16 %v1721
        %v1783 = vunpack.c.l.b16 %v1722
        %v1784 = vunpack.c.l.b16 %v1723
        %v1785 = vunpack.c.l.b16 %v1724
        %v1786 = vpack.c.b16 %v1783, %v1782
        %v1787 = vpack.c.b16 %v1785, %v1784
        %1790 = vmatpush.bf16.msra.mxu0 0
        %1791 = vmatpush.bf16.msra.mxu0 0
        %1792 = vmatpush.bf16.msra.mxu0 0
        %1793 = vmatpush.bf16.msra.mxu0 0
        %1794 = vmatpush.bf16.msra.mxu0 0
        %1795 = vmatpush.bf16.msra.mxu0 0
        %1796 = vmatpush.bf16.msra.mxu0 %v1787
        %1797 = vmatpush.bf16.msra.mxu0 %v1786
        %1798 = vmatmul.bf16.gmra.mxu0 %v1763
        %v1799 = vpop.f32.mrf.mxu0
        %v1800 = vadd.f32 %v1743, %v1799
        %v1801 = vpop.f32.mrf.mxu0
        %1802 = vdwg.mxu0
        %v1807 = vunpack.c.l.b16 %v1725
        %v1808 = vunpack.c.l.b16 %v1726
        %v1809 = vunpack.c.l.b16 %v1727
        %v1810 = vunpack.c.l.b16 %v1728
        %v1811 = vpack.c.b16 %v1808, %v1807
        %v1812 = vpack.c.b16 %v1810, %v1809
        %1815 = vmatpush.bf16.msra.mxu0 0
        %1816 = vmatpush.bf16.msra.mxu0 0
        %1817 = vmatpush.bf16.msra.mxu0 0
        %1818 = vmatpush.bf16.msra.mxu0 0
        %1819 = vmatpush.bf16.msra.mxu0 0
        %1820 = vmatpush.bf16.msra.mxu0 0
        %1821 = vmatpush.bf16.msra.mxu0 %v1812
        %1822 = vmatpush.bf16.msra.mxu0 %v1811
        %1823 = vmatmul.bf16.gmra.mxu0 %v1763
        %v1824 = vpop.f32.mrf.mxu0
        %v1825 = vadd.f32 %v1744, %v1824
        %v1826 = vpop.f32.mrf.mxu0
        %1827 = vdwg.mxu0
        %v1832 = vunpack.c.l.b16 %v1729
        %v1833 = vunpack.c.l.b16 %v1730
        %v1834 = vunpack.c.l.b16 %v1731
        %v1835 = vunpack.c.l.b16 %v1732
        %v1836 = vpack.c.b16 %v1833, %v1832
        %v1837 = vpack.c.b16 %v1835, %v1834
        %1840 = vmatpush.bf16.msra.mxu0 0
        %1841 = vmatpush.bf16.msra.mxu0 0
        %1842 = vmatpush.bf16.msra.mxu0 0
        %1843 = vmatpush.bf16.msra.mxu0 0
        %1844 = vmatpush.bf16.msra.mxu0 0
        %1845 = vmatpush.bf16.msra.mxu0 0
        %1846 = vmatpush.bf16.msra.mxu0 %v1837
        %1847 = vmatpush.bf16.msra.mxu0 %v1836
        %1848 = vmatmul.bf16.gmra.mxu0 %v1763
        %v1849 = vpop.f32.mrf.mxu0
        %v1850 = vadd.f32 %v1745, %v1849
        %v1851 = vpop.f32.mrf.mxu0
        %1852 = vdwg.mxu0
        %s1853 = scalar_lea.vmem %s6, 64
        %v1854 = vld [vmem:[%s1853] sm:$0xf]
        %v1855 = vld [vmem:[%s1853 + $0x4] sm:$0xf]
        %v1856 = vld [vmem:[%s1853 + $0x8] sm:$0xf]
        %v1857 = vld [vmem:[%s1853 + $0xc] sm:$0xf]
        %v1858 = vld [vmem:[%s1853 + $0x10] sm:$0xf]
        %v1859 = vld [vmem:[%s1853 + $0x14] sm:$0xf]
        %v1860 = vld [vmem:[%s1853 + $0x18] sm:$0xf]
        %v1861 = vld [vmem:[%s1853 + $0x1c] sm:$0xf]
        %v1862 = vld [vmem:[%s1853 + $0x20] sm:$0xf]
        %v1863 = vld [vmem:[%s1853 + $0x24] sm:$0xf]
        %v1864 = vld [vmem:[%s1853 + $0x28] sm:$0xf]
        %v1865 = vld [vmem:[%s1853 + $0x2c] sm:$0xf]
        %v1866 = vld [vmem:[%s1853 + $0x30] sm:$0xf]
        %v1867 = vld [vmem:[%s1853 + $0x34] sm:$0xf]
        %v1868 = vld [vmem:[%s1853 + $0x38] sm:$0xf]
        %v1869 = vld [vmem:[%s1853 + $0x3c] sm:$0xf]
        %s1870 = scalar_lea.vmem %s9, 4
        %v1871 = vld [vmem:[%s1870] sm:$0x1]
        %v1872 = vld [vmem:[%s1870 + $0x1] sm:$0x1]
        %v1873 = vld [vmem:[%s1870 + $0x2] sm:$0x1]
        %v1874 = vld [vmem:[%s1870 + $0x3] sm:$0x1]
        %v1879 = vperm.slane %v1871, 0
        %v1880 = vperm.slane %v1872, 0
        %v1881 = vperm.slane %v1873, 0
        %v1882 = vperm.slane %v1874, 0
        %v1891 = vunpack.c.l.b16 %v1854
        %v1892 = vunpack.c.l.b16 %v1855
        %v1893 = vunpack.c.l.b16 %v1856
        %v1894 = vunpack.c.l.b16 %v1857
        %v1895 = vpack.c.b16 %v1892, %v1891
        %v1896 = vpack.c.b16 %v1894, %v1893
        %1899 = vmatpush.bf16.msra.mxu0 0
        %1900 = vmatpush.bf16.msra.mxu0 0
        %1901 = vmatpush.bf16.msra.mxu0 0
        %1902 = vmatpush.bf16.msra.mxu0 0
        %1903 = vmatpush.bf16.msra.mxu0 0
        %1904 = vmatpush.bf16.msra.mxu0 0
        %1905 = vmatpush.bf16.msra.mxu0 %v1896
        %1906 = vmatpush.bf16.msra.mxu0 %v1895
        %1907 = vmatmul.bf16.gmra.mxu0 %v1763
        %v1908 = vpop.f32.mrf.mxu0
        %v1909 = vadd.f32 %v1879, %v1908
        %v1910 = vpop.f32.mrf.mxu0
        %1911 = vdwg.mxu0
        %v1916 = vunpack.c.l.b16 %v1858
        %v1917 = vunpack.c.l.b16 %v1859
        %v1918 = vunpack.c.l.b16 %v1860
        %v1919 = vunpack.c.l.b16 %v1861
        %v1920 = vpack.c.b16 %v1917, %v1916
        %v1921 = vpack.c.b16 %v1919, %v1918
        %1924 = vmatpush.bf16.msra.mxu0 0
        %1925 = vmatpush.bf16.msra.mxu0 0
        %1926 = vmatpush.bf16.msra.mxu0 0
        %1927 = vmatpush.bf16.msra.mxu0 0
        %1928 = vmatpush.bf16.msra.mxu0 0
        %1929 = vmatpush.bf16.msra.mxu0 0
        %1930 = vmatpush.bf16.msra.mxu0 %v1921
        %1931 = vmatpush.bf16.msra.mxu0 %v1920
        %1932 = vmatmul.bf16.gmra.mxu0 %v1763
        %v1933 = vpop.f32.mrf.mxu0
        %v1934 = vadd.f32 %v1880, %v1933
        %v1935 = vpop.f32.mrf.mxu0
        %1936 = vdwg.mxu0
        %v1941 = vunpack.c.l.b16 %v1862
        %v1942 = vunpack.c.l.b16 %v1863
        %v1943 = vunpack.c.l.b16 %v1864
        %v1944 = vunpack.c.l.b16 %v1865
        %v1945 = vpack.c.b16 %v1942, %v1941
        %v1946 = vpack.c.b16 %v1944, %v1943
        %1949 = vmatpush.bf16.msra.mxu0 0
        %1950 = vmatpush.bf16.msra.mxu0 0
        %1951 = vmatpush.bf16.msra.mxu0 0
        %1952 = vmatpush.bf16.msra.mxu0 0
        %1953 = vmatpush.bf16.msra.mxu0 0
        %1954 = vmatpush.bf16.msra.mxu0 0
        %1955 = vmatpush.bf16.msra.mxu0 %v1946
        %1956 = vmatpush.bf16.msra.mxu0 %v1945
        %1957 = vmatmul.bf16.gmra.mxu0 %v1763
        %v1958 = vpop.f32.mrf.mxu0
        %v1959 = vadd.f32 %v1881, %v1958
        %v1960 = vpop.f32.mrf.mxu0
        %1961 = vdwg.mxu0
        %v1966 = vunpack.c.l.b16 %v1866
        %v1967 = vunpack.c.l.b16 %v1867
        %v1968 = vunpack.c.l.b16 %v1868
        %v1969 = vunpack.c.l.b16 %v1869
        %v1970 = vpack.c.b16 %v1967, %v1966
        %v1971 = vpack.c.b16 %v1969, %v1968
        %1974 = vmatpush.bf16.msra.mxu0 0
        %1975 = vmatpush.bf16.msra.mxu0 0
        %1976 = vmatpush.bf16.msra.mxu0 0
        %1977 = vmatpush.bf16.msra.mxu0 0
        %1978 = vmatpush.bf16.msra.mxu0 0
        %1979 = vmatpush.bf16.msra.mxu0 0
        %1980 = vmatpush.bf16.msra.mxu0 %v1971
        %1981 = vmatpush.bf16.msra.mxu0 %v1970
        %1982 = vmatmul.bf16.gmra.mxu0 %v1763
        %v1983 = vpop.f32.mrf.mxu0
        %v1984 = vadd.f32 %v1882, %v1983
        %v1985 = vpop.f32.mrf.mxu0
        %1986 = vdwg.mxu0
        %s1987 = scalar_lea.vmem %s7, 64
        %v1988 = vld [vmem:[%s1987] sm:$0xf]
        %v1989 = vld [vmem:[%s1987 + $0x4] sm:$0xf]
        %v1990 = vld [vmem:[%s1987 + $0x8] sm:$0xf]
        %v1991 = vld [vmem:[%s1987 + $0xc] sm:$0xf]
        %v1992 = vld [vmem:[%s1987 + $0x10] sm:$0xf]
        %v1993 = vld [vmem:[%s1987 + $0x14] sm:$0xf]
        %v1994 = vld [vmem:[%s1987 + $0x18] sm:$0xf]
        %v1995 = vld [vmem:[%s1987 + $0x1c] sm:$0xf]
        %v1996 = vld [vmem:[%s1987 + $0x20] sm:$0xf]
        %v1997 = vld [vmem:[%s1987 + $0x24] sm:$0xf]
        %v1998 = vld [vmem:[%s1987 + $0x28] sm:$0xf]
        %v1999 = vld [vmem:[%s1987 + $0x2c] sm:$0xf]
        %v2000 = vld [vmem:[%s1987 + $0x30] sm:$0xf]
        %v2001 = vld [vmem:[%s1987 + $0x34] sm:$0xf]
        %v2002 = vld [vmem:[%s1987 + $0x38] sm:$0xf]
        %v2003 = vld [vmem:[%s1987 + $0x3c] sm:$0xf]
        %s2004 = scalar_lea.vmem %s10, 4
        %v2005 = vld [vmem:[%s2004] sm:$0x1]
        %v2006 = vld [vmem:[%s2004 + $0x1] sm:$0x1]
        %v2007 = vld [vmem:[%s2004 + $0x2] sm:$0x1]
        %v2008 = vld [vmem:[%s2004 + $0x3] sm:$0x1]
        %v2013 = vperm.slane %v2005, 0
        %v2014 = vperm.slane %v2006, 0
        %v2015 = vperm.slane %v2007, 0
        %v2016 = vperm.slane %v2008, 0
        %v2025 = vunpack.c.l.b16 %v1988
        %v2026 = vunpack.c.l.b16 %v1989
        %v2027 = vunpack.c.l.b16 %v1990
        %v2028 = vunpack.c.l.b16 %v1991
        %v2029 = vpack.c.b16 %v2026, %v2025
        %v2030 = vpack.c.b16 %v2028, %v2027
        %2033 = vmatpush.bf16.msra.mxu0 0
        %2034 = vmatpush.bf16.msra.mxu0 0
        %2035 = vmatpush.bf16.msra.mxu0 0
        %2036 = vmatpush.bf16.msra.mxu0 0
        %2037 = vmatpush.bf16.msra.mxu0 0
        %2038 = vmatpush.bf16.msra.mxu0 0
        %2039 = vmatpush.bf16.msra.mxu0 %v2030
        %2040 = vmatpush.bf16.msra.mxu0 %v2029
        %2041 = vmatmul.bf16.gmra.mxu0 %v1763
        %v2042 = vpop.f32.mrf.mxu0
        %v2043 = vadd.f32 %v2013, %v2042
        %v2044 = vpop.f32.mrf.mxu0
        %2045 = vdwg.mxu0
        %v2050 = vunpack.c.l.b16 %v1992
        %v2051 = vunpack.c.l.b16 %v1993
        %v2052 = vunpack.c.l.b16 %v1994
        %v2053 = vunpack.c.l.b16 %v1995
        %v2054 = vpack.c.b16 %v2051, %v2050
        %v2055 = vpack.c.b16 %v2053, %v2052
        %2058 = vmatpush.bf16.msra.mxu0 0
        %2059 = vmatpush.bf16.msra.mxu0 0
        %2060 = vmatpush.bf16.msra.mxu0 0
        %2061 = vmatpush.bf16.msra.mxu0 0
        %2062 = vmatpush.bf16.msra.mxu0 0
        %2063 = vmatpush.bf16.msra.mxu0 0
        %2064 = vmatpush.bf16.msra.mxu0 %v2055
        %2065 = vmatpush.bf16.msra.mxu0 %v2054
        %2066 = vmatmul.bf16.gmra.mxu0 %v1763
        %v2067 = vpop.f32.mrf.mxu0
        %v2068 = vadd.f32 %v2014, %v2067
        %v2069 = vpop.f32.mrf.mxu0
        %2070 = vdwg.mxu0
        %v2075 = vunpack.c.l.b16 %v1996
        %v2076 = vunpack.c.l.b16 %v1997
        %v2077 = vunpack.c.l.b16 %v1998
        %v2078 = vunpack.c.l.b16 %v1999
        %v2079 = vpack.c.b16 %v2076, %v2075
        %v2080 = vpack.c.b16 %v2078, %v2077
        %2083 = vmatpush.bf16.msra.mxu0 0
        %2084 = vmatpush.bf16.msra.mxu0 0
        %2085 = vmatpush.bf16.msra.mxu0 0
        %2086 = vmatpush.bf16.msra.mxu0 0
        %2087 = vmatpush.bf16.msra.mxu0 0
        %2088 = vmatpush.bf16.msra.mxu0 0
        %2089 = vmatpush.bf16.msra.mxu0 %v2080
        %2090 = vmatpush.bf16.msra.mxu0 %v2079
        %2091 = vmatmul.bf16.gmra.mxu0 %v1763
        %v2092 = vpop.f32.mrf.mxu0
        %v2093 = vadd.f32 %v2015, %v2092
        %v2094 = vpop.f32.mrf.mxu0
        %2095 = vdwg.mxu0
        %v2100 = vunpack.c.l.b16 %v2000
        %v2101 = vunpack.c.l.b16 %v2001
        %v2102 = vunpack.c.l.b16 %v2002
        %v2103 = vunpack.c.l.b16 %v2003
        %v2104 = vpack.c.b16 %v2101, %v2100
        %v2105 = vpack.c.b16 %v2103, %v2102
        %2108 = vmatpush.bf16.msra.mxu0 0
        %2109 = vmatpush.bf16.msra.mxu0 0
        %2110 = vmatpush.bf16.msra.mxu0 0
        %2111 = vmatpush.bf16.msra.mxu0 0
        %2112 = vmatpush.bf16.msra.mxu0 0
        %2113 = vmatpush.bf16.msra.mxu0 0
        %2114 = vmatpush.bf16.msra.mxu0 %v2105
        %2115 = vmatpush.bf16.msra.mxu0 %v2104
        %2116 = vmatmul.bf16.gmra.mxu0 %v1763
        %v2117 = vpop.f32.mrf.mxu0
        %v2118 = vadd.f32 %v2016, %v2117
        %v2119 = vpop.f32.mrf.mxu0
        %2120 = vdwg.mxu0
        %v2121 = vpack.c.bf16 %v1775, %v1775
        %v2122 = vpack.c.bf16 %v1800, %v1800
        %v2123 = vpack.c.bf16 %v1825, %v1825
        %v2124 = vpack.c.bf16 %v1850, %v1850
        %v2125 = vpack.c.bf16 %v1909, %v1909
        %v2126 = vpack.c.bf16 %v1934, %v1934
        %v2127 = vpack.c.bf16 %v1959, %v1959
        %v2128 = vpack.c.bf16 %v1984, %v1984
        %v2130 = vsel %vm1247, %v2121, 0
        %v2133 = vsel %vm1247, %v2125, 0
        %2135 = vmatpush.bf16.xpose.msra.mxu0 0
        %2136 = vmatpush.bf16.xpose.msra.mxu0 0
        %2137 = vmatpush.bf16.xpose.msra.mxu0 0
        %2138 = vmatpush.bf16.xpose.msra.mxu0 0
        %2139 = vmatpush.bf16.xpose.msra.mxu0 0
        %2140 = vmatpush.bf16.xpose.msra.mxu0 0
        %2141 = vmatpush.bf16.xpose.msra.mxu0 0
        %2142 = vmatpush.bf16.xpose.msra.mxu0 %v2133
        %2143 = vmatmul.bf16.gmra.mxu0 %v2130
        %v2144 = vpop.f32.mrf.mxu0
        %v2145 = vadd.f32 %v1245, %v2144
        %v2146 = vpop.f32.mrf.mxu0
        %2147 = vdwg.mxu0
        %v2149 = vsel %vm1247, %v2122, 0
        %v2152 = vsel %vm1247, %v2126, 0
        %2154 = vmatpush.bf16.xpose.msra.mxu0 0
        %2155 = vmatpush.bf16.xpose.msra.mxu0 0
        %2156 = vmatpush.bf16.xpose.msra.mxu0 0
        %2157 = vmatpush.bf16.xpose.msra.mxu0 0
        %2158 = vmatpush.bf16.xpose.msra.mxu0 0
        %2159 = vmatpush.bf16.xpose.msra.mxu0 0
        %2160 = vmatpush.bf16.xpose.msra.mxu0 0
        %2161 = vmatpush.bf16.xpose.msra.mxu0 %v2152
        %2162 = vmatmul.bf16.gmra.mxu0 %v2149
        %v2163 = vpop.f32.mrf.mxu0
        %v2164 = vadd.f32 %v1245, %v2163
        %v2165 = vpop.f32.mrf.mxu0
        %2166 = vdwg.mxu0
        %v2168 = vsel %vm1247, %v2123, 0
        %v2171 = vsel %vm1247, %v2127, 0
        %2173 = vmatpush.bf16.xpose.msra.mxu0 0
        %2174 = vmatpush.bf16.xpose.msra.mxu0 0
        %2175 = vmatpush.bf16.xpose.msra.mxu0 0
        %2176 = vmatpush.bf16.xpose.msra.mxu0 0
        %2177 = vmatpush.bf16.xpose.msra.mxu0 0
        %2178 = vmatpush.bf16.xpose.msra.mxu0 0
        %2179 = vmatpush.bf16.xpose.msra.mxu0 0
        %2180 = vmatpush.bf16.xpose.msra.mxu0 %v2171
        %2181 = vmatmul.bf16.gmra.mxu0 %v2168
        %v2182 = vpop.f32.mrf.mxu0
        %v2183 = vadd.f32 %v1245, %v2182
        %v2184 = vpop.f32.mrf.mxu0
        %2185 = vdwg.mxu0
        %v2187 = vsel %vm1247, %v2124, 0
        %v2190 = vsel %vm1247, %v2128, 0
        %2192 = vmatpush.bf16.xpose.msra.mxu0 0
        %2193 = vmatpush.bf16.xpose.msra.mxu0 0
        %2194 = vmatpush.bf16.xpose.msra.mxu0 0
        %2195 = vmatpush.bf16.xpose.msra.mxu0 0
        %2196 = vmatpush.bf16.xpose.msra.mxu0 0
        %2197 = vmatpush.bf16.xpose.msra.mxu0 0
        %2198 = vmatpush.bf16.xpose.msra.mxu0 0
        %2199 = vmatpush.bf16.xpose.msra.mxu0 %v2190
        %2200 = vmatmul.bf16.gmra.mxu0 %v2187
        %v2201 = vpop.f32.mrf.mxu0
        %v2202 = vadd.f32 %v1245, %v2201
        %v2203 = vpop.f32.mrf.mxu0
        %2204 = vdwg.mxu0
        %v2205 = vsel %vm1247, %v2145, -inf
        %2206 = vmax.xlane.f32.xlu0 %v2205
        %v2207 = vpop.xlane.xlu0 %2206
        %v2208 = vsel %vm1247, %v2164, -inf
        %2209 = vmax.xlane.f32.xlu0 %v2208
        %v2210 = vpop.xlane.xlu0 %2209
        %v2211 = vsel %vm1247, %v2183, -inf
        %2212 = vmax.xlane.f32.xlu0 %v2211
        %v2213 = vpop.xlane.xlu0 %2212
        %v2214 = vsel %vm1247, %v2202, -inf
        %2215 = vmax.xlane.f32.xlu0 %v2214
        %v2216 = vpop.xlane.xlu0 %2215
        %v2217 = vsub.f32 %v2145, %v2207
        %v2218 = vsub.f32 %v2164, %v2210
        %v2219 = vsub.f32 %v2183, %v2213
        %v2220 = vsub.f32 %v2202, %v2216
        %v2221 = vmul.f32 %v2217, 1.442695
        %v2222 = vpow.pop %v2221
        %v2223 = vmul.f32 %v2218, 1.442695
        %v2224 = vpow.pop %v2223
        %v2225 = vmul.f32 %v2219, 1.442695
        %v2226 = vpow.pop %v2225
        %v2227 = vmul.f32 %v2220, 1.442695
        %v2228 = vpow.pop %v2227
        %v2229 = vsel %vm1247, %v2222, 0.0
        %2230 = vadd.xlane.f32.xlu0 %v2229
        %v2231 = vpop.xlane.xlu0 %2230
        %v2232 = vsel %vm1247, %v2224, 0.0
        %2233 = vadd.xlane.f32.xlu0 %v2232
        %v2234 = vpop.xlane.xlu0 %2233
        %v2235 = vsel %vm1247, %v2226, 0.0
        %2236 = vadd.xlane.f32.xlu0 %v2235
        %v2237 = vpop.xlane.xlu0 %2236
        %v2238 = vsel %vm1247, %v2228, 0.0
        %2239 = vadd.xlane.f32.xlu0 %v2238
        %v2240 = vpop.xlane.xlu0 %2239
        %v2241 = vrcp.pop %v2231
        %v2242 = vrcp.pop %v2234
        %v2243 = vrcp.pop %v2237
        %v2244 = vrcp.pop %v2240
        %v2245 = vmul.f32 %v2222, %v2241
        %v2246 = vmul.f32 %v2224, %v2242
        %v2247 = vmul.f32 %v2226, %v2243
        %v2248 = vmul.f32 %v2228, %v2244
        %v2249 = vpack.c.bf16 %v2245, %v2245
        %v2250 = vpack.c.bf16 %v2246, %v2246
        %v2251 = vpack.c.bf16 %v2247, %v2247
        %v2252 = vpack.c.bf16 %v2248, %v2248
        %v2253 = vpack.c.bf16 %v2043, %v2043
        %v2254 = vpack.c.bf16 %v2068, %v2068
        %v2255 = vpack.c.bf16 %v2093, %v2093
        %v2256 = vpack.c.bf16 %v2118, %v2118
        %v2258 = vsel %vm1247, %v2249, 0
        %v2261 = vsel %vm1379, %v2253, 0
        %2263 = vmatpush.bf16.msra.mxu0 0
        %2264 = vmatpush.bf16.msra.mxu0 0
        %2265 = vmatpush.bf16.msra.mxu0 0
        %2266 = vmatpush.bf16.msra.mxu0 0
        %2267 = vmatpush.bf16.msra.mxu0 0
        %2268 = vmatpush.bf16.msra.mxu0 0
        %2269 = vmatpush.bf16.msra.mxu0 0
        %2270 = vmatpush.bf16.msra.mxu0 %v2261
        %2271 = vmatmul.bf16.gmra.mxu0 %v2258
        %v2272 = vpop.f32.mrf.mxu0
        %v2273 = vadd.f32 0.0, %v2272
        %v2274 = vpop.f32.mrf.mxu0
        %2275 = vdwg.mxu0
        %v2277 = vsel %vm1247, %v2250, 0
        %v2280 = vsel %vm1379, %v2254, 0
        %2282 = vmatpush.bf16.msra.mxu0 0
        %2283 = vmatpush.bf16.msra.mxu0 0
        %2284 = vmatpush.bf16.msra.mxu0 0
        %2285 = vmatpush.bf16.msra.mxu0 0
        %2286 = vmatpush.bf16.msra.mxu0 0
        %2287 = vmatpush.bf16.msra.mxu0 0
        %2288 = vmatpush.bf16.msra.mxu0 0
        %2289 = vmatpush.bf16.msra.mxu0 %v2280
        %2290 = vmatmul.bf16.gmra.mxu0 %v2277
        %v2291 = vpop.f32.mrf.mxu0
        %v2292 = vadd.f32 0.0, %v2291
        %v2293 = vpop.f32.mrf.mxu0
        %2294 = vdwg.mxu0
        %v2296 = vsel %vm1247, %v2251, 0
        %v2299 = vsel %vm1379, %v2255, 0
        %2301 = vmatpush.bf16.msra.mxu0 0
        %2302 = vmatpush.bf16.msra.mxu0 0
        %2303 = vmatpush.bf16.msra.mxu0 0
        %2304 = vmatpush.bf16.msra.mxu0 0
        %2305 = vmatpush.bf16.msra.mxu0 0
        %2306 = vmatpush.bf16.msra.mxu0 0
        %2307 = vmatpush.bf16.msra.mxu0 0
        %2308 = vmatpush.bf16.msra.mxu0 %v2299
        %2309 = vmatmul.bf16.gmra.mxu0 %v2296
        %v2310 = vpop.f32.mrf.mxu0
        %v2311 = vadd.f32 0.0, %v2310
        %v2312 = vpop.f32.mrf.mxu0
        %2313 = vdwg.mxu0
        %v2315 = vsel %vm1247, %v2252, 0
        %v2318 = vsel %vm1379, %v2256, 0
        %2320 = vmatpush.bf16.msra.mxu0 0
        %2321 = vmatpush.bf16.msra.mxu0 0
        %2322 = vmatpush.bf16.msra.mxu0 0
        %2323 = vmatpush.bf16.msra.mxu0 0
        %2324 = vmatpush.bf16.msra.mxu0 0
        %2325 = vmatpush.bf16.msra.mxu0 0
        %2326 = vmatpush.bf16.msra.mxu0 0
        %2327 = vmatpush.bf16.msra.mxu0 %v2318
        %2328 = vmatmul.bf16.gmra.mxu0 %v2315
        %v2329 = vpop.f32.mrf.mxu0
        %v2330 = vadd.f32 0.0, %v2329
        %v2331 = vpop.f32.mrf.mxu0
        %2332 = vdwg.mxu0
        %v2333 = vpack.c.bf16 %v2273, %v2273
        %v2334 = vpack.c.bf16 %v2292, %v2292
        %v2335 = vpack.c.bf16 %v2311, %v2311
        %v2336 = vpack.c.bf16 %v2330, %v2330
        %s2337 = scalar_lea.vmem %s11, 16
        %v2338 = vld [vmem:[%s2337] sm:$0xf]
        %v2339 = vld [vmem:[%s2337 + $0x4] sm:$0xf]
        %v2340 = vld [vmem:[%s2337 + $0x8] sm:$0xf]
        %v2341 = vld [vmem:[%s2337 + $0xc] sm:$0xf]
        %v2343 = vsel %vm1247, %v2333, 0
        %v2346 = vsel %vm1379, %v2338, 0
        %2348 = vmatpush.bf16.msra.mxu0 0
        %2349 = vmatpush.bf16.msra.mxu0 0
        %2350 = vmatpush.bf16.msra.mxu0 0
        %2351 = vmatpush.bf16.msra.mxu0 0
        %2352 = vmatpush.bf16.msra.mxu0 0
        %2353 = vmatpush.bf16.msra.mxu0 0
        %2354 = vmatpush.bf16.msra.mxu0 0
        %2355 = vmatpush.bf16.msra.mxu0 %v2346
        %2356 = vmatmul.bf16.gmra.mxu0 %v2343
        %v2357 = vpop.f32.mrf.mxu0
        %v2358 = vadd.f32 0.0, %v2357
        %v2359 = vpop.f32.mrf.mxu0
        %2360 = vdwg.mxu0
        %v2362 = vsel %vm1247, %v2334, 0
        %v2365 = vsel %vm1379, %v2339, 0
        %2367 = vmatpush.bf16.msra.mxu0 0
        %2368 = vmatpush.bf16.msra.mxu0 0
        %2369 = vmatpush.bf16.msra.mxu0 0
        %2370 = vmatpush.bf16.msra.mxu0 0
        %2371 = vmatpush.bf16.msra.mxu0 0
        %2372 = vmatpush.bf16.msra.mxu0 0
        %2373 = vmatpush.bf16.msra.mxu0 0
        %2374 = vmatpush.bf16.msra.mxu0 %v2365
        %2375 = vmatmul.bf16.gmra.mxu0 %v2362
        %v2376 = vpop.f32.mrf.mxu0
        %v2377 = vadd.f32 0.0, %v2376
        %v2378 = vpop.f32.mrf.mxu0
        %2379 = vdwg.mxu0
        %v2381 = vsel %vm1247, %v2335, 0
        %v2384 = vsel %vm1379, %v2340, 0
        %2386 = vmatpush.bf16.msra.mxu0 0
        %2387 = vmatpush.bf16.msra.mxu0 0
        %2388 = vmatpush.bf16.msra.mxu0 0
        %2389 = vmatpush.bf16.msra.mxu0 0
        %2390 = vmatpush.bf16.msra.mxu0 0
        %2391 = vmatpush.bf16.msra.mxu0 0
        %2392 = vmatpush.bf16.msra.mxu0 0
        %2393 = vmatpush.bf16.msra.mxu0 %v2384
        %2394 = vmatmul.bf16.gmra.mxu0 %v2381
        %v2395 = vpop.f32.mrf.mxu0
        %v2396 = vadd.f32 0.0, %v2395
        %v2397 = vpop.f32.mrf.mxu0
        %2398 = vdwg.mxu0
        %v2400 = vsel %vm1247, %v2336, 0
        %v2403 = vsel %vm1379, %v2341, 0
        %2405 = vmatpush.bf16.msra.mxu0 0
        %2406 = vmatpush.bf16.msra.mxu0 0
        %2407 = vmatpush.bf16.msra.mxu0 0
        %2408 = vmatpush.bf16.msra.mxu0 0
        %2409 = vmatpush.bf16.msra.mxu0 0
        %2410 = vmatpush.bf16.msra.mxu0 0
        %2411 = vmatpush.bf16.msra.mxu0 0
        %2412 = vmatpush.bf16.msra.mxu0 %v2403
        %2413 = vmatmul.bf16.gmra.mxu0 %v2400
        %v2414 = vpop.f32.mrf.mxu0
        %v2415 = vadd.f32 0.0, %v2414
        %v2416 = vpop.f32.mrf.mxu0
        %2417 = vdwg.mxu0
        %v2418 = vsel %vm794, %v2358, 0.0
        %v2419 = vsel %vm794, %v2377, 0.0
        %v2420 = vadd.f32 %v2418, %v2419
        %v2421 = vsel %vm794, %v2396, 0.0
        %v2422 = vadd.f32 %v2420, %v2421
        %v2423 = vsel %vm794, %v2415, 0.0
        %v2424 = vadd.f32 %v2422, %v2423
        %s2425 = scalar_lea.vmem %s12, 1
        %v2426 = vld [vmem:[%s2425] sm:$0x1]
        %v2428 = vperm.slane %v2426, 0
        %v2430 = vadd.f32 %v2424, %v2428
        %v2431 = vadd.f32 %v2430, %v1714
        %s2432 = scalar_lea.vmem %s13, 1
        %v2433 = vld [vmem:[%s2432] sm:$0x1]
        %s2434 = scalar_lea.vmem %s14, 1
        %v2435 = vld [vmem:[%s2434] sm:$0x1]
        %v2436 = vsel %vm794, %v2431, 0.0
        %2437 = vadd.xlane.f32.xlu0 %v2436
        %v2438 = vpop.xlane.xlu0 %2437
        %v2439 = vmul.f32 %v2438, %v804
        %v2440 = vsub.f32 %v2431, %v2439
        %v2441 = vmul.f32 %v2440, %v2440
        %v2442 = vsel %vm794, %v2441, 0.0
        %2443 = vadd.xlane.f32.xlu0 %v2442
        %v2444 = vpop.xlane.xlu0 %2443
        %v2445 = vmul.f32 %v2444, %v804
        %v2446 = vadd.f32 %v2445, 1e-05
        %v2447 = vrsqrt.pop %v2446
        %v2448 = vmul.f32 %v2447, %v2446
        %v2449 = vmul.f32 %v2448, %v2447
        %v2450 = vmul.f32 0.5, %v2449
        %v2451 = vsub.f32 1.5, %v2450
        %v2452 = vmul.f32 %v2447, %v2451
        %vm2453 = vweird.f32 %v2446
        %vm2454 = vweird.f32 %v2447
        %vm2455 = vmor %vm2453, %vm2454
        %v2456 = vsel %vm2455, %v2447, %v2452
        %v2457 = vmul.f32 %v2440, %v2456
        %v2459 = vperm.slane %v2433, 0
        %v2461 = vmul.f32 %v2457, %v2459
        %v2463 = vperm.slane %v2435, 0
        %v2465 = vadd.f32 %v2461, %v2463
        %v2466 = vpack.c.bf16 %v2465, %v2465
        %s2467 = scalar_lea.vmem %s15, 16
        %v2468 = vld [vmem:[%s2467] sm:$0xf]
        %v2469 = vld [vmem:[%s2467 + $0x4] sm:$0xf]
        %v2470 = vld [vmem:[%s2467 + $0x8] sm:$0xf]
        %v2471 = vld [vmem:[%s2467 + $0xc] sm:$0xf]
        %s2472 = scalar_lea.vmem %s16, 1
        %v2473 = vld [vmem:[%s2472] sm:$0x1]
        %v2475 = vperm.slane %v2473, 0
        %v2481 = vunpack.c.l.b16 %v2468
        %v2482 = vunpack.c.l.b16 %v2469
        %v2483 = vunpack.c.l.b16 %v2470
        %v2484 = vunpack.c.l.b16 %v2471
        %v2485 = vpack.c.b16 %v2482, %v2481
        %v2486 = vpack.c.b16 %v2484, %v2483
        %v2490 = vsel %vm794, %v2466, 0
        %2492 = vmatpush.bf16.msra.mxu0 0
        %2493 = vmatpush.bf16.msra.mxu0 0
        %2494 = vmatpush.bf16.msra.mxu0 0
        %2495 = vmatpush.bf16.msra.mxu0 0
        %2496 = vmatpush.bf16.msra.mxu0 0
        %2497 = vmatpush.bf16.msra.mxu0 0
        %2498 = vmatpush.bf16.msra.mxu0 %v2486
        %2499 = vmatpush.bf16.msra.mxu0 %v2485
        %2500 = vmatmul.bf16.gmra.mxu0 %v2490
        %v2501 = vpop.f32.mrf.mxu0
        %v2502 = vadd.f32 %v2475, %v2501
        %v2503 = vpop.f32.mrf.mxu0
        %2504 = vdwg.mxu0
        %v2505 = vmul.f32 %v2502, %v2502
        %v2506 = vmul.f32 %v2502, %v2505
        %v2507 = vmul.f32 %v2506, 0.044715
        %v2508 = vadd.f32 %v2502, %v2507
        %v2509 = vmul.f32 %v2508, 0.7978846
        %v2510 = vtanh.pop %v2509
        %v2511 = vadd.f32 %v2510, 1.0
        %v2512 = vmul.f32 %v2511, 0.5
        %v2513 = vmul.f32 %v2502, %v2512
        %v2514 = vpack.c.bf16 %v2513, %v2513
        %s2515 = scalar_lea.vmem %s17, 32
        %v2516 = vld [vmem:[%s2515] sm:$0xf]
        %v2517 = vld [vmem:[%s2515 + $0x4] sm:$0xf]
        %v2518 = vld [vmem:[%s2515 + $0x8] sm:$0xf]
        %v2519 = vld [vmem:[%s2515 + $0xc] sm:$0xf]
        %v2520 = vld [vmem:[%s2515 + $0x10] sm:$0xf]
        %v2521 = vld [vmem:[%s2515 + $0x14] sm:$0xf]
        %v2522 = vld [vmem:[%s2515 + $0x18] sm:$0xf]
        %v2523 = vld [vmem:[%s2515 + $0x1c] sm:$0xf]
        %s2524 = scalar_lea.vmem %s18, 1
        %v2525 = vld [vmem:[%s2524] sm:$0x1]
        %v2527 = vperm.slane %v2525, 0
        %v2537 = vunpack.c.l.b16 %v2516
        %v2538 = vunpack.c.l.b16 %v2517
        %v2539 = vunpack.c.l.b16 %v2518
        %v2540 = vunpack.c.l.b16 %v2519
        %v2541 = vunpack.c.l.b16 %v2520
        %v2542 = vunpack.c.l.b16 %v2521
        %v2543 = vunpack.c.l.b16 %v2522
        %v2544 = vunpack.c.l.b16 %v2523
        %v2545 = vpack.c.b16 %v2538, %v2537
        %v2546 = vpack.c.b16 %v2540, %v2539
        %v2547 = vpack.c.b16 %v2542, %v2541
        %v2548 = vpack.c.b16 %v2544, %v2543
        %v2554 = vsel %vm1665, %v2514, 0
        %2556 = vmatpush.bf16.msra.mxu0 0
        %2557 = vmatpush.bf16.msra.mxu0 0
        %2558 = vmatpush.bf16.msra.mxu0 0
        %2559 = vmatpush.bf16.msra.mxu0 0
        %2560 = vmatpush.bf16.msra.mxu0 %v2548
        %2561 = vmatpush.bf16.msra.mxu0 %v2547
        %2562 = vmatpush.bf16.msra.mxu0 %v2546
        %2563 = vmatpush.bf16.msra.mxu0 %v2545
        %2564 = vmatmul.bf16.gmra.mxu0 %v2554
        %v2565 = vpop.f32.mrf.mxu0
        %v2566 = vadd.f32 %v2527, %v2565
        %v2567 = vpop.f32.mrf.mxu0
        %2568 = vdwg.mxu0
        %v2569 = vadd.f32 %v2566, %v2465
        %s2570 = scalar_lea.vmem %s19, 1
        %v2571 = vld [vmem:[%s2570] sm:$0x1]
        %s2572 = scalar_lea.vmem %s20, 1
        %v2573 = vld [vmem:[%s2572] sm:$0x1]
        %v2574 = vsel %vm794, %v2569, 0.0
        %2575 = vadd.xlane.f32.xlu0 %v2574
        %v2576 = vpop.xlane.xlu0 %2575
        %v2577 = vmul.f32 %v2576, %v804
        %v2578 = vsub.f32 %v2569, %v2577
        %v2579 = vmul.f32 %v2578, %v2578
        %v2580 = vsel %vm794, %v2579, 0.0
        %2581 = vadd.xlane.f32.xlu0 %v2580
        %v2582 = vpop.xlane.xlu0 %2581
        %v2583 = vmul.f32 %v2582, %v804
        %v2584 = vadd.f32 %v2583, 1e-05
        %v2585 = vrsqrt.pop %v2584
        %v2586 = vmul.f32 %v2585, %v2584
        %v2587 = vmul.f32 %v2586, %v2585
        %v2588 = vmul.f32 0.5, %v2587
        %v2589 = vsub.f32 1.5, %v2588
        %v2590 = vmul.f32 %v2585, %v2589
        %vm2591 = vweird.f32 %v2584
        %vm2592 = vweird.f32 %v2585
        %vm2593 = vmor %vm2591, %vm2592
        %v2594 = vsel %vm2593, %v2585, %v2590
        %v2595 = vmul.f32 %v2578, %v2594
        %v2597 = vperm.slane %v2571, 0
        %v2599 = vmul.f32 %v2595, %v2597
        %v2601 = vperm.slane %v2573, 0
        %v2603 = vadd.f32 %v2599, %v2601
        %v2604 = vld [vmem:[%s789] sm:$0xff]
        %vm2605 = vcmp.eq.s32.totalorder %v2604, 0
        %v2606 = vsel %vm2605, 1, 0
        %2607 = vset.pattern.permute.xlu0 0
        %2608 = vperm.xlu0 %2607, %v2606
        %v2609 = vpop.permute.xlu0 %2608
        %vm2610 = vcmp.eq.s32.totalorder %v2609, 1
        %v2611 = vsel %vm2610, -1e+09, %v2603
        %v2612 = vsel %vm794, %v2611, -inf
        %v2613 = vrot.slane %v2612, 4
        %v2614 = vmax.f32 %v2612, %v2613
        %v2615 = vrot.slane %v2614, 2
        %v2616 = vmax.f32 %v2614, %v2615
        %v2617 = vrot.slane %v2616, 1
        %v2618 = vmax.f32 %v2616, %v2617
        %v2619 = vpack.c.bf16 %v2618, %v2618
        %v2620 = vld [vmem:[%s21] sm:$0xf]
        %v2621 = vld [vmem:[%s21 + $0x4] sm:$0xf]
        %v2622 = vld [vmem:[%s21 + $0x8] sm:$0xf]
        %v2623 = vld [vmem:[%s21 + $0xc] sm:$0xf]
        %v2624 = vld [vmem:[%s22] sm:$0x1]
        %v2629 = vunpack.c.l.b16 %v2620
        %v2630 = vunpack.c.l.b16 %v2621
        %v2631 = vunpack.c.l.b16 %v2622
        %v2632 = vunpack.c.l.b16 %v2623
        %v2633 = vpack.c.b16 %v2630, %v2629
        %v2634 = vpack.c.b16 %v2632, %v2631
        %v2638 = vsel %vm794, %v2619, 0
        %2640 = vmatpush.bf16.msra.mxu0 0
        %2641 = vmatpush.bf16.msra.mxu0 0
        %2642 = vmatpush.bf16.msra.mxu0 0
        %2643 = vmatpush.bf16.msra.mxu0 0
        %2644 = vmatpush.bf16.msra.mxu0 0
        %2645 = vmatpush.bf16.msra.mxu0 0
        %2646 = vmatpush.bf16.msra.mxu0 %v2634
        %2647 = vmatpush.bf16.msra.mxu0 %v2633
        %2648 = vmatmul.bf16.gmra.mxu0 %v2638
        %v2649 = vpop.f32.mrf.mxu0
        %v2650 = vadd.f32 %v2624, %v2649
        %v2651 = vpop.f32.mrf.mxu0
        %2652 = vdwg.mxu0
        %v2653 = vpack.c.bf16 %v2650, %v2650
        %v2654 = vld [vmem:[%s23] sm:$0xf]
        %v2655 = vld [vmem:[%s23 + $0x4] sm:$0xf]
        %v2656 = vld [vmem:[%s23 + $0x8] sm:$0xf]
        %v2657 = vld [vmem:[%s23 + $0xc] sm:$0xf]
        %v2658 = vld [vmem:[%s24] sm:$0x1]
        %v2663 = vunpack.c.l.b16 %v2654
        %v2664 = vunpack.c.l.b16 %v2655
        %v2665 = vunpack.c.l.b16 %v2656
        %v2666 = vunpack.c.l.b16 %v2657
        %v2667 = vpack.c.b16 %v2664, %v2663
        %v2668 = vpack.c.b16 %v2666, %v2665
        %v2672 = vsel %vm794, %v2653, 0
        %2674 = vmatpush.bf16.msra.mxu0 0
        %2675 = vmatpush.bf16.msra.mxu0 0
        %2676 = vmatpush.bf16.msra.mxu0 0
        %2677 = vmatpush.bf16.msra.mxu0 0
        %2678 = vmatpush.bf16.msra.mxu0 0
        %2679 = vmatpush.bf16.msra.mxu0 0
        %2680 = vmatpush.bf16.msra.mxu0 %v2668
        %2681 = vmatpush.bf16.msra.mxu0 %v2667
        %2682 = vmatmul.bf16.gmra.mxu0 %v2672
        %v2683 = vpop.f32.mrf.mxu0
        %v2684 = vadd.f32 %v2658, %v2683
        %v2685 = vpop.f32.mrf.mxu0
        %2686 = vdwg.mxu0
        %2687 = vst [vmem:[%s778] sm:$0x1] %v2684
        %s2688 = sand.u32 %s587, 1
        %s2689 = scalar_lea.sflag [#allocation3], %s2688
        %s2690 = sand.u32 %s587, 1
        %s2691 = scalar_lea.vmem [#allocation2], %s2690
        // Predicated region
        $region121: #{model_forward.1} parent=119 // pred_check
          %p2692 = pneg %p597
        $region122: #{model_forward.1} parent=119 // pred_check_branch
          %2694 = sbr.rel (%p2692) target = $region124
        $region123: #{model_forward.1} parent=119 // pred_region
          %2696 = vsyncadd %s2689, 0
          %s2697 = scalar_lea.hbm %s25, %s39
          %s2699 = sshll.u32 %s2691, 4
          %s2700 = int_to_ptr.vmem [resolvable:$true] %s2699
          %s2701 = sshll.u32 %s2697, 4
          %s2702 = int_to_ptr.hbm [resolvable:$true] %s2701
          %2704 = dma.vmem_to_hbm [thread:$0]  %s2700, 16, %s2702, %s2689
        $region124: #{model_forward.1} parent=119 // pred_fallthru
          _
      $region120: #{model_forward.1} parent=5 // pred_fallthru
        _
      %p2705 = scmp.le.s32.totalorder 2, %s34
      // Predicated region
      $region125: #{model_forward.1} parent=5 // pred_check
        %p2706 = pneg %p2705
      $region126: #{model_forward.1} parent=5 // pred_check_branch
        %2708 = sbr.rel (%p2706) target = $region128
      $region127: #{model_forward.1} parent=5 // pred_region
        %s2709 = ssub.s32 %s34, 2
        // Predicated region
        $region129: #{model_forward.1} parent=127 // pred_check
          %p2710 = pneg %p603
        $region130: #{model_forward.1} parent=127 // pred_check_branch
          %2712 = sbr.rel (%p2710) target = $region132
        $region131: #{model_forward.1} parent=127 // pred_region
          %s2713 = sand.u32 %s588, 1
          %s2714 = scalar_lea.sflag [#allocation3], %s2713
          %s2715 = sand.u32 %s588, 1
          %s2716 = scalar_lea.vmem [#allocation2], %s2715
          %2718 = dma.done %s2714, 16
        $region132: #{model_forward.1} parent=127 // pred_fallthru
          _
      $region128: #{model_forward.1} parent=5 // pred_fallthru
        _
    $region6: #{model_forward.1} parent=1 // loop_footer
      %s38 = sadd.s32 1, %s34
    $region7: #{model_forward.1} parent=1 // loop_footer_branch
      %33 = sbr.rel target = $region3
    $region8: #{model_forward.1} parent=1 // loop_exit
      _
    %2719 = vsyncpa [#allocation3], 1
    %s2720 = scalar_lea.sflag [#allocation3], 1
    %2721 = vsyncpa %s2720, 1

</llo_original>
